<compile_context>
chip_gen: v7x
topology: tpu7x:2x2x1
jax: 0.10.0
libtpu: 0.0.40
codegen_flags: <defaults>
</compile_context>

<pallas_src>
import functools

import jax
import jax.numpy as jnp
from jax import lax
from jax.experimental import pallas as pl
from jax.experimental.pallas import tpu as pltpu


def _round_up(x, m):
    return (x + m - 1) // m * m


def _lstm_decoder_kernel(x_hbm, wih_ref, whh_ref, b_ref, wproj_ref, bproj_ref,
                         out_ref, h_out_ref, c_out_ref,
                         seq_ref, gx_ref, dma_sem, *, Bc, Hp, chunks, unroll):
    """One grid step == one LSTM layer over the full sequence of one batch chunk.

    x_hbm:     (nc, T*Bc, Hp) embedded inputs, memory_space=ANY (DMA'd at layer 0)
    wih_ref:   (Hp, 4Hp)      input->hidden weight, transposed, per-gate lane-padded
    whh_ref:   (Hp, 4Hp)      hidden->hidden weight, transposed, per-gate lane-padded
    b_ref:     (1, 4Hp)       combined bias (b_ih + b_hh), f32
    wproj_ref: (Hp, Op)       projection weight, transposed, padded
    bproj_ref: (1, Op)        projection bias, padded
    out_ref:   (T*Bc, Op)     projected output (written only at the last layer)
    h_out_ref: (Bc, Hp)       final hidden state for this (layer, chunk)
    c_out_ref: (Bc, Hp)       final cell state for this (layer, chunk)
    seq_ref:   (T*Bc, Hp)     VMEM scratch, persists across layers (layer in/out)
    gx_ref:    (TC*Bc, 4Hp)   VMEM scratch, time-chunked hoisted x @ W_ih + bias
    dma_sem:   (1,)           DMA semaphore for the layer-0 input copy
    """
    layer = pl.program_id(1)
    chunk_idx = pl.program_id(0)

    # Layer 0 consumes the embedded tokens: DMA HBM -> layer-carry scratch directly
    # (no auto-pipelined, double-buffered input block, no vreg copy).
    @pl.when(layer == 0)
    def _():
        cp = pltpu.make_async_copy(x_hbm.at[chunk_idx], seq_ref, dma_sem.at[0])
        cp.start()
        cp.wait()

    wih = wih_ref[...]
    whh = whh_ref[...]
    bias = b_ref[...]

    h = jnp.zeros((Bc, Hp), jnp.float32)
    c = jnp.zeros((Bc, Hp), jnp.float32)

    # Static Python loop over time chunks; h/c carried across chunks.
    for t0, clen in chunks:
        row0 = t0 * Bc          # static, multiple of Bc
        rows = clen * Bc        # static, multiple of 8 sublanes

        # Hoisted input projection + bias for this chunk: one big MXU matmul
        # instead of `clen` tiny ones inside the recurrence.
        gx_ref[0:rows, :] = (
            jnp.dot(seq_ref[row0:row0 + rows, :], wih,
                    preferred_element_type=jnp.float32) + bias
        ).astype(gx_ref.dtype)

        def step(t, carry):
            h_t, c_t = carry                                   # f32 (Bc, Hp)
            rel = pl.multiple_of(t * Bc, Bc)
            gates = gx_ref[pl.ds(rel, Bc), :].astype(jnp.float32) + jnp.dot(
                h_t.astype(whh.dtype), whh, preferred_element_type=jnp.float32)
            # Gate order matches PyTorch: [i | f | g | o]; each gate is 128-lane
            # aligned so the slices are layout-free.
            i_g = jax.nn.sigmoid(gates[:, 0 * Hp:1 * Hp])
            f_g = jax.nn.sigmoid(gates[:, 1 * Hp:2 * Hp])
            g_g = jnp.tanh(gates[:, 2 * Hp:3 * Hp])
            o_g = jax.nn.sigmoid(gates[:, 3 * Hp:4 * Hp])
            c_new = f_g * c_t + i_g * g_g
            h_new = o_g * jnp.tanh(c_new)
            # Overwrite the sequence in place -> becomes the next layer's input.
            seq_ref[pl.ds(pl.multiple_of(row0 + rel, Bc), Bc), :] = (
                h_new.astype(seq_ref.dtype))
            return h_new, c_new

        # Bounded unroll: enough for the scheduler to overlap step t+1's recurrent
        # MXU push with step t's VPU/EUP gate tail, without exploding vreg pressure.
        h, c = lax.fori_loop(0, clen, step, (h, c), unroll=min(clen, unroll))

    h_out_ref[...] = h.astype(h_out_ref.dtype)
    c_out_ref[...] = c.astype(c_out_ref.dtype)

    # Final linear projection fused into the last layer's grid step; lane-dense
    # (Op is a multiple of 128) so the store is a full vst.
    @pl.when(layer == pl.num_programs(1) - 1)
    def _():
        out_ref[...] = (
            jnp.dot(seq_ref[...], wproj_ref[...],
                    preferred_element_type=jnp.float32)
            + bproj_ref[...]).astype(out_ref.dtype)


def _pack_gate_weight(w, Hp):
    """PyTorch gate-stacked weight (4H, H_in) -> (Hp, 4*Hp): transposed and
    per-gate lane-padded so every gate starts on a 128-lane boundary."""
    h4, h_in = w.shape
    h = h4 // 4
    w4 = w.reshape(4, h, h_in).transpose(2, 0, 1)            # (H_in, 4, H)
    w4 = jnp.pad(w4, ((0, Hp - h_in), (0, 0), (0, Hp - h)))  # (Hp, 4, Hp)
    return w4.reshape(Hp, 4 * Hp)


def _pack_gate_bias(b, Hp):
    h = b.shape[0] // 4
    b4 = jnp.pad(b.reshape(4, h), ((0, 0), (0, Hp - h)))
    return b4.reshape(1, 4 * Hp)


def _vmem_limit_bytes():
    """~85% of physical VMEM (per review: ~100 MiB on v5e/v6e, ~56 MiB on v7x)."""
    try:
        cap = int(pltpu.get_tpu_info().vmem_capacity_bytes)
    except Exception:
        cap = 64 * 1024 * 1024
    return max(32 * 1024 * 1024, int(cap * 0.85))


def rnn_decoder_forward(tokens, params, *, matmul_dtype=jnp.bfloat16,
                        batch_chunks=1, min_rows_per_chunk=64,
                        max_time_chunk=64, gx_dtype=jnp.float32, unroll=8):
    """tokens: (B, T) int32.  Returns (output (B,T,O), (h (L,B,H), c (L,B,H)))."""
    emb = params["embedding"]            # (num_classes, H)
    w_ih = params["w_ih"]                # (L, 4H, H)   PyTorch layout
    w_hh = params["w_hh"]                # (L, 4H, H)
    b_ih = params["b_ih"]                # (L, 4H)
    b_hh = params["b_hh"]                # (L, 4H)
    w_proj = params["w_proj"]            # (O, H)
    b_proj = params["b_proj"]            # (O,)

    B, T = tokens.shape
    L, _, H = w_ih.shape
    O = w_proj.shape[0]

    LANE, SUB = 128, 8
    Hp = _round_up(H, LANE)                         # lane-aligned gates
    Op = _round_up(O, LANE)                         # lane-dense output store

    # Generation-aware chunking guard: only split the batch across chunks (megacore
    # on v7x) if each chunk keeps a reasonably tall MXU LHS; otherwise it is pure
    # overhead (serial grid loop on v5e/v6e, re-streamed weights, tiny-M matmuls).
    nc = int(batch_chunks)
    if nc > 1 and _round_up(pl.cdiv(B, nc), SUB) < min_rows_per_chunk:
        nc = 1
    Bc = _round_up(pl.cdiv(B, nc), SUB)             # sublane-full batch chunk
    Bp = Bc * nc
    cdt = matmul_dtype

    # Time-chunk the hoisted gx projection so its scratch is bounded (v7x 64 MiB).
    TC = max(1, min(T, int(max_time_chunk)))
    gx_item = jnp.dtype(gx_dtype).itemsize
    while TC > 1 and TC * Bc * 4 * Hp * gx_item > 16 * 1024 * 1024:
        TC = (TC + 1) // 2
    chunks = []
    t0 = 0
    while t0 < T:
        clen = min(TC, T - t0)
        chunks.append((t0, clen))
        t0 += clen
    chunks = tuple(chunks)

    # ---- parameter packing (plain-JAX glue) ----
    wih_p = jnp.stack([_pack_gate_weight(w_ih[l], Hp) for l in range(L)]).astype(cdt)
    whh_p = jnp.stack([_pack_gate_weight(w_hh[l], Hp) for l in range(L)]).astype(cdt)
    bias_p = jnp.stack([_pack_gate_bias(b_ih[l] + b_hh[l], Hp) for l in range(L)])
    wproj_p = jnp.pad(w_proj.T, ((0, Hp - H), (0, Op - O))).astype(cdt)
    bproj_p = jnp.pad(b_proj, (0, Op - O))[None, :]

    # ---- embedding lookup + time-major, batch-chunked, lane-dense layout ----
    emb_p = jnp.pad(emb, ((0, 0), (0, Hp - H)))
    tok_p = jnp.pad(tokens, ((0, Bp - B), (0, 0)))
    x = jnp.take(emb_p, tok_p, axis=0)                       # (Bp, T, Hp)
    x = x.transpose(1, 0, 2).reshape(T, nc, Bc, Hp)          # time-major
    x = x.transpose(1, 0, 2, 3).reshape(nc, T * Bc, Hp).astype(cdt)

    kernel = functools.partial(_lstm_decoder_kernel, Bc=Bc, Hp=Hp,
                               chunks=chunks, unroll=int(unroll))

    # Advisory cost estimate so XLA can overlap the wrapper glue with the kernel.
    flops = int(L * 2 * (T * Bp) * Hp * (4 * Hp) * 2 + 2 * (T * Bp) * Hp * Op)
    transcendentals = int(5 * L * T * Bp * Hp)
    bytes_accessed = int(
        x.size * x.dtype.itemsize
        + nc * (wih_p.size * wih_p.dtype.itemsize + whh_p.size * whh_p.dtype.itemsize
                + bias_p.size * bias_p.dtype.itemsize)
        + wproj_p.size * wproj_p.dtype.itemsize + bproj_p.size * bproj_p.dtype.itemsize
        + nc * T * Bc * Op * 4 + 2 * L * nc * Bc * Hp * 4)

    out, h_n, c_n = pl.pallas_call(
        kernel,
        out_shape=(
            jax.ShapeDtypeStruct((nc, T * Bc, Op), jnp.float32),
            jax.ShapeDtypeStruct((L, nc, Bc, Hp), jnp.float32),
            jax.ShapeDtypeStruct((L, nc, Bc, Hp), jnp.float32),
        ),
        grid_spec=pltpu.PrefetchScalarGridSpec(
            num_scalar_prefetch=0,
            grid=(nc, L),
            in_specs=[
                pl.BlockSpec(memory_space=pl.ANY),                           # x (HBM, DMA'd at layer 0)
                pl.BlockSpec((None, Hp, 4 * Hp), lambda b, l: (l, 0, 0)),    # W_ih packed
                pl.BlockSpec((None, Hp, 4 * Hp), lambda b, l: (l, 0, 0)),    # W_hh packed
                pl.BlockSpec((None, 1, 4 * Hp), lambda b, l: (l, 0, 0)),     # bias
                pl.BlockSpec((Hp, Op), lambda b, l: (0, 0)),                 # W_proj
                pl.BlockSpec((1, Op), lambda b, l: (0, 0)),                  # b_proj
            ],
            out_specs=[
                pl.BlockSpec((None, T * Bc, Op), lambda b, l: (b, 0, 0)),        # output
                pl.BlockSpec((None, None, Bc, Hp), lambda b, l: (l, b, 0, 0)),   # h_n
                pl.BlockSpec((None, None, Bc, Hp), lambda b, l: (l, b, 0, 0)),   # c_n
            ],
            scratch_shapes=[
                pltpu.VMEM((T * Bc, Hp), cdt),               # layer activations (carry)
                pltpu.VMEM((TC * Bc, 4 * Hp), gx_dtype),     # time-chunked hoisted gx
                pltpu.SemaphoreType.DMA((1,)),               # layer-0 input DMA
            ],
        ),
        compiler_params=pltpu.CompilerParams(
            dimension_semantics=("parallel", "arbitrary"),
            vmem_limit_bytes=_vmem_limit_bytes()),
        cost_estimate=pl.CostEstimate(flops=flops,
                                      transcendentals=transcendentals,
                                      bytes_accessed=bytes_accessed),
    )(x, wih_p, whh_p, bias_p, wproj_p, bproj_p)

    # ---- unpack / unpad (plain-JAX glue) ----
    out = out.reshape(nc, T, Bc, Op).transpose(0, 2, 1, 3)   # (nc, Bc, T, Op)
    out = out.reshape(Bp, T, Op)[:B, :, :O]                  # batch_first (B, T, O)
    h_n = h_n.reshape(L, Bp, Hp)[:, :B, :H]
    c_n = c_n.reshape(L, Bp, Hp)[:, :B, :H]
    return out, (h_n, c_n)


def _reference_forward(tokens, params):
    """Pure-JAX reference reproducing PyTorch nn.Embedding -> nn.LSTM -> nn.Linear."""
    emb = params["embedding"]
    w_ih, w_hh = params["w_ih"], params["w_hh"]
    b_ih, b_hh = params["b_ih"], params["b_hh"]
    w_proj, b_proj = params["w_proj"], params["b_proj"]
    L, _, H = w_ih.shape
    B, T = tokens.shape

    x = jnp.take(emb, tokens, axis=0)  # (B, T, H)
    layer_in = x
    hs, cs = [], []
    for l in range(L):
        h = jnp.zeros((B, H), jnp.float32)
        c = jnp.zeros((B, H), jnp.float32)
        outs = []
        for t in range(T):
            gates = layer_in[:, t] @ w_ih[l].T + h @ w_hh[l].T + b_ih[l] + b_hh[l]
            i_g = jax.nn.sigmoid(gates[:, 0 * H:1 * H])
            f_g = jax.nn.sigmoid(gates[:, 1 * H:2 * H])
            g_g = jnp.tanh(gates[:, 2 * H:3 * H])
            o_g = jax.nn.sigmoid(gates[:, 3 * H:4 * H])
            c = f_g * c + i_g * g_g
            h = o_g * jnp.tanh(c)
            outs.append(h)
        layer_in = jnp.stack(outs, axis=1)
        hs.append(h)
        cs.append(c)
    out = layer_in @ w_proj.T + b_proj
    return out, (jnp.stack(hs, 0), jnp.stack(cs, 0))


def make_params(key, num_classes, hidden_dim, output_dim, num_layers):
    H, O, L = hidden_dim, output_dim, num_layers
    ks = jax.random.split(key, 7)
    scale = 1.0 / jnp.sqrt(jnp.float32(H))
    return {
        "embedding": jax.random.normal(ks[0], (num_classes, H), jnp.float32),
        "w_ih": jax.random.uniform(ks[1], (L, 4 * H, H), jnp.float32, -scale, scale),
        "w_hh": jax.random.uniform(ks[2], (L, 4 * H, H), jnp.float32, -scale, scale),
        "b_ih": jax.random.uniform(ks[3], (L, 4 * H), jnp.float32, -scale, scale),
        "b_hh": jax.random.uniform(ks[4], (L, 4 * H), jnp.float32, -scale, scale),
        "w_proj": jax.random.uniform(ks[5], (O, H), jnp.float32, -scale, scale),
        "b_proj": jax.random.uniform(ks[6], (O,), jnp.float32, -scale, scale),
    }


if __name__ == "__main__":
    num_classes, hidden_dim, output_dim, num_layers = 10, 32, 64, 2
    B, T = 2, 8

    key = jax.random.PRNGKey(0)
    k_tok, k_par = jax.random.split(key)
    tokens = jax.random.randint(k_tok, (B, T), 0, num_classes, dtype=jnp.int32)
    params = make_params(k_par, num_classes, hidden_dim, output_dim, num_layers)

    ref_out, (ref_h, ref_c) = _reference_forward(tokens, params)

    # Strict f32 path.  batch_chunks=2 with min_rows_per_chunk=8 exercises the
    # parallel batch-chunk grid axis at toy sizes (the production guard default of
    # 64 would fall back to a single chunk for B=2); max_time_chunk=4 exercises the
    # time-chunked hoisted-projection path (two chunks of 4 steps).
    fwd = jax.jit(functools.partial(
        rnn_decoder_forward, matmul_dtype=jnp.float32,
        batch_chunks=2, min_rows_per_chunk=8, max_time_chunk=4))
    out, (h_n, c_n) = fwd(tokens, params)
    jax.block_until_ready((out, h_n, c_n))
    assert out.shape == (B, T, output_dim)
    assert h_n.shape == (num_layers, B, hidden_dim)
    assert c_n.shape == (num_layers, B, hidden_dim)
    assert jnp.allclose(out, ref_out, rtol=1e-4, atol=1e-4)
    assert jnp.allclose(h_n, ref_h, rtol=1e-4, atol=1e-4)
    assert jnp.allclose(c_n, ref_c, rtol=1e-4, atol=1e-4)

    # Default path: bf16 weights/activations (MXU fast path on v6e/v7x), single batch
    # chunk; gate nonlinearities and the cell state stay in f32.
    fwd_bf16 = jax.jit(functools.partial(rnn_decoder_forward, batch_chunks=1))
    out_b, (h_b, c_b) = fwd_bf16(tokens, params)
    jax.block_until_ready((out_b, h_b, c_b))
    assert jnp.allclose(out_b, ref_out, rtol=1e-1, atol=1e-1)
    assert jnp.allclose(h_b, ref_h, rtol=1e-1, atol=1e-1)
    assert jnp.allclose(c_b, ref_c, rtol=1e-1, atol=1e-1)

    print("KERNEL_OK")
</pallas_src>

<mosaic_0001>
module attributes {stable_mosaic.version = 11 : i64} {
  func.func @_lstm_decoder_kernel(%arg0: i32, %arg1: i32, %arg2: memref<2x64x128xf32, #tpu.memory_space<any>>, %arg3: memref<1x128x512xf32, #tpu.memory_space<vmem>>, %arg4: memref<1x128x512xf32, #tpu.memory_space<vmem>>, %arg5: memref<1x1x512xf32, #tpu.memory_space<vmem>>, %arg6: memref<128x128xf32, #tpu.memory_space<vmem>>, %arg7: memref<1x128xf32, #tpu.memory_space<vmem>>, %arg8: memref<1x64x128xf32, #tpu.memory_space<vmem>>, %arg9: memref<1x1x8x128xf32, #tpu.memory_space<vmem>>, %arg10: memref<1x1x8x128xf32, #tpu.memory_space<vmem>>, %arg11: memref<64x128xf32, #tpu.memory_space<vmem>>, %arg12: memref<32x512xf32, #tpu.memory_space<vmem>>, %arg13: memref<1x!tpu.dma_semaphore, #tpu.memory_space<semaphore_mem>>) attributes {dimension_semantics = [#tpu.dimension_semantics<parallel>, #tpu.dimension_semantics<arbitrary>], iteration_bounds = array<i64: 2, 2>, scalar_prefetch = 0 : i64, scratch_operands = 3 : i64, tpu.core_type = #tpu.core_type<tc>, window_params = [{}, {transform_indices = @transform_1, window_bounds = array<i64: 1, 128, 512>}, {transform_indices = @transform_2, window_bounds = array<i64: 1, 128, 512>}, {transform_indices = @transform_3, window_bounds = array<i64: 1, 1, 512>}, {pipeline_mode = #tpu.pipeline_mode<synchronous>, transform_indices = @transform_4, window_bounds = array<i64: 128, 128>}, {pipeline_mode = #tpu.pipeline_mode<synchronous>, transform_indices = @transform_5, window_bounds = array<i64: 1, 128>}, {transform_indices = @transform_6, window_bounds = array<i64: 1, 64, 128>}, {transform_indices = @transform_7, window_bounds = array<i64: 1, 1, 8, 128>}, {transform_indices = @transform_8, window_bounds = array<i64: 1, 1, 8, 128>}]} {
    %c0_i32 = arith.constant 0 : i32
    %0 = arith.cmpi eq, %arg1, %c0_i32 : i32
    %1 = arith.extui %0 : i1 to i32
    %c0_i32_0 = arith.constant 0 : i32
    %2 = arith.cmpi ne, %1, %c0_i32_0 : i32
    scf.if %2 {
      %c0_i32_97 = arith.constant 0 : i32
      %c0_i32_98 = arith.constant 0 : i32
      %c0_i32_99 = arith.constant 0 : i32
      %310 = tpu.memref_slice %arg2[%arg0, %c0_i32_98, %c0_i32_99] : memref<2x64x128xf32, #tpu.memory_space<any>> -> memref<1x64x128xf32, #tpu.memory_space<any>>
      %311 = tpu.memref_squeeze %310 : memref<1x64x128xf32, #tpu.memory_space<any>> -> memref<64x128xf32, #tpu.memory_space<any>>
      %312 = tpu.memref_slice %arg13[%c0_i32_97] : memref<1x!tpu.dma_semaphore, #tpu.memory_space<semaphore_mem>> -> memref<1x!tpu.dma_semaphore, #tpu.memory_space<semaphore_mem>>
      %313 = tpu.memref_squeeze %312 : memref<1x!tpu.dma_semaphore, #tpu.memory_space<semaphore_mem>> -> memref<!tpu.dma_semaphore, #tpu.memory_space<semaphore_mem>>
      tpu.enqueue_dma source(%311 : memref<64x128xf32, #tpu.memory_space<any>>) target(%arg11 : memref<64x128xf32, #tpu.memory_space<vmem>>) target_semaphore(%313 : memref<!tpu.dma_semaphore, #tpu.memory_space<semaphore_mem>>)
      %c0_i32_100 = arith.constant 0 : i32
      %c0_i32_101 = arith.constant 0 : i32
      %c0_i32_102 = arith.constant 0 : i32
      %314 = tpu.memref_slice %arg2[%arg0, %c0_i32_101, %c0_i32_102] : memref<2x64x128xf32, #tpu.memory_space<any>> -> memref<1x64x128xf32, #tpu.memory_space<any>>
      %315 = tpu.memref_squeeze %314 : memref<1x64x128xf32, #tpu.memory_space<any>> -> memref<64x128xf32, #tpu.memory_space<any>>
      %316 = tpu.memref_slice %arg13[%c0_i32_100] : memref<1x!tpu.dma_semaphore, #tpu.memory_space<semaphore_mem>> -> memref<1x!tpu.dma_semaphore, #tpu.memory_space<semaphore_mem>>
      %317 = tpu.memref_squeeze %316 : memref<1x!tpu.dma_semaphore, #tpu.memory_space<semaphore_mem>> -> memref<!tpu.dma_semaphore, #tpu.memory_space<semaphore_mem>>
      tpu.wait_dma2 semaphore(%317 : memref<!tpu.dma_semaphore, #tpu.memory_space<semaphore_mem>>) src(%315 : memref<64x128xf32, #tpu.memory_space<any>>) dst(%arg11 : memref<64x128xf32, #tpu.memory_space<vmem>>)
    } else {
    }
    %c0 = arith.constant 0 : index
    %c0_1 = arith.constant 0 : index
    %c0_2 = arith.constant 0 : index
    %3 = vector.load %arg3[%c0, %c0_1, %c0_2] : memref<1x128x512xf32, #tpu.memory_space<vmem>>, vector<1x128x512xf32>
    %4 = vector.shape_cast %3 : vector<1x128x512xf32> to vector<128x512xf32>
    %c0_3 = arith.constant 0 : index
    %c0_4 = arith.constant 0 : index
    %c0_5 = arith.constant 0 : index
    %5 = vector.load %arg4[%c0_3, %c0_4, %c0_5] : memref<1x128x512xf32, #tpu.memory_space<vmem>>, vector<1x128x512xf32>
    %6 = vector.shape_cast %5 : vector<1x128x512xf32> to vector<128x512xf32>
    %c0_6 = arith.constant 0 : index
    %c0_7 = arith.constant 0 : index
    %c0_8 = arith.constant 0 : index
    %7 = vector.load %arg5[%c0_6, %c0_7, %c0_8] : memref<1x1x512xf32, #tpu.memory_space<vmem>>, vector<1x1x512xf32>
    %8 = vector.shape_cast %7 : vector<1x1x512xf32> to vector<1x512xf32>
    %cst = arith.constant 0.000000e+00 : f32
    %9 = vector.broadcast %cst : f32 to vector<8x128xf32>
    %cst_9 = arith.constant 0.000000e+00 : f32
    %10 = vector.broadcast %cst_9 : f32 to vector<8x128xf32>
    %c0_10 = arith.constant 0 : index
    %c0_11 = arith.constant 0 : index
    %11 = vector.load %arg11[%c0_10, %c0_11] : memref<64x128xf32, #tpu.memory_space<vmem>>, vector<32x128xf32>
    %cst_12 = arith.constant dense<0.000000e+00> : vector<32x512xf32>
    %12 = tpu.matmul %11, %4, %cst_12 {dimension_numbers = #tpu.dot_dimension_numbers<[1], [0], [0], [1], [0, 0, 1, 1], [], []>} : vector<32x128xf32>, vector<128x512xf32>, vector<32x512xf32> -> vector<32x512xf32>
    %13 = vector.broadcast %8 : vector<1x512xf32> to vector<32x512xf32>
    %14 = arith.addf %12, %13 : vector<32x512xf32>
    %c0_13 = arith.constant 0 : index
    %c0_14 = arith.constant 0 : index
    %15 = vector.load %arg12[%c0_13, %c0_14] : memref<32x512xf32, #tpu.memory_space<vmem>>, vector<32x512xf32>
    tpu.vector_store %arg12[%c0_13, %c0_14], %14 {strides = array<i32>} : memref<32x512xf32, #tpu.memory_space<vmem>>, vector<32x512xf32>,
    %c0_i32_15 = arith.constant 0 : i32
    %c8_i32 = arith.constant 8 : i32
    %16 = arith.muli %c0_i32_15, %c8_i32 : i32
    %17 = tpu.assume_multiple %16, 8 : i32
    %18 = arith.index_cast %17 : i32 to index
    %c0_16 = arith.constant 0 : index
    %19 = vector.load %arg12[%18, %c0_16] : memref<32x512xf32, #tpu.memory_space<vmem>>, vector<8x512xf32>
    %cst_17 = arith.constant dense<0.000000e+00> : vector<8x512xf32>
    %20 = tpu.matmul %9, %6, %cst_17 {dimension_numbers = #tpu.dot_dimension_numbers<[1], [0], [0], [1], [0, 0, 1, 1], [], []>} : vector<8x128xf32>, vector<128x512xf32>, vector<8x512xf32> -> vector<8x512xf32>
    %21 = arith.addf %19, %20 : vector<8x512xf32>
    %22 = vector.extract_strided_slice %21 {offsets = [0, 0], sizes = [8, 128], strides = [1, 1]} : vector<8x512xf32> to vector<8x128xf32>
    %23 = arith.negf %22 : vector<8x128xf32>
    %24 = math.exp %23 : vector<8x128xf32>
    %cst_18 = arith.constant 1.000000e+00 : f32
    %25 = vector.broadcast %cst_18 : f32 to vector<8x128xf32>
    %26 = arith.addf %25, %24 : vector<8x128xf32>
    %27 = arith.divf %25, %26 : vector<8x128xf32>
    %28 = vector.extract_strided_slice %21 {offsets = [0, 128], sizes = [8, 128], strides = [1, 1]} : vector<8x512xf32> to vector<8x128xf32>
    %29 = arith.negf %28 : vector<8x128xf32>
    %30 = math.exp %29 : vector<8x128xf32>
    %cst_19 = arith.constant 1.000000e+00 : f32
    %31 = vector.broadcast %cst_19 : f32 to vector<8x128xf32>
    %32 = arith.addf %31, %30 : vector<8x128xf32>
    %33 = arith.divf %31, %32 : vector<8x128xf32>
    %34 = vector.extract_strided_slice %21 {offsets = [0, 256], sizes = [8, 128], strides = [1, 1]} : vector<8x512xf32> to vector<8x128xf32>
    %35 = math.tanh %34 : vector<8x128xf32>
    %36 = vector.extract_strided_slice %21 {offsets = [0, 384], sizes = [8, 128], strides = [1, 1]} : vector<8x512xf32> to vector<8x128xf32>
    %37 = arith.negf %36 : vector<8x128xf32>
    %38 = math.exp %37 : vector<8x128xf32>
    %cst_20 = arith.constant 1.000000e+00 : f32
    %39 = vector.broadcast %cst_20 : f32 to vector<8x128xf32>
    %40 = arith.addf %39, %38 : vector<8x128xf32>
    %41 = arith.divf %39, %40 : vector<8x128xf32>
    %42 = arith.mulf %33, %10 : vector<8x128xf32>
    %43 = arith.mulf %27, %35 : vector<8x128xf32>
    %44 = arith.addf %42, %43 : vector<8x128xf32>
    %45 = math.tanh %44 : vector<8x128xf32>
    %46 = arith.mulf %41, %45 : vector<8x128xf32>
    %c0_i32_21 = arith.constant 0 : i32
    %47 = arith.addi %c0_i32_21, %17 : i32
    %48 = tpu.assume_multiple %47, 8 : i32
    %49 = arith.index_cast %48 : i32 to index
    %c0_22 = arith.constant 0 : index
    %50 = vector.load %arg11[%49, %c0_22] : memref<64x128xf32, #tpu.memory_space<vmem>>, vector<8x128xf32>
    tpu.vector_store %arg11[%49, %c0_22], %46 {strides = array<i32>} : memref<64x128xf32, #tpu.memory_space<vmem>>, vector<8x128xf32>,
    %c1_i32 = arith.constant 1 : i32
    %c8_i32_23 = arith.constant 8 : i32
    %51 = arith.muli %c1_i32, %c8_i32_23 : i32
    %52 = tpu.assume_multiple %51, 8 : i32
    %53 = arith.index_cast %52 : i32 to index
    %c0_24 = arith.constant 0 : index
    %54 = vector.load %arg12[%53, %c0_24] : memref<32x512xf32, #tpu.memory_space<vmem>>, vector<8x512xf32>
    %cst_25 = arith.constant dense<0.000000e+00> : vector<8x512xf32>
    %55 = tpu.matmul %46, %6, %cst_25 {dimension_numbers = #tpu.dot_dimension_numbers<[1], [0], [0], [1], [0, 0, 1, 1], [], []>} : vector<8x128xf32>, vector<128x512xf32>, vector<8x512xf32> -> vector<8x512xf32>
    %56 = arith.addf %54, %55 : vector<8x512xf32>
    %57 = vector.extract_strided_slice %56 {offsets = [0, 0], sizes = [8, 128], strides = [1, 1]} : vector<8x512xf32> to vector<8x128xf32>
    %58 = arith.negf %57 : vector<8x128xf32>
    %59 = math.exp %58 : vector<8x128xf32>
    %cst_26 = arith.constant 1.000000e+00 : f32
    %60 = vector.broadcast %cst_26 : f32 to vector<8x128xf32>
    %61 = arith.addf %60, %59 : vector<8x128xf32>
    %62 = arith.divf %60, %61 : vector<8x128xf32>
    %63 = vector.extract_strided_slice %56 {offsets = [0, 128], sizes = [8, 128], strides = [1, 1]} : vector<8x512xf32> to vector<8x128xf32>
    %64 = arith.negf %63 : vector<8x128xf32>
    %65 = math.exp %64 : vector<8x128xf32>
    %cst_27 = arith.constant 1.000000e+00 : f32
    %66 = vector.broadcast %cst_27 : f32 to vector<8x128xf32>
    %67 = arith.addf %66, %65 : vector<8x128xf32>
    %68 = arith.divf %66, %67 : vector<8x128xf32>
    %69 = vector.extract_strided_slice %56 {offsets = [0, 256], sizes = [8, 128], strides = [1, 1]} : vector<8x512xf32> to vector<8x128xf32>
    %70 = math.tanh %69 : vector<8x128xf32>
    %71 = vector.extract_strided_slice %56 {offsets = [0, 384], sizes = [8, 128], strides = [1, 1]} : vector<8x512xf32> to vector<8x128xf32>
    %72 = arith.negf %71 : vector<8x128xf32>
    %73 = math.exp %72 : vector<8x128xf32>
    %cst_28 = arith.constant 1.000000e+00 : f32
    %74 = vector.broadcast %cst_28 : f32 to vector<8x128xf32>
    %75 = arith.addf %74, %73 : vector<8x128xf32>
    %76 = arith.divf %74, %75 : vector<8x128xf32>
    %77 = arith.mulf %68, %44 : vector<8x128xf32>
    %78 = arith.mulf %62, %70 : vector<8x128xf32>
    %79 = arith.addf %77, %78 : vector<8x128xf32>
    %80 = math.tanh %79 : vector<8x128xf32>
    %81 = arith.mulf %76, %80 : vector<8x128xf32>
    %c0_i32_29 = arith.constant 0 : i32
    %82 = arith.addi %c0_i32_29, %52 : i32
    %83 = tpu.assume_multiple %82, 8 : i32
    %84 = arith.index_cast %83 : i32 to index
    %c0_30 = arith.constant 0 : index
    %85 = vector.load %arg11[%84, %c0_30] : memref<64x128xf32, #tpu.memory_space<vmem>>, vector<8x128xf32>
    tpu.vector_store %arg11[%84, %c0_30], %81 {strides = array<i32>} : memref<64x128xf32, #tpu.memory_space<vmem>>, vector<8x128xf32>,
    %c2_i32 = arith.constant 2 : i32
    %c8_i32_31 = arith.constant 8 : i32
    %86 = arith.muli %c2_i32, %c8_i32_31 : i32
    %87 = tpu.assume_multiple %86, 8 : i32
    %88 = arith.index_cast %87 : i32 to index
    %c0_32 = arith.constant 0 : index
    %89 = vector.load %arg12[%88, %c0_32] : memref<32x512xf32, #tpu.memory_space<vmem>>, vector<8x512xf32>
    %cst_33 = arith.constant dense<0.000000e+00> : vector<8x512xf32>
    %90 = tpu.matmul %81, %6, %cst_33 {dimension_numbers = #tpu.dot_dimension_numbers<[1], [0], [0], [1], [0, 0, 1, 1], [], []>} : vector<8x128xf32>, vector<128x512xf32>, vector<8x512xf32> -> vector<8x512xf32>
    %91 = arith.addf %89, %90 : vector<8x512xf32>
    %92 = vector.extract_strided_slice %91 {offsets = [0, 0], sizes = [8, 128], strides = [1, 1]} : vector<8x512xf32> to vector<8x128xf32>
    %93 = arith.negf %92 : vector<8x128xf32>
    %94 = math.exp %93 : vector<8x128xf32>
    %cst_34 = arith.constant 1.000000e+00 : f32
    %95 = vector.broadcast %cst_34 : f32 to vector<8x128xf32>
    %96 = arith.addf %95, %94 : vector<8x128xf32>
    %97 = arith.divf %95, %96 : vector<8x128xf32>
    %98 = vector.extract_strided_slice %91 {offsets = [0, 128], sizes = [8, 128], strides = [1, 1]} : vector<8x512xf32> to vector<8x128xf32>
    %99 = arith.negf %98 : vector<8x128xf32>
    %100 = math.exp %99 : vector<8x128xf32>
    %cst_35 = arith.constant 1.000000e+00 : f32
    %101 = vector.broadcast %cst_35 : f32 to vector<8x128xf32>
    %102 = arith.addf %101, %100 : vector<8x128xf32>
    %103 = arith.divf %101, %102 : vector<8x128xf32>
    %104 = vector.extract_strided_slice %91 {offsets = [0, 256], sizes = [8, 128], strides = [1, 1]} : vector<8x512xf32> to vector<8x128xf32>
    %105 = math.tanh %104 : vector<8x128xf32>
    %106 = vector.extract_strided_slice %91 {offsets = [0, 384], sizes = [8, 128], strides = [1, 1]} : vector<8x512xf32> to vector<8x128xf32>
    %107 = arith.negf %106 : vector<8x128xf32>
    %108 = math.exp %107 : vector<8x128xf32>
    %cst_36 = arith.constant 1.000000e+00 : f32
    %109 = vector.broadcast %cst_36 : f32 to vector<8x128xf32>
    %110 = arith.addf %109, %108 : vector<8x128xf32>
    %111 = arith.divf %109, %110 : vector<8x128xf32>
    %112 = arith.mulf %103, %79 : vector<8x128xf32>
    %113 = arith.mulf %97, %105 : vector<8x128xf32>
    %114 = arith.addf %112, %113 : vector<8x128xf32>
    %115 = math.tanh %114 : vector<8x128xf32>
    %116 = arith.mulf %111, %115 : vector<8x128xf32>
    %c0_i32_37 = arith.constant 0 : i32
    %117 = arith.addi %c0_i32_37, %87 : i32
    %118 = tpu.assume_multiple %117, 8 : i32
    %119 = arith.index_cast %118 : i32 to index
    %c0_38 = arith.constant 0 : index
    %120 = vector.load %arg11[%119, %c0_38] : memref<64x128xf32, #tpu.memory_space<vmem>>, vector<8x128xf32>
    tpu.vector_store %arg11[%119, %c0_38], %116 {strides = array<i32>} : memref<64x128xf32, #tpu.memory_space<vmem>>, vector<8x128xf32>,
    %c3_i32 = arith.constant 3 : i32
    %c8_i32_39 = arith.constant 8 : i32
    %121 = arith.muli %c3_i32, %c8_i32_39 : i32
    %122 = tpu.assume_multiple %121, 8 : i32
    %123 = arith.index_cast %122 : i32 to index
    %c0_40 = arith.constant 0 : index
    %124 = vector.load %arg12[%123, %c0_40] : memref<32x512xf32, #tpu.memory_space<vmem>>, vector<8x512xf32>
    %cst_41 = arith.constant dense<0.000000e+00> : vector<8x512xf32>
    %125 = tpu.matmul %116, %6, %cst_41 {dimension_numbers = #tpu.dot_dimension_numbers<[1], [0], [0], [1], [0, 0, 1, 1], [], []>} : vector<8x128xf32>, vector<128x512xf32>, vector<8x512xf32> -> vector<8x512xf32>
    %126 = arith.addf %124, %125 : vector<8x512xf32>
    %127 = vector.extract_strided_slice %126 {offsets = [0, 0], sizes = [8, 128], strides = [1, 1]} : vector<8x512xf32> to vector<8x128xf32>
    %128 = arith.negf %127 : vector<8x128xf32>
    %129 = math.exp %128 : vector<8x128xf32>
    %cst_42 = arith.constant 1.000000e+00 : f32
    %130 = vector.broadcast %cst_42 : f32 to vector<8x128xf32>
    %131 = arith.addf %130, %129 : vector<8x128xf32>
    %132 = arith.divf %130, %131 : vector<8x128xf32>
    %133 = vector.extract_strided_slice %126 {offsets = [0, 128], sizes = [8, 128], strides = [1, 1]} : vector<8x512xf32> to vector<8x128xf32>
    %134 = arith.negf %133 : vector<8x128xf32>
    %135 = math.exp %134 : vector<8x128xf32>
    %cst_43 = arith.constant 1.000000e+00 : f32
    %136 = vector.broadcast %cst_43 : f32 to vector<8x128xf32>
    %137 = arith.addf %136, %135 : vector<8x128xf32>
    %138 = arith.divf %136, %137 : vector<8x128xf32>
    %139 = vector.extract_strided_slice %126 {offsets = [0, 256], sizes = [8, 128], strides = [1, 1]} : vector<8x512xf32> to vector<8x128xf32>
    %140 = math.tanh %139 : vector<8x128xf32>
    %141 = vector.extract_strided_slice %126 {offsets = [0, 384], sizes = [8, 128], strides = [1, 1]} : vector<8x512xf32> to vector<8x128xf32>
    %142 = arith.negf %141 : vector<8x128xf32>
    %143 = math.exp %142 : vector<8x128xf32>
    %cst_44 = arith.constant 1.000000e+00 : f32
    %144 = vector.broadcast %cst_44 : f32 to vector<8x128xf32>
    %145 = arith.addf %144, %143 : vector<8x128xf32>
    %146 = arith.divf %144, %145 : vector<8x128xf32>
    %147 = arith.mulf %138, %114 : vector<8x128xf32>
    %148 = arith.mulf %132, %140 : vector<8x128xf32>
    %149 = arith.addf %147, %148 : vector<8x128xf32>
    %150 = math.tanh %149 : vector<8x128xf32>
    %151 = arith.mulf %146, %150 : vector<8x128xf32>
    %c0_i32_45 = arith.constant 0 : i32
    %152 = arith.addi %c0_i32_45, %122 : i32
    %153 = tpu.assume_multiple %152, 8 : i32
    %154 = arith.index_cast %153 : i32 to index
    %c0_46 = arith.constant 0 : index
    %155 = vector.load %arg11[%154, %c0_46] : memref<64x128xf32, #tpu.memory_space<vmem>>, vector<8x128xf32>
    tpu.vector_store %arg11[%154, %c0_46], %151 {strides = array<i32>} : memref<64x128xf32, #tpu.memory_space<vmem>>, vector<8x128xf32>,
    %c4_i32 = arith.constant 4 : i32
    %c32 = arith.constant 32 : index
    %c0_47 = arith.constant 0 : index
    %156 = vector.load %arg11[%c32, %c0_47] : memref<64x128xf32, #tpu.memory_space<vmem>>, vector<32x128xf32>
    %cst_48 = arith.constant dense<0.000000e+00> : vector<32x512xf32>
    %157 = tpu.matmul %156, %4, %cst_48 {dimension_numbers = #tpu.dot_dimension_numbers<[1], [0], [0], [1], [0, 0, 1, 1], [], []>} : vector<32x128xf32>, vector<128x512xf32>, vector<32x512xf32> -> vector<32x512xf32>
    %158 = vector.broadcast %8 : vector<1x512xf32> to vector<32x512xf32>
    %159 = arith.addf %157, %158 : vector<32x512xf32>
    %c0_49 = arith.constant 0 : index
    %c0_50 = arith.constant 0 : index
    %160 = vector.load %arg12[%c0_49, %c0_50] : memref<32x512xf32, #tpu.memory_space<vmem>>, vector<32x512xf32>
    tpu.vector_store %arg12[%c0_49, %c0_50], %159 {strides = array<i32>} : memref<32x512xf32, #tpu.memory_space<vmem>>, vector<32x512xf32>,
    %c0_i32_51 = arith.constant 0 : i32
    %c8_i32_52 = arith.constant 8 : i32
    %161 = arith.muli %c0_i32_51, %c8_i32_52 : i32
    %162 = tpu.assume_multiple %161, 8 : i32
    %163 = arith.index_cast %162 : i32 to index
    %c0_53 = arith.constant 0 : index
    %164 = vector.load %arg12[%163, %c0_53] : memref<32x512xf32, #tpu.memory_space<vmem>>, vector<8x512xf32>
    %cst_54 = arith.constant dense<0.000000e+00> : vector<8x512xf32>
    %165 = tpu.matmul %151, %6, %cst_54 {dimension_numbers = #tpu.dot_dimension_numbers<[1], [0], [0], [1], [0, 0, 1, 1], [], []>} : vector<8x128xf32>, vector<128x512xf32>, vector<8x512xf32> -> vector<8x512xf32>
    %166 = arith.addf %164, %165 : vector<8x512xf32>
    %167 = vector.extract_strided_slice %166 {offsets = [0, 0], sizes = [8, 128], strides = [1, 1]} : vector<8x512xf32> to vector<8x128xf32>
    %168 = arith.negf %167 : vector<8x128xf32>
    %169 = math.exp %168 : vector<8x128xf32>
    %cst_55 = arith.constant 1.000000e+00 : f32
    %170 = vector.broadcast %cst_55 : f32 to vector<8x128xf32>
    %171 = arith.addf %170, %169 : vector<8x128xf32>
    %172 = arith.divf %170, %171 : vector<8x128xf32>
    %173 = vector.extract_strided_slice %166 {offsets = [0, 128], sizes = [8, 128], strides = [1, 1]} : vector<8x512xf32> to vector<8x128xf32>
    %174 = arith.negf %173 : vector<8x128xf32>
    %175 = math.exp %174 : vector<8x128xf32>
    %cst_56 = arith.constant 1.000000e+00 : f32
    %176 = vector.broadcast %cst_56 : f32 to vector<8x128xf32>
    %177 = arith.addf %176, %175 : vector<8x128xf32>
    %178 = arith.divf %176, %177 : vector<8x128xf32>
    %179 = vector.extract_strided_slice %166 {offsets = [0, 256], sizes = [8, 128], strides = [1, 1]} : vector<8x512xf32> to vector<8x128xf32>
    %180 = math.tanh %179 : vector<8x128xf32>
    %181 = vector.extract_strided_slice %166 {offsets = [0, 384], sizes = [8, 128], strides = [1, 1]} : vector<8x512xf32> to vector<8x128xf32>
    %182 = arith.negf %181 : vector<8x128xf32>
    %183 = math.exp %182 : vector<8x128xf32>
    %cst_57 = arith.constant 1.000000e+00 : f32
    %184 = vector.broadcast %cst_57 : f32 to vector<8x128xf32>
    %185 = arith.addf %184, %183 : vector<8x128xf32>
    %186 = arith.divf %184, %185 : vector<8x128xf32>
    %187 = arith.mulf %178, %149 : vector<8x128xf32>
    %188 = arith.mulf %172, %180 : vector<8x128xf32>
    %189 = arith.addf %187, %188 : vector<8x128xf32>
    %190 = math.tanh %189 : vector<8x128xf32>
    %191 = arith.mulf %186, %190 : vector<8x128xf32>
    %c32_i32 = arith.constant 32 : i32
    %192 = arith.addi %c32_i32, %162 : i32
    %193 = tpu.assume_multiple %192, 8 : i32
    %194 = arith.index_cast %193 : i32 to index
    %c0_58 = arith.constant 0 : index
    %195 = vector.load %arg11[%194, %c0_58] : memref<64x128xf32, #tpu.memory_space<vmem>>, vector<8x128xf32>
    tpu.vector_store %arg11[%194, %c0_58], %191 {strides = array<i32>} : memref<64x128xf32, #tpu.memory_space<vmem>>, vector<8x128xf32>,
    %c1_i32_59 = arith.constant 1 : i32
    %c8_i32_60 = arith.constant 8 : i32
    %196 = arith.muli %c1_i32_59, %c8_i32_60 : i32
    %197 = tpu.assume_multiple %196, 8 : i32
    %198 = arith.index_cast %197 : i32 to index
    %c0_61 = arith.constant 0 : index
    %199 = vector.load %arg12[%198, %c0_61] : memref<32x512xf32, #tpu.memory_space<vmem>>, vector<8x512xf32>
    %cst_62 = arith.constant dense<0.000000e+00> : vector<8x512xf32>
    %200 = tpu.matmul %191, %6, %cst_62 {dimension_numbers = #tpu.dot_dimension_numbers<[1], [0], [0], [1], [0, 0, 1, 1], [], []>} : vector<8x128xf32>, vector<128x512xf32>, vector<8x512xf32> -> vector<8x512xf32>
    %201 = arith.addf %199, %200 : vector<8x512xf32>
    %202 = vector.extract_strided_slice %201 {offsets = [0, 0], sizes = [8, 128], strides = [1, 1]} : vector<8x512xf32> to vector<8x128xf32>
    %203 = arith.negf %202 : vector<8x128xf32>
    %204 = math.exp %203 : vector<8x128xf32>
    %cst_63 = arith.constant 1.000000e+00 : f32
    %205 = vector.broadcast %cst_63 : f32 to vector<8x128xf32>
    %206 = arith.addf %205, %204 : vector<8x128xf32>
    %207 = arith.divf %205, %206 : vector<8x128xf32>
    %208 = vector.extract_strided_slice %201 {offsets = [0, 128], sizes = [8, 128], strides = [1, 1]} : vector<8x512xf32> to vector<8x128xf32>
    %209 = arith.negf %208 : vector<8x128xf32>
    %210 = math.exp %209 : vector<8x128xf32>
    %cst_64 = arith.constant 1.000000e+00 : f32
    %211 = vector.broadcast %cst_64 : f32 to vector<8x128xf32>
    %212 = arith.addf %211, %210 : vector<8x128xf32>
    %213 = arith.divf %211, %212 : vector<8x128xf32>
    %214 = vector.extract_strided_slice %201 {offsets = [0, 256], sizes = [8, 128], strides = [1, 1]} : vector<8x512xf32> to vector<8x128xf32>
    %215 = math.tanh %214 : vector<8x128xf32>
    %216 = vector.extract_strided_slice %201 {offsets = [0, 384], sizes = [8, 128], strides = [1, 1]} : vector<8x512xf32> to vector<8x128xf32>
    %217 = arith.negf %216 : vector<8x128xf32>
    %218 = math.exp %217 : vector<8x128xf32>
    %cst_65 = arith.constant 1.000000e+00 : f32
    %219 = vector.broadcast %cst_65 : f32 to vector<8x128xf32>
    %220 = arith.addf %219, %218 : vector<8x128xf32>
    %221 = arith.divf %219, %220 : vector<8x128xf32>
    %222 = arith.mulf %213, %189 : vector<8x128xf32>
    %223 = arith.mulf %207, %215 : vector<8x128xf32>
    %224 = arith.addf %222, %223 : vector<8x128xf32>
    %225 = math.tanh %224 : vector<8x128xf32>
    %226 = arith.mulf %221, %225 : vector<8x128xf32>
    %c32_i32_66 = arith.constant 32 : i32
    %227 = arith.addi %c32_i32_66, %197 : i32
    %228 = tpu.assume_multiple %227, 8 : i32
    %229 = arith.index_cast %228 : i32 to index
    %c0_67 = arith.constant 0 : index
    %230 = vector.load %arg11[%229, %c0_67] : memref<64x128xf32, #tpu.memory_space<vmem>>, vector<8x128xf32>
    tpu.vector_store %arg11[%229, %c0_67], %226 {strides = array<i32>} : memref<64x128xf32, #tpu.memory_space<vmem>>, vector<8x128xf32>,
    %c2_i32_68 = arith.constant 2 : i32
    %c8_i32_69 = arith.constant 8 : i32
    %231 = arith.muli %c2_i32_68, %c8_i32_69 : i32
    %232 = tpu.assume_multiple %231, 8 : i32
    %233 = arith.index_cast %232 : i32 to index
    %c0_70 = arith.constant 0 : index
    %234 = vector.load %arg12[%233, %c0_70] : memref<32x512xf32, #tpu.memory_space<vmem>>, vector<8x512xf32>
    %cst_71 = arith.constant dense<0.000000e+00> : vector<8x512xf32>
    %235 = tpu.matmul %226, %6, %cst_71 {dimension_numbers = #tpu.dot_dimension_numbers<[1], [0], [0], [1], [0, 0, 1, 1], [], []>} : vector<8x128xf32>, vector<128x512xf32>, vector<8x512xf32> -> vector<8x512xf32>
    %236 = arith.addf %234, %235 : vector<8x512xf32>
    %237 = vector.extract_strided_slice %236 {offsets = [0, 0], sizes = [8, 128], strides = [1, 1]} : vector<8x512xf32> to vector<8x128xf32>
    %238 = arith.negf %237 : vector<8x128xf32>
    %239 = math.exp %238 : vector<8x128xf32>
    %cst_72 = arith.constant 1.000000e+00 : f32
    %240 = vector.broadcast %cst_72 : f32 to vector<8x128xf32>
    %241 = arith.addf %240, %239 : vector<8x128xf32>
    %242 = arith.divf %240, %241 : vector<8x128xf32>
    %243 = vector.extract_strided_slice %236 {offsets = [0, 128], sizes = [8, 128], strides = [1, 1]} : vector<8x512xf32> to vector<8x128xf32>
    %244 = arith.negf %243 : vector<8x128xf32>
    %245 = math.exp %244 : vector<8x128xf32>
    %cst_73 = arith.constant 1.000000e+00 : f32
    %246 = vector.broadcast %cst_73 : f32 to vector<8x128xf32>
    %247 = arith.addf %246, %245 : vector<8x128xf32>
    %248 = arith.divf %246, %247 : vector<8x128xf32>
    %249 = vector.extract_strided_slice %236 {offsets = [0, 256], sizes = [8, 128], strides = [1, 1]} : vector<8x512xf32> to vector<8x128xf32>
    %250 = math.tanh %249 : vector<8x128xf32>
    %251 = vector.extract_strided_slice %236 {offsets = [0, 384], sizes = [8, 128], strides = [1, 1]} : vector<8x512xf32> to vector<8x128xf32>
    %252 = arith.negf %251 : vector<8x128xf32>
    %253 = math.exp %252 : vector<8x128xf32>
    %cst_74 = arith.constant 1.000000e+00 : f32
    %254 = vector.broadcast %cst_74 : f32 to vector<8x128xf32>
    %255 = arith.addf %254, %253 : vector<8x128xf32>
    %256 = arith.divf %254, %255 : vector<8x128xf32>
    %257 = arith.mulf %248, %224 : vector<8x128xf32>
    %258 = arith.mulf %242, %250 : vector<8x128xf32>
    %259 = arith.addf %257, %258 : vector<8x128xf32>
    %260 = math.tanh %259 : vector<8x128xf32>
    %261 = arith.mulf %256, %260 : vector<8x128xf32>
    %c32_i32_75 = arith.constant 32 : i32
    %262 = arith.addi %c32_i32_75, %232 : i32
    %263 = tpu.assume_multiple %262, 8 : i32
    %264 = arith.index_cast %263 : i32 to index
    %c0_76 = arith.constant 0 : index
    %265 = vector.load %arg11[%264, %c0_76] : memref<64x128xf32, #tpu.memory_space<vmem>>, vector<8x128xf32>
    tpu.vector_store %arg11[%264, %c0_76], %261 {strides = array<i32>} : memref<64x128xf32, #tpu.memory_space<vmem>>, vector<8x128xf32>,
    %c3_i32_77 = arith.constant 3 : i32
    %c8_i32_78 = arith.constant 8 : i32
    %266 = arith.muli %c3_i32_77, %c8_i32_78 : i32
    %267 = tpu.assume_multiple %266, 8 : i32
    %268 = arith.index_cast %267 : i32 to index
    %c0_79 = arith.constant 0 : index
    %269 = vector.load %arg12[%268, %c0_79] : memref<32x512xf32, #tpu.memory_space<vmem>>, vector<8x512xf32>
    %cst_80 = arith.constant dense<0.000000e+00> : vector<8x512xf32>
    %270 = tpu.matmul %261, %6, %cst_80 {dimension_numbers = #tpu.dot_dimension_numbers<[1], [0], [0], [1], [0, 0, 1, 1], [], []>} : vector<8x128xf32>, vector<128x512xf32>, vector<8x512xf32> -> vector<8x512xf32>
    %271 = arith.addf %269, %270 : vector<8x512xf32>
    %272 = vector.extract_strided_slice %271 {offsets = [0, 0], sizes = [8, 128], strides = [1, 1]} : vector<8x512xf32> to vector<8x128xf32>
    %273 = arith.negf %272 : vector<8x128xf32>
    %274 = math.exp %273 : vector<8x128xf32>
    %cst_81 = arith.constant 1.000000e+00 : f32
    %275 = vector.broadcast %cst_81 : f32 to vector<8x128xf32>
    %276 = arith.addf %275, %274 : vector<8x128xf32>
    %277 = arith.divf %275, %276 : vector<8x128xf32>
    %278 = vector.extract_strided_slice %271 {offsets = [0, 128], sizes = [8, 128], strides = [1, 1]} : vector<8x512xf32> to vector<8x128xf32>
    %279 = arith.negf %278 : vector<8x128xf32>
    %280 = math.exp %279 : vector<8x128xf32>
    %cst_82 = arith.constant 1.000000e+00 : f32
    %281 = vector.broadcast %cst_82 : f32 to vector<8x128xf32>
    %282 = arith.addf %281, %280 : vector<8x128xf32>
    %283 = arith.divf %281, %282 : vector<8x128xf32>
    %284 = vector.extract_strided_slice %271 {offsets = [0, 256], sizes = [8, 128], strides = [1, 1]} : vector<8x512xf32> to vector<8x128xf32>
    %285 = math.tanh %284 : vector<8x128xf32>
    %286 = vector.extract_strided_slice %271 {offsets = [0, 384], sizes = [8, 128], strides = [1, 1]} : vector<8x512xf32> to vector<8x128xf32>
    %287 = arith.negf %286 : vector<8x128xf32>
    %288 = math.exp %287 : vector<8x128xf32>
    %cst_83 = arith.constant 1.000000e+00 : f32
    %289 = vector.broadcast %cst_83 : f32 to vector<8x128xf32>
    %290 = arith.addf %289, %288 : vector<8x128xf32>
    %291 = arith.divf %289, %290 : vector<8x128xf32>
    %292 = arith.mulf %283, %259 : vector<8x128xf32>
    %293 = arith.mulf %277, %285 : vector<8x128xf32>
    %294 = arith.addf %292, %293 : vector<8x128xf32>
    %295 = math.tanh %294 : vector<8x128xf32>
    %296 = arith.mulf %291, %295 : vector<8x128xf32>
    %c32_i32_84 = arith.constant 32 : i32
    %297 = arith.addi %c32_i32_84, %267 : i32
    %298 = tpu.assume_multiple %297, 8 : i32
    %299 = arith.index_cast %298 : i32 to index
    %c0_85 = arith.constant 0 : index
    %300 = vector.load %arg11[%299, %c0_85] : memref<64x128xf32, #tpu.memory_space<vmem>>, vector<8x128xf32>
    tpu.vector_store %arg11[%299, %c0_85], %296 {strides = array<i32>} : memref<64x128xf32, #tpu.memory_space<vmem>>, vector<8x128xf32>,
    %c4_i32_86 = arith.constant 4 : i32
    %c0_87 = arith.constant 0 : index
    %c0_88 = arith.constant 0 : index
    %c0_89 = arith.constant 0 : index
    %c0_90 = arith.constant 0 : index
    %301 = vector.load %arg9[%c0_87, %c0_88, %c0_89, %c0_90] : memref<1x1x8x128xf32, #tpu.memory_space<vmem>>, vector<1x1x8x128xf32>
    %302 = vector.shape_cast %301 : vector<1x1x8x128xf32> to vector<8x128xf32>
    %303 = vector.shape_cast %296 : vector<8x128xf32> to vector<1x1x8x128xf32>
    tpu.vector_store %arg9[%c0_87, %c0_88, %c0_89, %c0_90], %303 {strides = array<i32>} : memref<1x1x8x128xf32, #tpu.memory_space<vmem>>, vector<1x1x8x128xf32>,
    %c0_91 = arith.constant 0 : index
    %c0_92 = arith.constant 0 : index
    %c0_93 = arith.constant 0 : index
    %c0_94 = arith.constant 0 : index
    %304 = vector.load %arg10[%c0_91, %c0_92, %c0_93, %c0_94] : memref<1x1x8x128xf32, #tpu.memory_space<vmem>>, vector<1x1x8x128xf32>
    %305 = vector.shape_cast %304 : vector<1x1x8x128xf32> to vector<8x128xf32>
    %306 = vector.shape_cast %294 : vector<8x128xf32> to vector<1x1x8x128xf32>
    tpu.vector_store %arg10[%c0_91, %c0_92, %c0_93, %c0_94], %306 {strides = array<i32>} : memref<1x1x8x128xf32, #tpu.memory_space<vmem>>, vector<1x1x8x128xf32>,
    %c1_i32_95 = arith.constant 1 : i32
    %307 = arith.cmpi eq, %arg1, %c1_i32_95 : i32
    %308 = arith.extui %307 : i1 to i32
    %c0_i32_96 = arith.constant 0 : i32
    %309 = arith.cmpi ne, %308, %c0_i32_96 : i32
    scf.if %309 {
      %c0_97 = arith.constant 0 : index
      %c0_98 = arith.constant 0 : index
      %310 = vector.load %arg11[%c0_97, %c0_98] : memref<64x128xf32, #tpu.memory_space<vmem>>, vector<64x128xf32>
      %c0_99 = arith.constant 0 : index
      %c0_100 = arith.constant 0 : index
      %311 = vector.load %arg6[%c0_99, %c0_100] : memref<128x128xf32, #tpu.memory_space<vmem>>, vector<128x128xf32>
      %cst_101 = arith.constant dense<0.000000e+00> : vector<64x128xf32>
      %312 = tpu.matmul %310, %311, %cst_101 {dimension_numbers = #tpu.dot_dimension_numbers<[1], [0], [0], [1], [0, 0, 1, 1], [], []>} : vector<64x128xf32>, vector<128x128xf32>, vector<64x128xf32> -> vector<64x128xf32>
      %c0_102 = arith.constant 0 : index
      %c0_103 = arith.constant 0 : index
      %313 = vector.load %arg7[%c0_102, %c0_103] : memref<1x128xf32, #tpu.memory_space<vmem>>, vector<1x128xf32>
      %314 = vector.broadcast %313 : vector<1x128xf32> to vector<64x128xf32>
      %315 = arith.addf %312, %314 : vector<64x128xf32>
      %c0_104 = arith.constant 0 : index
      %c0_105 = arith.constant 0 : index
      %c0_106 = arith.constant 0 : index
      %316 = vector.load %arg8[%c0_104, %c0_105, %c0_106] : memref<1x64x128xf32, #tpu.memory_space<vmem>>, vector<1x64x128xf32>
      %317 = vector.shape_cast %316 : vector<1x64x128xf32> to vector<64x128xf32>
      %318 = vector.shape_cast %315 : vector<64x128xf32> to vector<1x64x128xf32>
      tpu.vector_store %arg8[%c0_104, %c0_105, %c0_106], %318 {strides = array<i32>} : memref<1x64x128xf32, #tpu.memory_space<vmem>>, vector<1x64x128xf32>,
    } else {
    }
    return
  }
  func.func @transform_1(%arg0: i32, %arg1: i32) -> (i32, i32, i32) {
    %c0_i32 = arith.constant 0 : i32
    %c0_i32_0 = arith.constant 0 : i32
    %c0_i32_1 = arith.constant 0 : i32
    return %arg1, %c0_i32, %c0_i32_0 : i32, i32, i32
  }
  func.func @transform_2(%arg0: i32, %arg1: i32) -> (i32, i32, i32) {
    %c0_i32 = arith.constant 0 : i32
    %c0_i32_0 = arith.constant 0 : i32
    %c0_i32_1 = arith.constant 0 : i32
    return %arg1, %c0_i32, %c0_i32_0 : i32, i32, i32
  }
  func.func @transform_3(%arg0: i32, %arg1: i32) -> (i32, i32, i32) {
    %c0_i32 = arith.constant 0 : i32
    %c0_i32_0 = arith.constant 0 : i32
    %c0_i32_1 = arith.constant 0 : i32
    return %arg1, %c0_i32, %c0_i32_0 : i32, i32, i32
  }
  func.func @transform_4(%arg0: i32, %arg1: i32) -> (i32, i32) {
    %c0_i32 = arith.constant 0 : i32
    %c0_i32_0 = arith.constant 0 : i32
    %c0_i32_1 = arith.constant 0 : i32
    return %c0_i32, %c0_i32_0 : i32, i32
  }
  func.func @transform_5(%arg0: i32, %arg1: i32) -> (i32, i32) {
    %c0_i32 = arith.constant 0 : i32
    %c0_i32_0 = arith.constant 0 : i32
    %c0_i32_1 = arith.constant 0 : i32
    return %c0_i32, %c0_i32_0 : i32, i32
  }
  func.func @transform_6(%arg0: i32, %arg1: i32) -> (i32, i32, i32) {
    %c0_i32 = arith.constant 0 : i32
    %c0_i32_0 = arith.constant 0 : i32
    %c0_i32_1 = arith.constant 0 : i32
    return %arg0, %c0_i32, %c0_i32_0 : i32, i32, i32
  }
  func.func @transform_7(%arg0: i32, %arg1: i32) -> (i32, i32, i32, i32) {
    %c0_i32 = arith.constant 0 : i32
    %c0_i32_0 = arith.constant 0 : i32
    %c0_i32_1 = arith.constant 0 : i32
    return %arg1, %arg0, %c0_i32, %c0_i32_0 : i32, i32, i32, i32
  }
  func.func @transform_8(%arg0: i32, %arg1: i32) -> (i32, i32, i32, i32) {
    %c0_i32 = arith.constant 0 : i32
    %c0_i32_0 = arith.constant 0 : i32
    %c0_i32_1 = arith.constant 0 : i32
    return %arg1, %arg0, %c0_i32, %c0_i32_0 : i32, i32, i32, i32
  }
}

</mosaic_0001>

<llo_original>
// kernel: squeeze.8
$region0: #{squeeze.8}
  %s0 = inlined_call_operand.vmem [shape: f32[1,128,32], index: 0, kind: input, shape index: {}]
  %s1 = inlined_call_operand.vmem [shape: f32[4,32,32], index: 1, kind: output, shape index: {}]
  $region1: #{squeeze.8} parent=0
    #allocation0 [shape = 'u8[131072]{0}', space=vmem, size = 0x20000, scoped, tag = 'scoped mem for output reshape']
    %v2 = vld [vmem:[%s0] sm:$0xff]
    %vm3 = vcmask 261120
    %4 = vst.msk [vmem:[#allocation0] ss:$8 sm:$0xf] %vm3, %v2
    %5 = vst.msk [vmem:[#allocation0] ss:$8 sm:$0xf0] %vm3, %v2
    %s6 = scalar_lea.vmem %s0, 8
    %v7 = vld [vmem:[%s6] sm:$0xff]
    %vm8 = vcmask 261120
    %s9 = scalar_lea.vmem [#allocation0], 64
    %10 = vst.msk [vmem:[%s9] ss:$8 sm:$0xf] %vm8, %v7
    %s11 = scalar_lea.vmem [#allocation0], 64
    %12 = vst.msk [vmem:[%s11] ss:$8 sm:$0xf0] %vm8, %v7
    %s13 = scalar_lea.vmem %s0, 16
    %v14 = vld [vmem:[%s13] sm:$0xff]
    %vm15 = vcmask 261120
    %s16 = scalar_lea.vmem [#allocation0], 128
    %17 = vst.msk [vmem:[%s16] ss:$8 sm:$0xf] %vm15, %v14
    %s18 = scalar_lea.vmem [#allocation0], 128
    %19 = vst.msk [vmem:[%s18] ss:$8 sm:$0xf0] %vm15, %v14
    %s20 = scalar_lea.vmem %s0, 24
    %v21 = vld [vmem:[%s20] sm:$0xff]
    %vm22 = vcmask 261120
    %s23 = scalar_lea.vmem [#allocation0], 192
    %24 = vst.msk [vmem:[%s23] ss:$8 sm:$0xf] %vm22, %v21
    %s25 = scalar_lea.vmem [#allocation0], 192
    %26 = vst.msk [vmem:[%s25] ss:$8 sm:$0xf0] %vm22, %v21
    %v27 = vld [vmem:[%s0] sm:$0xff]
    %28 = vrot.lane.b32.xlu0 %v27, 96
    %v29 = vpop.permute.xlu0 %28
    %vm30 = vcmask 261120
    %s31 = scalar_lea.vmem [#allocation0], 1
    %32 = vst.msk [vmem:[%s31] ss:$8 sm:$0xf] %vm30, %v29
    %s33 = scalar_lea.vmem [#allocation0], 1
    %34 = vst.msk [vmem:[%s33] ss:$8 sm:$0xf0] %vm30, %v29
    %s35 = scalar_lea.vmem %s0, 8
    %v36 = vld [vmem:[%s35] sm:$0xff]
    %37 = vrot.lane.b32.xlu0 %v36, 96
    %v38 = vpop.permute.xlu0 %37
    %vm39 = vcmask 261120
    %s40 = scalar_lea.vmem [#allocation0], 65
    %41 = vst.msk [vmem:[%s40] ss:$8 sm:$0xf] %vm39, %v38
    %s42 = scalar_lea.vmem [#allocation0], 65
    %43 = vst.msk [vmem:[%s42] ss:$8 sm:$0xf0] %vm39, %v38
    %s44 = scalar_lea.vmem %s0, 16
    %v45 = vld [vmem:[%s44] sm:$0xff]
    %46 = vrot.lane.b32.xlu0 %v45, 96
    %v47 = vpop.permute.xlu0 %46
    %vm48 = vcmask 261120
    %s49 = scalar_lea.vmem [#allocation0], 129
    %50 = vst.msk [vmem:[%s49] ss:$8 sm:$0xf] %vm48, %v47
    %s51 = scalar_lea.vmem [#allocation0], 129
    %52 = vst.msk [vmem:[%s51] ss:$8 sm:$0xf0] %vm48, %v47
    %s53 = scalar_lea.vmem %s0, 24
    %v54 = vld [vmem:[%s53] sm:$0xff]
    %55 = vrot.lane.b32.xlu0 %v54, 96
    %v56 = vpop.permute.xlu0 %55
    %vm57 = vcmask 261120
    %s58 = scalar_lea.vmem [#allocation0], 193
    %59 = vst.msk [vmem:[%s58] ss:$8 sm:$0xf] %vm57, %v56
    %s60 = scalar_lea.vmem [#allocation0], 193
    %61 = vst.msk [vmem:[%s60] ss:$8 sm:$0xf0] %vm57, %v56
    %v62 = vld [vmem:[%s0] sm:$0xff]
    %63 = vrot.lane.b32.xlu0 %v62, 64
    %v64 = vpop.permute.xlu0 %63
    %vm65 = vcmask 261120
    %s66 = scalar_lea.vmem [#allocation0], 2
    %67 = vst.msk [vmem:[%s66] ss:$8 sm:$0xf] %vm65, %v64
    %s68 = scalar_lea.vmem [#allocation0], 2
    %69 = vst.msk [vmem:[%s68] ss:$8 sm:$0xf0] %vm65, %v64
    %s70 = scalar_lea.vmem %s0, 8
    %v71 = vld [vmem:[%s70] sm:$0xff]
    %72 = vrot.lane.b32.xlu0 %v71, 64
    %v73 = vpop.permute.xlu0 %72
    %vm74 = vcmask 261120
    %s75 = scalar_lea.vmem [#allocation0], 66
    %76 = vst.msk [vmem:[%s75] ss:$8 sm:$0xf] %vm74, %v73
    %s77 = scalar_lea.vmem [#allocation0], 66
    %78 = vst.msk [vmem:[%s77] ss:$8 sm:$0xf0] %vm74, %v73
    %s79 = scalar_lea.vmem %s0, 16
    %v80 = vld [vmem:[%s79] sm:$0xff]
    %81 = vrot.lane.b32.xlu0 %v80, 64
    %v82 = vpop.permute.xlu0 %81
    %vm83 = vcmask 261120
    %s84 = scalar_lea.vmem [#allocation0], 130
    %85 = vst.msk [vmem:[%s84] ss:$8 sm:$0xf] %vm83, %v82
    %s86 = scalar_lea.vmem [#allocation0], 130
    %87 = vst.msk [vmem:[%s86] ss:$8 sm:$0xf0] %vm83, %v82
    %s88 = scalar_lea.vmem %s0, 24
    %v89 = vld [vmem:[%s88] sm:$0xff]
    %90 = vrot.lane.b32.xlu0 %v89, 64
    %v91 = vpop.permute.xlu0 %90
    %vm92 = vcmask 261120
    %s93 = scalar_lea.vmem [#allocation0], 194
    %94 = vst.msk [vmem:[%s93] ss:$8 sm:$0xf] %vm92, %v91
    %s95 = scalar_lea.vmem [#allocation0], 194
    %96 = vst.msk [vmem:[%s95] ss:$8 sm:$0xf0] %vm92, %v91
    %v97 = vld [vmem:[%s0] sm:$0xff]
    %98 = vrot.lane.b32.xlu0 %v97, 32
    %v99 = vpop.permute.xlu0 %98
    %vm100 = vcmask 261120
    %s101 = scalar_lea.vmem [#allocation0], 3
    %102 = vst.msk [vmem:[%s101] ss:$8 sm:$0xf] %vm100, %v99
    %s103 = scalar_lea.vmem [#allocation0], 3
    %104 = vst.msk [vmem:[%s103] ss:$8 sm:$0xf0] %vm100, %v99
    %s105 = scalar_lea.vmem %s0, 8
    %v106 = vld [vmem:[%s105] sm:$0xff]
    %107 = vrot.lane.b32.xlu0 %v106, 32
    %v108 = vpop.permute.xlu0 %107
    %vm109 = vcmask 261120
    %s110 = scalar_lea.vmem [#allocation0], 67
    %111 = vst.msk [vmem:[%s110] ss:$8 sm:$0xf] %vm109, %v108
    %s112 = scalar_lea.vmem [#allocation0], 67
    %113 = vst.msk [vmem:[%s112] ss:$8 sm:$0xf0] %vm109, %v108
    %s114 = scalar_lea.vmem %s0, 16
    %v115 = vld [vmem:[%s114] sm:$0xff]
    %116 = vrot.lane.b32.xlu0 %v115, 32
    %v117 = vpop.permute.xlu0 %116
    %vm118 = vcmask 261120
    %s119 = scalar_lea.vmem [#allocation0], 131
    %120 = vst.msk [vmem:[%s119] ss:$8 sm:$0xf] %vm118, %v117
    %s121 = scalar_lea.vmem [#allocation0], 131
    %122 = vst.msk [vmem:[%s121] ss:$8 sm:$0xf0] %vm118, %v117
    %s123 = scalar_lea.vmem %s0, 24
    %v124 = vld [vmem:[%s123] sm:$0xff]
    %125 = vrot.lane.b32.xlu0 %v124, 32
    %v126 = vpop.permute.xlu0 %125
    %vm127 = vcmask 261120
    %s128 = scalar_lea.vmem [#allocation0], 195
    %129 = vst.msk [vmem:[%s128] ss:$8 sm:$0xf] %vm127, %v126
    %s130 = scalar_lea.vmem [#allocation0], 195
    %131 = vst.msk [vmem:[%s130] ss:$8 sm:$0xf0] %vm127, %v126
    %s133 = sshllo.u32 0, 4
    %v135 = vld [vmem:[#allocation0] sm:%s133]
    %s136 = sshllo.u32 0, 4
    %137 = vst [vmem:[%s1] sm:%s136] %v135
    %s138 = scalar_lea.vmem [#allocation0], 8
    %v139 = vld [vmem:[%s138] sm:%s133]
    %s140 = sshllo.u32 0, 4
    %s141 = scalar_lea.vmem %s1, 4
    %142 = vst [vmem:[%s141] sm:%s140] %v139
    %s143 = scalar_lea.vmem [#allocation0], 16
    %v144 = vld [vmem:[%s143] sm:%s133]
    %s145 = sshllo.u32 0, 4
    %s146 = smul.addr 4, 2
    %s147 = scalar_lea.vmem %s1, %s146
    %148 = vst [vmem:[%s147] sm:%s145] %v144
    %s149 = scalar_lea.vmem [#allocation0], 24
    %v150 = vld [vmem:[%s149] sm:%s133]
    %s151 = sshllo.u32 0, 4
    %s152 = smul.addr 4, 3
    %s153 = scalar_lea.vmem %s1, %s152
    %154 = vst [vmem:[%s153] sm:%s151] %v150
    %s155 = scalar_lea.vmem [#allocation0], 32
    %v156 = vld [vmem:[%s155] sm:%s133]
    %s157 = sshllo.u32 0, 4
    %s158 = smul.addr 4, 4
    %s159 = scalar_lea.vmem %s1, %s158
    %160 = vst [vmem:[%s159] sm:%s157] %v156
    %s161 = scalar_lea.vmem [#allocation0], 40
    %v162 = vld [vmem:[%s161] sm:%s133]
    %s163 = sshllo.u32 0, 4
    %s164 = smul.addr 4, 5
    %s165 = scalar_lea.vmem %s1, %s164
    %166 = vst [vmem:[%s165] sm:%s163] %v162
    %s167 = scalar_lea.vmem [#allocation0], 48
    %v168 = vld [vmem:[%s167] sm:%s133]
    %s169 = sshllo.u32 0, 4
    %s170 = smul.addr 4, 6
    %s171 = scalar_lea.vmem %s1, %s170
    %172 = vst [vmem:[%s171] sm:%s169] %v168
    %s173 = scalar_lea.vmem [#allocation0], 56
    %v174 = vld [vmem:[%s173] sm:%s133]
    %s175 = sshllo.u32 0, 4
    %s176 = smul.addr 4, 7
    %s177 = scalar_lea.vmem %s1, %s176
    %178 = vst [vmem:[%s177] sm:%s175] %v174
    %s179 = scalar_lea.vmem [#allocation0], 64
    %v180 = vld [vmem:[%s179] sm:%s133]
    %s181 = sshllo.u32 0, 4
    %s182 = smul.addr 4, 8
    %s183 = scalar_lea.vmem %s1, %s182
    %184 = vst [vmem:[%s183] sm:%s181] %v180
    %s185 = scalar_lea.vmem [#allocation0], 72
    %v186 = vld [vmem:[%s185] sm:%s133]
    %s187 = sshllo.u32 0, 4
    %s188 = smul.addr 4, 9
    %s189 = scalar_lea.vmem %s1, %s188
    %190 = vst [vmem:[%s189] sm:%s187] %v186
    %s191 = scalar_lea.vmem [#allocation0], 80
    %v192 = vld [vmem:[%s191] sm:%s133]
    %s193 = sshllo.u32 0, 4
    %s194 = smul.addr 4, 10
    %s195 = scalar_lea.vmem %s1, %s194
    %196 = vst [vmem:[%s195] sm:%s193] %v192
    %s197 = scalar_lea.vmem [#allocation0], 88
    %v198 = vld [vmem:[%s197] sm:%s133]
    %s199 = sshllo.u32 0, 4
    %s200 = smul.addr 4, 11
    %s201 = scalar_lea.vmem %s1, %s200
    %202 = vst [vmem:[%s201] sm:%s199] %v198
    %s203 = scalar_lea.vmem [#allocation0], 96
    %v204 = vld [vmem:[%s203] sm:%s133]
    %s205 = sshllo.u32 0, 4
    %s206 = smul.addr 4, 12
    %s207 = scalar_lea.vmem %s1, %s206
    %208 = vst [vmem:[%s207] sm:%s205] %v204
    %s209 = scalar_lea.vmem [#allocation0], 104
    %v210 = vld [vmem:[%s209] sm:%s133]
    %s211 = sshllo.u32 0, 4
    %s212 = smul.addr 4, 13
    %s213 = scalar_lea.vmem %s1, %s212
    %214 = vst [vmem:[%s213] sm:%s211] %v210
    %s215 = scalar_lea.vmem [#allocation0], 112
    %v216 = vld [vmem:[%s215] sm:%s133]
    %s217 = sshllo.u32 0, 4
    %s218 = smul.addr 4, 14
    %s219 = scalar_lea.vmem %s1, %s218
    %220 = vst [vmem:[%s219] sm:%s217] %v216
    %s221 = scalar_lea.vmem [#allocation0], 120
    %v222 = vld [vmem:[%s221] sm:%s133]
    %s223 = sshllo.u32 0, 4
    %s224 = smul.addr 4, 15
    %s225 = scalar_lea.vmem %s1, %s224
    %226 = vst [vmem:[%s225] sm:%s223] %v222
    %s227 = scalar_lea.vmem [#allocation0], 128
    %v228 = vld [vmem:[%s227] sm:%s133]
    %s229 = sshllo.u32 0, 4
    %s230 = smul.addr 4, 16
    %s231 = scalar_lea.vmem %s1, %s230
    %232 = vst [vmem:[%s231] sm:%s229] %v228
    %s233 = scalar_lea.vmem [#allocation0], 136
    %v234 = vld [vmem:[%s233] sm:%s133]
    %s235 = sshllo.u32 0, 4
    %s236 = smul.addr 4, 17
    %s237 = scalar_lea.vmem %s1, %s236
    %238 = vst [vmem:[%s237] sm:%s235] %v234
    %s239 = scalar_lea.vmem [#allocation0], 144
    %v240 = vld [vmem:[%s239] sm:%s133]
    %s241 = sshllo.u32 0, 4
    %s242 = smul.addr 4, 18
    %s243 = scalar_lea.vmem %s1, %s242
    %244 = vst [vmem:[%s243] sm:%s241] %v240
    %s245 = scalar_lea.vmem [#allocation0], 152
    %v246 = vld [vmem:[%s245] sm:%s133]
    %s247 = sshllo.u32 0, 4
    %s248 = smul.addr 4, 19
    %s249 = scalar_lea.vmem %s1, %s248
    %250 = vst [vmem:[%s249] sm:%s247] %v246
    %s251 = scalar_lea.vmem [#allocation0], 160
    %v252 = vld [vmem:[%s251] sm:%s133]
    %s253 = sshllo.u32 0, 4
    %s254 = smul.addr 4, 20
    %s255 = scalar_lea.vmem %s1, %s254
    %256 = vst [vmem:[%s255] sm:%s253] %v252
    %s257 = scalar_lea.vmem [#allocation0], 168
    %v258 = vld [vmem:[%s257] sm:%s133]
    %s259 = sshllo.u32 0, 4
    %s260 = smul.addr 4, 21
    %s261 = scalar_lea.vmem %s1, %s260
    %262 = vst [vmem:[%s261] sm:%s259] %v258
    %s263 = scalar_lea.vmem [#allocation0], 176
    %v264 = vld [vmem:[%s263] sm:%s133]
    %s265 = sshllo.u32 0, 4
    %s266 = smul.addr 4, 22
    %s267 = scalar_lea.vmem %s1, %s266
    %268 = vst [vmem:[%s267] sm:%s265] %v264
    %s269 = scalar_lea.vmem [#allocation0], 184
    %v270 = vld [vmem:[%s269] sm:%s133]
    %s271 = sshllo.u32 0, 4
    %s272 = smul.addr 4, 23
    %s273 = scalar_lea.vmem %s1, %s272
    %274 = vst [vmem:[%s273] sm:%s271] %v270
    %s275 = scalar_lea.vmem [#allocation0], 192
    %v276 = vld [vmem:[%s275] sm:%s133]
    %s277 = sshllo.u32 0, 4
    %s278 = smul.addr 4, 24
    %s279 = scalar_lea.vmem %s1, %s278
    %280 = vst [vmem:[%s279] sm:%s277] %v276
    %s281 = scalar_lea.vmem [#allocation0], 200
    %v282 = vld [vmem:[%s281] sm:%s133]
    %s283 = sshllo.u32 0, 4
    %s284 = smul.addr 4, 25
    %s285 = scalar_lea.vmem %s1, %s284
    %286 = vst [vmem:[%s285] sm:%s283] %v282
    %s287 = scalar_lea.vmem [#allocation0], 208
    %v288 = vld [vmem:[%s287] sm:%s133]
    %s289 = sshllo.u32 0, 4
    %s290 = smul.addr 4, 26
    %s291 = scalar_lea.vmem %s1, %s290
    %292 = vst [vmem:[%s291] sm:%s289] %v288
    %s293 = scalar_lea.vmem [#allocation0], 216
    %v294 = vld [vmem:[%s293] sm:%s133]
    %s295 = sshllo.u32 0, 4
    %s296 = smul.addr 4, 27
    %s297 = scalar_lea.vmem %s1, %s296
    %298 = vst [vmem:[%s297] sm:%s295] %v294
    %s299 = scalar_lea.vmem [#allocation0], 224
    %v300 = vld [vmem:[%s299] sm:%s133]
    %s301 = sshllo.u32 0, 4
    %s302 = smul.addr 4, 28
    %s303 = scalar_lea.vmem %s1, %s302
    %304 = vst [vmem:[%s303] sm:%s301] %v300
    %s305 = scalar_lea.vmem [#allocation0], 232
    %v306 = vld [vmem:[%s305] sm:%s133]
    %s307 = sshllo.u32 0, 4
    %s308 = smul.addr 4, 29
    %s309 = scalar_lea.vmem %s1, %s308
    %310 = vst [vmem:[%s309] sm:%s307] %v306
    %s311 = scalar_lea.vmem [#allocation0], 240
    %v312 = vld [vmem:[%s311] sm:%s133]
    %s313 = sshllo.u32 0, 4
    %s314 = smul.addr 4, 30
    %s315 = scalar_lea.vmem %s1, %s314
    %316 = vst [vmem:[%s315] sm:%s313] %v312
    %s317 = scalar_lea.vmem [#allocation0], 248
    %v318 = vld [vmem:[%s317] sm:%s133]
    %s319 = sshllo.u32 0, 4
    %s320 = smul.addr 4, 31
    %s321 = scalar_lea.vmem %s1, %s320
    %322 = vst [vmem:[%s321] sm:%s319] %v318

// kernel: rnn_decoder_forward.1
$region0: #{rnn_decoder_forward.1}
  #allocation0 [shape = 'u32[]', space=smem, size = 0x4, offset = 0x4, fixed_abs, tag = 'smem constant byte address 0x4 - core index']
  #allocation1 [shape = 'u32[144,128]{1,0:T(1,128)}', space=vmem, size = 0x12000, scoped, tag = 'internal scratch']
  #allocation2 [shape = 'f32[64,128]{1,0:T(8,128)}', space=vmem, size = 0x8000, scoped, tag = 'scratch operand']
  #allocation3 [shape = 'f32[32,512]{1,0:T(8,128)}', space=vmem, size = 0x10000, scoped, tag = 'scratch operand']
  #allocation4 [shape = 's32[1]{0}', space=sflag, size = 0x4, scoped, tag = 'scratch operand']
  #allocation5 [shape = 's32[]', space=sflag, size = 0x4, offset = 0, fixed_abs, tag = 'sflag constant byte address 0x0 - dummy sync flag']
  %s0 = inlined_call_operand.vmem [shape: f32[2,64,128], index: 0, kind: input, shape index: {}]
  %s1 = inlined_call_operand.vmem [shape: f32[2,128,512], index: 1, kind: input, shape index: {}]
  %s2 = inlined_call_operand.vmem [shape: f32[2,128,512], index: 2, kind: input, shape index: {}]
  %s3 = inlined_call_operand.vmem [shape: f32[2,1,512], index: 3, kind: input, shape index: {}]
  %s4 = inlined_call_operand.vmem [shape: f32[128,128], index: 4, kind: input, shape index: {}]
  %s5 = inlined_call_operand.vmem [shape: f32[1,128], index: 5, kind: input, shape index: {}]
  %s6 = inlined_call_operand.vmem [shape: f32[2,64,128], index: 6, kind: output, shape index: {0}]
  %s7 = inlined_call_operand.vmem [shape: f32[2,2,8,128], index: 7, kind: output, shape index: {1}]
  %s8 = inlined_call_operand.vmem [shape: f32[2,2,8,128], index: 8, kind: output, shape index: {2}]
  %9 = xla_tuple %s6, %s7, %s8
  %s10 = sld [smem:[#allocation0]]
  $region111: #{rnn_decoder_forward.1} parent=0
    _
  %s12 = ssub.s32 1, %s10
  %s13 = scalar_select 0, %s12, %s10
  loop: start=0, step=1, limit=6
  $region2: #{rnn_decoder_forward.1} parent=0 // loop_pre_header
    _
  $region3: #{rnn_decoder_forward.1} parent=0 // loop_header
    %s15 = sphi 0, %s19
    %p16 = scmp.ge.s32.totalorder %s15, 6
    %s22 = sphi 0, %s34
    %s23 = sphi 0, %s30
    %s24 = sphi 0, %s22
    %s25 = sphi 0, %s23
    %s26 = sphi 0, %s24
    %s27 = sphi 0, %s25
    %s37 = sphi 0, %s39
    %s40 = sphi 0, %s37
    %s41 = sphi 0, %s40
    %s57 = sphi 0, %s41
    %s63 = sphi 0, %s65
    %s66 = sphi 0, %s63
    %s67 = sphi 0, %s66
    %s83 = sphi 0, %s67
    %s89 = sphi 0, %s91
    %s92 = sphi 0, %s89
    %s93 = sphi 0, %s92
    %s109 = sphi 0, %s93
    %s113 = sphi 0, %s113
    %s115 = sphi 0, %s113
    %s116 = sphi 0, %s115
    %s130 = sphi 0, %s116
    %s134 = sphi 0, %s134
    %s136 = sphi 0, %s134
    %s137 = sphi 0, %s136
    %s151 = sphi 0, %s137
    %s157 = sphi 0, %s159
    %s160 = sphi 0, %s157
    %s161 = sphi 0, %s160
    %s177 = sphi 0, %s161
    %s185 = sphi 0, %s187
    %s188 = sphi 0, %s185
    %s189 = sphi 0, %s188
    %s205 = sphi 0, %s189
    %s213 = sphi 0, %s215
    %s216 = sphi 0, %s213
    %s217 = sphi 0, %s216
    %s233 = sphi 0, %s217
  $region4: #{rnn_decoder_forward.1} parent=0 // loop_header_branch
    %18 = sbr.rel (%p16) target = $region8
  $region5: #{rnn_decoder_forward.1} parent=0 // loop_body
    %s20 = ssub.s32 %s15, 1
    %s21 = ssub.s32 %s15, 2
    %s28 = sadd.s32 1, %s23
    %p29 = scmp.ge.s32.totalorder %s28, 2
    %s30 = scalar_select %p29, 0, %s28
    %s31 = sadd.s32 1, %s22
    %s32 = scalar_select %p29, %s31, %s22
    %p33 = scmp.ge.s32.totalorder %s32, 2
    %s34 = scalar_select %p33, 0, %s32
    %s35 = ssub.s32 %s23, %s30
    %p36 = scmp.eq.s32.totalorder %s35, 0
    %s38 = sadd.s32 %s37, 1
    %s39 = scalar_select %p36, %s37, %s38
    %p42 = pneg %p36
    %p43 = scmp.eq.s32.totalorder %s15, 3
    %p44 = por %p42, %p43
    %p45 = scmp.ne.s32.totalorder %s37, %s40
    %p46 = scmp.eq.s32.totalorder %s15, 0
    %p47 = por %p45, %p46
    %p48 = scmp.ne.s32.totalorder %s37, %s40
    %p49 = scmp.eq.s32.totalorder %s20, 3
    %p50 = por %p48, %p49
    %p51 = scmp.ne.s32.totalorder %s40, %s41
    %p52 = scmp.eq.s32.totalorder %s20, 0
    %p53 = por %p51, %p52
    %p54 = scmp.ne.s32.totalorder %s40, %s41
    %p55 = scmp.eq.s32.totalorder %s21, 3
    %p56 = por %p54, %p55
    %p58 = scmp.ne.s32.totalorder %s41, %s57
    %p59 = scmp.eq.s32.totalorder %s21, 0
    %p60 = por %p58, %p59
    %s61 = ssub.s32 %s23, %s30
    %p62 = scmp.eq.s32.totalorder %s61, 0
    %s64 = sadd.s32 %s63, 1
    %s65 = scalar_select %p62, %s63, %s64
    %p68 = pneg %p62
    %p69 = scmp.eq.s32.totalorder %s15, 3
    %p70 = por %p68, %p69
    %p71 = scmp.ne.s32.totalorder %s63, %s66
    %p72 = scmp.eq.s32.totalorder %s15, 0
    %p73 = por %p71, %p72
    %p74 = scmp.ne.s32.totalorder %s63, %s66
    %p75 = scmp.eq.s32.totalorder %s20, 3
    %p76 = por %p74, %p75
    %p77 = scmp.ne.s32.totalorder %s66, %s67
    %p78 = scmp.eq.s32.totalorder %s20, 0
    %p79 = por %p77, %p78
    %p80 = scmp.ne.s32.totalorder %s66, %s67
    %p81 = scmp.eq.s32.totalorder %s21, 3
    %p82 = por %p80, %p81
    %p84 = scmp.ne.s32.totalorder %s67, %s83
    %p85 = scmp.eq.s32.totalorder %s21, 0
    %p86 = por %p84, %p85
    %s87 = ssub.s32 %s23, %s30
    %p88 = scmp.eq.s32.totalorder %s87, 0
    %s90 = sadd.s32 %s89, 1
    %s91 = scalar_select %p88, %s89, %s90
    %p94 = pneg %p88
    %p95 = scmp.eq.s32.totalorder %s15, 3
    %p96 = por %p94, %p95
    %p97 = scmp.ne.s32.totalorder %s89, %s92
    %p98 = scmp.eq.s32.totalorder %s15, 0
    %p99 = por %p97, %p98
    %p100 = scmp.ne.s32.totalorder %s89, %s92
    %p101 = scmp.eq.s32.totalorder %s20, 3
    %p102 = por %p100, %p101
    %p103 = scmp.ne.s32.totalorder %s92, %s93
    %p104 = scmp.eq.s32.totalorder %s20, 0
    %p105 = por %p103, %p104
    %p106 = scmp.ne.s32.totalorder %s92, %s93
    %p107 = scmp.eq.s32.totalorder %s21, 3
    %p108 = por %p106, %p107
    %p110 = scmp.ne.s32.totalorder %s93, %s109
    %p111 = scmp.eq.s32.totalorder %s21, 0
    %p112 = por %p110, %p111
    %s114 = sadd.s32 %s113, 1
    %p117 = scmp.eq.s32.totalorder %s15, 3
    %p118 = scmp.ne.s32.totalorder %s113, %s115
    %p119 = scmp.eq.s32.totalorder %s15, 0
    %p120 = por %p118, %p119
    %p121 = scmp.ne.s32.totalorder %s113, %s115
    %p122 = scmp.eq.s32.totalorder %s20, 3
    %p123 = por %p121, %p122
    %p124 = scmp.ne.s32.totalorder %s115, %s116
    %p125 = scmp.eq.s32.totalorder %s20, 0
    %p126 = por %p124, %p125
    %p127 = scmp.ne.s32.totalorder %s115, %s116
    %p128 = scmp.eq.s32.totalorder %s21, 3
    %p129 = por %p127, %p128
    %p131 = scmp.ne.s32.totalorder %s116, %s130
    %p132 = scmp.eq.s32.totalorder %s21, 0
    %p133 = por %p131, %p132
    %s135 = sadd.s32 %s134, 1
    %p138 = scmp.eq.s32.totalorder %s15, 3
    %p139 = scmp.ne.s32.totalorder %s134, %s136
    %p140 = scmp.eq.s32.totalorder %s15, 0
    %p141 = por %p139, %p140
    %p142 = scmp.ne.s32.totalorder %s134, %s136
    %p143 = scmp.eq.s32.totalorder %s20, 3
    %p144 = por %p142, %p143
    %p145 = scmp.ne.s32.totalorder %s136, %s137
    %p146 = scmp.eq.s32.totalorder %s20, 0
    %p147 = por %p145, %p146
    %p148 = scmp.ne.s32.totalorder %s136, %s137
    %p149 = scmp.eq.s32.totalorder %s21, 3
    %p150 = por %p148, %p149
    %p152 = scmp.ne.s32.totalorder %s137, %s151
    %p153 = scmp.eq.s32.totalorder %s21, 0
    %p154 = por %p152, %p153
    %s155 = ssub.s32 %s22, %s34
    %p156 = scmp.eq.s32.totalorder %s155, 0
    %s158 = sadd.s32 %s157, 1
    %s159 = scalar_select %p156, %s157, %s158
    %p162 = pneg %p156
    %p163 = scmp.eq.s32.totalorder %s15, 3
    %p164 = por %p162, %p163
    %p165 = scmp.ne.s32.totalorder %s157, %s160
    %p166 = scmp.eq.s32.totalorder %s15, 0
    %p167 = por %p165, %p166
    %p168 = scmp.ne.s32.totalorder %s157, %s160
    %p169 = scmp.eq.s32.totalorder %s20, 3
    %p170 = por %p168, %p169
    %p171 = scmp.ne.s32.totalorder %s160, %s161
    %p172 = scmp.eq.s32.totalorder %s20, 0
    %p173 = por %p171, %p172
    %p174 = scmp.ne.s32.totalorder %s160, %s161
    %p175 = scmp.eq.s32.totalorder %s21, 3
    %p176 = por %p174, %p175
    %p178 = scmp.ne.s32.totalorder %s161, %s177
    %p179 = scmp.eq.s32.totalorder %s21, 0
    %p180 = por %p178, %p179
    %s181 = ssub.s32 %s23, %s30
    %s182 = ssub.s32 %s22, %s34
    %s183 = sor.u32 %s181, %s182
    %p184 = scmp.eq.s32.totalorder %s183, 0
    %s186 = sadd.s32 %s185, 1
    %s187 = scalar_select %p184, %s185, %s186
    %p190 = pneg %p184
    %p191 = scmp.eq.s32.totalorder %s15, 3
    %p192 = por %p190, %p191
    %p193 = scmp.ne.s32.totalorder %s185, %s188
    %p194 = scmp.eq.s32.totalorder %s15, 0
    %p195 = por %p193, %p194
    %p196 = scmp.ne.s32.totalorder %s185, %s188
    %p197 = scmp.eq.s32.totalorder %s20, 3
    %p198 = por %p196, %p197
    %p199 = scmp.ne.s32.totalorder %s188, %s189
    %p200 = scmp.eq.s32.totalorder %s20, 0
    %p201 = por %p199, %p200
    %p202 = scmp.ne.s32.totalorder %s188, %s189
    %p203 = scmp.eq.s32.totalorder %s21, 3
    %p204 = por %p202, %p203
    %p206 = scmp.ne.s32.totalorder %s189, %s205
    %p207 = scmp.eq.s32.totalorder %s21, 0
    %p208 = por %p206, %p207
    %s209 = ssub.s32 %s23, %s30
    %s210 = ssub.s32 %s22, %s34
    %s211 = sor.u32 %s209, %s210
    %p212 = scmp.eq.s32.totalorder %s211, 0
    %s214 = sadd.s32 %s213, 1
    %s215 = scalar_select %p212, %s213, %s214
    %p218 = pneg %p212
    %p219 = scmp.eq.s32.totalorder %s15, 3
    %p220 = por %p218, %p219
    %p221 = scmp.ne.s32.totalorder %s213, %s216
    %p222 = scmp.eq.s32.totalorder %s15, 0
    %p223 = por %p221, %p222
    %p224 = scmp.ne.s32.totalorder %s213, %s216
    %p225 = scmp.eq.s32.totalorder %s20, 3
    %p226 = por %p224, %p225
    %p227 = scmp.ne.s32.totalorder %s216, %s217
    %p228 = scmp.eq.s32.totalorder %s20, 0
    %p229 = por %p227, %p228
    %p230 = scmp.ne.s32.totalorder %s216, %s217
    %p231 = scmp.eq.s32.totalorder %s21, 3
    %p232 = por %p230, %p231
    %p234 = scmp.ne.s32.totalorder %s217, %s233
    %p235 = scmp.eq.s32.totalorder %s21, 0
    %p236 = por %p234, %p235
    %p237 = scmp.le.s32.totalorder 1, %s15
    %p238 = scmp.lt.s32.totalorder %s15, 5
    %p239 = pnand %p237, %p238
    %p240 = pneg %p239
    // Predicated region
    $region9: #{rnn_decoder_forward.1} parent=5 // pred_check
      _
    $region10: #{rnn_decoder_forward.1} parent=5 // pred_check_branch
      %242 = sbr.rel (%p239) target = $region12
    $region11: #{rnn_decoder_forward.1} parent=5 // pred_region
      %s243 = ssub.s32 %s15, 1
      // Predicated region
      $region13: #{rnn_decoder_forward.1} parent=11 // pred_check
        %p244 = pneg %p126
      $region14: #{rnn_decoder_forward.1} parent=11 // pred_check_branch
        %246 = sbr.rel (%p244) target = $region16
      $region15: #{rnn_decoder_forward.1} parent=11 // pred_region
        _
      $region16: #{rnn_decoder_forward.1} parent=11 // pred_fallthru
        _
      // Predicated region
      $region17: #{rnn_decoder_forward.1} parent=11 // pred_check
        %p247 = pneg %p147
      $region18: #{rnn_decoder_forward.1} parent=11 // pred_check_branch
        %249 = sbr.rel (%p247) target = $region20
      $region19: #{rnn_decoder_forward.1} parent=11 // pred_region
        _
      $region20: #{rnn_decoder_forward.1} parent=11 // pred_fallthru
        _
    $region12: #{rnn_decoder_forward.1} parent=5 // pred_fallthru
      _
    %p250 = scmp.lt.s32.totalorder %s15, 4
    // Predicated region
    $region21: #{rnn_decoder_forward.1} parent=5 // pred_check
      %p251 = pneg %p250
    $region22: #{rnn_decoder_forward.1} parent=5 // pred_check_branch
      %253 = sbr.rel (%p251) target = $region24
    $region23: #{rnn_decoder_forward.1} parent=5 // pred_region
      // Predicated region
      $region25: #{rnn_decoder_forward.1} parent=23 // pred_check
        %p254 = pneg %p47
      $region26: #{rnn_decoder_forward.1} parent=23 // pred_check_branch
        %256 = sbr.rel (%p254) target = $region28
      $region27: #{rnn_decoder_forward.1} parent=23 // pred_region
        %p257 = scmp.lt.s32.totalorder %s23, 1
        %s258 = scalar_select %p257, %s23, 1
        %s259 = smul.addr %s258, 64
        %s260 = smul.addr %s259, 8
        %s261 = scalar_lea.vmem %s1, %s260
      $region28: #{rnn_decoder_forward.1} parent=23 // pred_fallthru
        _
      // Predicated region
      $region29: #{rnn_decoder_forward.1} parent=23 // pred_check
        %p262 = pneg %p73
      $region30: #{rnn_decoder_forward.1} parent=23 // pred_check_branch
        %264 = sbr.rel (%p262) target = $region32
      $region31: #{rnn_decoder_forward.1} parent=23 // pred_region
        %p265 = scmp.lt.s32.totalorder %s23, 1
        %s266 = scalar_select %p265, %s23, 1
        %s267 = smul.addr %s266, 64
        %s268 = smul.addr %s267, 8
        %s269 = scalar_lea.vmem %s2, %s268
      $region32: #{rnn_decoder_forward.1} parent=23 // pred_fallthru
        _
      // Predicated region
      $region33: #{rnn_decoder_forward.1} parent=23 // pred_check
        %p270 = pneg %p99
      $region34: #{rnn_decoder_forward.1} parent=23 // pred_check_branch
        %272 = sbr.rel (%p270) target = $region36
      $region35: #{rnn_decoder_forward.1} parent=23 // pred_region
        %p273 = scmp.lt.s32.totalorder %s23, 1
        %s274 = scalar_select %p273, %s23, 1
        %s275 = smul.addr %s274, 4
        %s276 = scalar_lea.vmem %s3, %s275
      $region36: #{rnn_decoder_forward.1} parent=23 // pred_fallthru
        _
    $region24: #{rnn_decoder_forward.1} parent=5 // pred_fallthru
      _
    %p277 = scmp.le.s32.totalorder 1, %s15
    %p278 = scmp.lt.s32.totalorder %s15, 5
    %p279 = pnand %p277, %p278
    %p280 = pneg %p279
    // Predicated region
    $region37: #{rnn_decoder_forward.1} parent=5 // pred_check
      _
    $region38: #{rnn_decoder_forward.1} parent=5 // pred_check_branch
      %282 = sbr.rel (%p279) target = $region40
    $region39: #{rnn_decoder_forward.1} parent=5 // pred_region
      %s283 = ssub.s32 %s15, 1
      %p284 = scmp.lt.s32.totalorder %s25, 1
      %s285 = scalar_select %p284, %s25, 1
      %s286 = smul.addr %s285, 64
      %s287 = smul.addr %s286, 8
      %s288 = scalar_lea.vmem %s1, %s287
      %p289 = pneg %p53
      %p290 = pneg %p50
      %p291 = scmp.lt.s32.totalorder %s25, 1
      %s292 = scalar_select %p291, %s25, 1
      %s293 = smul.addr %s292, 64
      %s294 = smul.addr %s293, 8
      %s295 = scalar_lea.vmem %s2, %s294
      %p296 = pneg %p79
      %p297 = pneg %p76
      %p298 = scmp.lt.s32.totalorder %s25, 1
      %s299 = scalar_select %p298, %s25, 1
      %s300 = smul.addr %s299, 4
      %s301 = scalar_lea.vmem %s3, %s300
      %p302 = pneg %p105
      %p303 = pneg %p102
      %p304 = pneg %p126
      %p305 = pneg %p123
      %p306 = pneg %p147
      %p307 = pneg %p144
      %p308 = pneg %p173
      %p309 = pneg %p170
      %p310 = scmp.lt.s32.totalorder %s24, 1
      %s311 = scalar_select %p310, %s24, 1
      %s312 = smul.addr %s311, 8
      %s313 = smul.addr %s312, 8
      %s314 = scalar_lea.vmem %s6, %s313
      %p315 = pneg %p201
      %p316 = pneg %p198
      %p317 = scmp.lt.s32.totalorder %s25, 1
      %s318 = scalar_select %p317, %s25, 1
      %p319 = scmp.lt.s32.totalorder %s24, 1
      %s320 = scalar_select %p319, %s24, 1
      %s321 = smul.addr %s318, 2
      %s322 = sadd.s32 %s320, %s321
      %s323 = smul.addr %s322, 8
      %s324 = scalar_lea.vmem %s7, %s323
      %p325 = pneg %p229
      %p326 = pneg %p226
      %p327 = scmp.lt.s32.totalorder %s25, 1
      %s328 = scalar_select %p327, %s25, 1
      %p329 = scmp.lt.s32.totalorder %s24, 1
      %s330 = scalar_select %p329, %s24, 1
      %s331 = smul.addr %s328, 2
      %s332 = sadd.s32 %s330, %s331
      %s333 = smul.addr %s332, 8
      %s334 = scalar_lea.vmem %s8, %s333
      %p335 = scmp.lt.s32.totalorder %s25, 1
      %s336 = scalar_select %p335, %s25, 1
      %s337 = smul.addr %s336, 64
      %s338 = smul.addr %s337, 8
      %s339 = scalar_lea.vmem %s1, %s338
      %p340 = scmp.lt.s32.totalorder %s25, 1
      %s341 = scalar_select %p340, %s25, 1
      %s342 = smul.addr %s341, 64
      %s343 = smul.addr %s342, 8
      %s344 = scalar_lea.vmem %s2, %s343
      %p345 = scmp.lt.s32.totalorder %s25, 1
      %s346 = scalar_select %p345, %s25, 1
      %s347 = smul.addr %s346, 4
      %s348 = scalar_lea.vmem %s3, %s347
      %p349 = scmp.lt.s32.totalorder %s24, 1
      %s350 = scalar_select %p349, %s24, 1
      %s351 = smul.addr %s350, 8
      %s352 = smul.addr %s351, 8
      %s353 = scalar_lea.vmem %s6, %s352
      %p354 = scmp.lt.s32.totalorder %s25, 1
      %s355 = scalar_select %p354, %s25, 1
      %p356 = scmp.lt.s32.totalorder %s24, 1
      %s357 = scalar_select %p356, %s24, 1
      %s358 = smul.addr %s355, 2
      %s359 = sadd.s32 %s357, %s358
      %s360 = smul.addr %s359, 8
      %s361 = scalar_lea.vmem %s7, %s360
      %p362 = scmp.lt.s32.totalorder %s25, 1
      %s363 = scalar_select %p362, %s25, 1
      %p364 = scmp.lt.s32.totalorder %s24, 1
      %s365 = scalar_select %p364, %s24, 1
      %s366 = smul.addr %s363, 2
      %s367 = sadd.s32 %s365, %s366
      %s368 = smul.addr %s367, 8
      %s369 = scalar_lea.vmem %s8, %s368
      %p370 = scmp.eq.s32.totalorder %s25, 0
      // Predicated region
      $region41: #{rnn_decoder_forward.1} parent=39 // pred_check
        %p371 = pneg %p370
      $region42: #{rnn_decoder_forward.1} parent=39 // pred_check_branch
        %373 = sbr.rel (%p371) target = $region44
      $region43: #{rnn_decoder_forward.1} parent=39 // pred_region
        %s374 = smul.u32 %s24, 64
        %s375 = scalar_lea.vmem %s0, %s374
        %p377 = scmp.lt.u32.totalorder 64, 8
        %p378 = pneg %p377
        // Predicated region
        $region45: #{rnn_decoder_forward.1} parent=43 // pred_check
          _
        $region46: #{rnn_decoder_forward.1} parent=43 // pred_check_branch
          %380 = sbr.rel (%p377) target = $region48
        $region47: #{rnn_decoder_forward.1} parent=43 // pred_region
          %s395 = sand.u32 64, 7
          %p396 = scmp.eq.s32.totalorder %s395, 0
          // Predicated region
          $region60: #{rnn_decoder_forward.1} parent=47 // pred_check
            %p397 = pneg %p396
          $region61: #{rnn_decoder_forward.1} parent=47 // pred_check_branch
            %399 = sbr.rel (%p397) target = $region63
          $region62: #{rnn_decoder_forward.1} parent=47 // pred_region
            loop: start=0, step=1, limit=1
            $region64: #{rnn_decoder_forward.1} parent=62 // loop_pre_header
              _
            $region65: #{rnn_decoder_forward.1} parent=62 // loop_header
              %s401 = sphi 0, %s405
              %p402 = scmp.ge.s32.totalorder %s401, 1
              %s406 = sphi %s375, %s375
              %s407 = sphi [#allocation2], [#allocation2]
            $region66: #{rnn_decoder_forward.1} parent=62 // loop_header_branch
              %404 = sbr.rel (%p402) target = $region70
            $region67: #{rnn_decoder_forward.1} parent=62 // loop_body
              %v408 = vld [vmem:[%s406] sm:$0xff]
              %409 = vst [vmem:[%s407] sm:$0xff] %v408
              %v410 = vld [vmem:[%s406 + $0x8] sm:$0xff]
              %411 = vst [vmem:[%s407 + $0x8] sm:$0xff] %v410
              %v412 = vld [vmem:[%s406 + $0x10] sm:$0xff]
              %413 = vst [vmem:[%s407 + $0x10] sm:$0xff] %v412
              %v414 = vld [vmem:[%s406 + $0x18] sm:$0xff]
              %415 = vst [vmem:[%s407 + $0x18] sm:$0xff] %v414
              %v416 = vld [vmem:[%s406 + $0x20] sm:$0xff]
              %417 = vst [vmem:[%s407 + $0x20] sm:$0xff] %v416
              %v418 = vld [vmem:[%s406 + $0x28] sm:$0xff]
              %419 = vst [vmem:[%s407 + $0x28] sm:$0xff] %v418
              %v420 = vld [vmem:[%s406 + $0x30] sm:$0xff]
              %421 = vst [vmem:[%s407 + $0x30] sm:$0xff] %v420
              %v422 = vld [vmem:[%s406 + $0x38] sm:$0xff]
              %423 = vst [vmem:[%s407 + $0x38] sm:$0xff] %v422
            $region68: #{rnn_decoder_forward.1} parent=62 // loop_footer
              %s405 = sadd.s32 1, %s401
            $region69: #{rnn_decoder_forward.1} parent=62 // loop_footer_branch
              %400 = sbr.rel target = $region65
            $region70: #{rnn_decoder_forward.1} parent=62 // loop_exit
              _
          $region63: #{rnn_decoder_forward.1} parent=47 // pred_fallthru
            _
          %p424 = pneg %p396
          // Predicated region
          $region71: #{rnn_decoder_forward.1} parent=47 // pred_check
            _
          $region72: #{rnn_decoder_forward.1} parent=47 // pred_check_branch
            %426 = sbr.rel (%p396) target = $region74
          $region73: #{rnn_decoder_forward.1} parent=47 // pred_region
            %s427 = sand.u32 64, 7
          $region74: #{rnn_decoder_forward.1} parent=47 // pred_fallthru
            _
        $region48: #{rnn_decoder_forward.1} parent=43 // pred_fallthru
          _
        // Predicated region
        $region49: #{rnn_decoder_forward.1} parent=43 // pred_check
          %p381 = pneg %p377
        $region50: #{rnn_decoder_forward.1} parent=43 // pred_check_branch
          %383 = sbr.rel (%p381) target = $region52
        $region51: #{rnn_decoder_forward.1} parent=43 // pred_region
          %s384 = sshllo.u32 0, 64
          loop: start=0, step=1, limit=1
          $region53: #{rnn_decoder_forward.1} parent=51 // loop_pre_header
            _
          $region54: #{rnn_decoder_forward.1} parent=51 // loop_header
            %s386 = sphi 0, %s390
            %p387 = scmp.ge.s32.totalorder %s386, 1
            %s391 = sphi %s375, %s375
            %s392 = sphi [#allocation2], [#allocation2]
          $region55: #{rnn_decoder_forward.1} parent=51 // loop_header_branch
            %389 = sbr.rel (%p387) target = $region59
          $region56: #{rnn_decoder_forward.1} parent=51 // loop_body
            %v393 = vld [vmem:[%s391] sm:%s384]
            %394 = vst [vmem:[%s392] sm:%s384] %v393
          $region57: #{rnn_decoder_forward.1} parent=51 // loop_footer
            %s390 = sadd.s32 1, %s386
          $region58: #{rnn_decoder_forward.1} parent=51 // loop_footer_branch
            %385 = sbr.rel target = $region54
          $region59: #{rnn_decoder_forward.1} parent=51 // loop_exit
            _
        $region52: #{rnn_decoder_forward.1} parent=43 // pred_fallthru
          _
        // Predicated region
        $region75: #{rnn_decoder_forward.1} parent=43 // pred_check
          _
        $region76: #{rnn_decoder_forward.1} parent=43 // pred_check_branch
          %430 = sbr.rel (0) target = $region78
        $region77: #{rnn_decoder_forward.1} parent=43 // pred_region
          %431 = vsyncadd [#allocation4], 1024
        $region78: #{rnn_decoder_forward.1} parent=43 // pred_fallthru
          _
        %s432 = smul.u32 64, 1
        %s433 = sshll.u32 %s432, 4
        %434 = dma.done [#allocation4], %s433
      $region44: #{rnn_decoder_forward.1} parent=39 // pred_fallthru
        _
      %v435 = vld [vmem:[%s339] sm:$0xff]
      %v436 = vld [vmem:[%s339 + $0x8] sm:$0xff]
      %v437 = vld [vmem:[%s339 + $0x10] sm:$0xff]
      %v438 = vld [vmem:[%s339 + $0x18] sm:$0xff]
      %v439 = vld [vmem:[%s339 + $0x20] sm:$0xff]
      %v440 = vld [vmem:[%s339 + $0x28] sm:$0xff]
      %v441 = vld [vmem:[%s339 + $0x30] sm:$0xff]
      %v442 = vld [vmem:[%s339 + $0x38] sm:$0xff]
      %v443 = vld [vmem:[%s339 + $0x40] sm:$0xff]
      %v444 = vld [vmem:[%s339 + $0x48] sm:$0xff]
      %v445 = vld [vmem:[%s339 + $0x50] sm:$0xff]
      %v446 = vld [vmem:[%s339 + $0x58] sm:$0xff]
      %v447 = vld [vmem:[%s339 + $0x60] sm:$0xff]
      %v448 = vld [vmem:[%s339 + $0x68] sm:$0xff]
      %v449 = vld [vmem:[%s339 + $0x70] sm:$0xff]
      %v450 = vld [vmem:[%s339 + $0x78] sm:$0xff]
      %v451 = vld [vmem:[%s339 + $0x80] sm:$0xff]
      %v452 = vld [vmem:[%s339 + $0x88] sm:$0xff]
      %v453 = vld [vmem:[%s339 + $0x90] sm:$0xff]
      %v454 = vld [vmem:[%s339 + $0x98] sm:$0xff]
      %v455 = vld [vmem:[%s339 + $0xa0] sm:$0xff]
      %v456 = vld [vmem:[%s339 + $0xa8] sm:$0xff]
      %v457 = vld [vmem:[%s339 + $0xb0] sm:$0xff]
      %v458 = vld [vmem:[%s339 + $0xb8] sm:$0xff]
      %v459 = vld [vmem:[%s339 + $0xc0] sm:$0xff]
      %v460 = vld [vmem:[%s339 + $0xc8] sm:$0xff]
      %v461 = vld [vmem:[%s339 + $0xd0] sm:$0xff]
      %v462 = vld [vmem:[%s339 + $0xd8] sm:$0xff]
      %v463 = vld [vmem:[%s339 + $0xe0] sm:$0xff]
      %v464 = vld [vmem:[%s339 + $0xe8] sm:$0xff]
      %v465 = vld [vmem:[%s339 + $0xf0] sm:$0xff]
      %v466 = vld [vmem:[%s339 + $0xf8] sm:$0xff]
      %v467 = vld [vmem:[%s339 + $0x100] sm:$0xff]
      %v468 = vld [vmem:[%s339 + $0x108] sm:$0xff]
      %v469 = vld [vmem:[%s339 + $0x110] sm:$0xff]
      %v470 = vld [vmem:[%s339 + $0x118] sm:$0xff]
      %v471 = vld [vmem:[%s339 + $0x120] sm:$0xff]
      %v472 = vld [vmem:[%s339 + $0x128] sm:$0xff]
      %v473 = vld [vmem:[%s339 + $0x130] sm:$0xff]
      %v474 = vld [vmem:[%s339 + $0x138] sm:$0xff]
      %v475 = vld [vmem:[%s339 + $0x140] sm:$0xff]
      %v476 = vld [vmem:[%s339 + $0x148] sm:$0xff]
      %v477 = vld [vmem:[%s339 + $0x150] sm:$0xff]
      %v478 = vld [vmem:[%s339 + $0x158] sm:$0xff]
      %v479 = vld [vmem:[%s339 + $0x160] sm:$0xff]
      %v480 = vld [vmem:[%s339 + $0x168] sm:$0xff]
      %v481 = vld [vmem:[%s339 + $0x170] sm:$0xff]
      %v482 = vld [vmem:[%s339 + $0x178] sm:$0xff]
      %v483 = vld [vmem:[%s339 + $0x180] sm:$0xff]
      %v484 = vld [vmem:[%s339 + $0x188] sm:$0xff]
      %v485 = vld [vmem:[%s339 + $0x190] sm:$0xff]
      %v486 = vld [vmem:[%s339 + $0x198] sm:$0xff]
      %v487 = vld [vmem:[%s339 + $0x1a0] sm:$0xff]
      %v488 = vld [vmem:[%s339 + $0x1a8] sm:$0xff]
      %v489 = vld [vmem:[%s339 + $0x1b0] sm:$0xff]
      %v490 = vld [vmem:[%s339 + $0x1b8] sm:$0xff]
      %v491 = vld [vmem:[%s339 + $0x1c0] sm:$0xff]
      %v492 = vld [vmem:[%s339 + $0x1c8] sm:$0xff]
      %v493 = vld [vmem:[%s339 + $0x1d0] sm:$0xff]
      %v494 = vld [vmem:[%s339 + $0x1d8] sm:$0xff]
      %v495 = vld [vmem:[%s339 + $0x1e0] sm:$0xff]
      %v496 = vld [vmem:[%s339 + $0x1e8] sm:$0xff]
      %v497 = vld [vmem:[%s339 + $0x1f0] sm:$0xff]
      %v498 = vld [vmem:[%s339 + $0x1f8] sm:$0xff]
      %v499 = vld [vmem:[%s344] sm:$0xff]
      %v500 = vld [vmem:[%s344 + $0x8] sm:$0xff]
      %v501 = vld [vmem:[%s344 + $0x10] sm:$0xff]
      %v502 = vld [vmem:[%s344 + $0x18] sm:$0xff]
      %v503 = vld [vmem:[%s344 + $0x20] sm:$0xff]
      %v504 = vld [vmem:[%s344 + $0x28] sm:$0xff]
      %v505 = vld [vmem:[%s344 + $0x30] sm:$0xff]
      %v506 = vld [vmem:[%s344 + $0x38] sm:$0xff]
      %v507 = vld [vmem:[%s344 + $0x40] sm:$0xff]
      %v508 = vld [vmem:[%s344 + $0x48] sm:$0xff]
      %v509 = vld [vmem:[%s344 + $0x50] sm:$0xff]
      %v510 = vld [vmem:[%s344 + $0x58] sm:$0xff]
      %v511 = vld [vmem:[%s344 + $0x60] sm:$0xff]
      %v512 = vld [vmem:[%s344 + $0x68] sm:$0xff]
      %v513 = vld [vmem:[%s344 + $0x70] sm:$0xff]
      %v514 = vld [vmem:[%s344 + $0x78] sm:$0xff]
      %v515 = vld [vmem:[%s344 + $0x80] sm:$0xff]
      %v516 = vld [vmem:[%s344 + $0x88] sm:$0xff]
      %v517 = vld [vmem:[%s344 + $0x90] sm:$0xff]
      %v518 = vld [vmem:[%s344 + $0x98] sm:$0xff]
      %v519 = vld [vmem:[%s344 + $0xa0] sm:$0xff]
      %v520 = vld [vmem:[%s344 + $0xa8] sm:$0xff]
      %v521 = vld [vmem:[%s344 + $0xb0] sm:$0xff]
      %v522 = vld [vmem:[%s344 + $0xb8] sm:$0xff]
      %v523 = vld [vmem:[%s344 + $0xc0] sm:$0xff]
      %v524 = vld [vmem:[%s344 + $0xc8] sm:$0xff]
      %v525 = vld [vmem:[%s344 + $0xd0] sm:$0xff]
      %v526 = vld [vmem:[%s344 + $0xd8] sm:$0xff]
      %v527 = vld [vmem:[%s344 + $0xe0] sm:$0xff]
      %v528 = vld [vmem:[%s344 + $0xe8] sm:$0xff]
      %v529 = vld [vmem:[%s344 + $0xf0] sm:$0xff]
      %v530 = vld [vmem:[%s344 + $0xf8] sm:$0xff]
      %v531 = vld [vmem:[%s344 + $0x100] sm:$0xff]
      %v532 = vld [vmem:[%s344 + $0x108] sm:$0xff]
      %v533 = vld [vmem:[%s344 + $0x110] sm:$0xff]
      %v534 = vld [vmem:[%s344 + $0x118] sm:$0xff]
      %v535 = vld [vmem:[%s344 + $0x120] sm:$0xff]
      %v536 = vld [vmem:[%s344 + $0x128] sm:$0xff]
      %v537 = vld [vmem:[%s344 + $0x130] sm:$0xff]
      %v538 = vld [vmem:[%s344 + $0x138] sm:$0xff]
      %v539 = vld [vmem:[%s344 + $0x140] sm:$0xff]
      %v540 = vld [vmem:[%s344 + $0x148] sm:$0xff]
      %v541 = vld [vmem:[%s344 + $0x150] sm:$0xff]
      %v542 = vld [vmem:[%s344 + $0x158] sm:$0xff]
      %v543 = vld [vmem:[%s344 + $0x160] sm:$0xff]
      %v544 = vld [vmem:[%s344 + $0x168] sm:$0xff]
      %v545 = vld [vmem:[%s344 + $0x170] sm:$0xff]
      %v546 = vld [vmem:[%s344 + $0x178] sm:$0xff]
      %v547 = vld [vmem:[%s344 + $0x180] sm:$0xff]
      %v548 = vld [vmem:[%s344 + $0x188] sm:$0xff]
      %v549 = vld [vmem:[%s344 + $0x190] sm:$0xff]
      %v550 = vld [vmem:[%s344 + $0x198] sm:$0xff]
      %v551 = vld [vmem:[%s344 + $0x1a0] sm:$0xff]
      %v552 = vld [vmem:[%s344 + $0x1a8] sm:$0xff]
      %v553 = vld [vmem:[%s344 + $0x1b0] sm:$0xff]
      %v554 = vld [vmem:[%s344 + $0x1b8] sm:$0xff]
      %v555 = vld [vmem:[%s344 + $0x1c0] sm:$0xff]
      %v556 = vld [vmem:[%s344 + $0x1c8] sm:$0xff]
      %v557 = vld [vmem:[%s344 + $0x1d0] sm:$0xff]
      %v558 = vld [vmem:[%s344 + $0x1d8] sm:$0xff]
      %v559 = vld [vmem:[%s344 + $0x1e0] sm:$0xff]
      %v560 = vld [vmem:[%s344 + $0x1e8] sm:$0xff]
      %v561 = vld [vmem:[%s344 + $0x1f0] sm:$0xff]
      %v562 = vld [vmem:[%s344 + $0x1f8] sm:$0xff]
      %v563 = vld [vmem:[%s348] sm:$0xf]
      %v564 = vld [vmem:[#allocation2] sm:$0xff]
      %v565 = vld [vmem:[#allocation2 + $0x8] sm:$0xff]
      %v566 = vld [vmem:[#allocation2 + $0x10] sm:$0xff]
      %v567 = vld [vmem:[#allocation2 + $0x18] sm:$0xff]
      %v569 = vlaneseq
      %v570 = vshrl.u32 %v569, 7
      %v571 = vsub.s32 0, %v570
      %v572 = vrot.slane %v563, %v571
      %v573 = vlaneseq
      %v574 = vshrl.u32 %v573, 7
      %v575 = vsub.s32 1, %v574
      %v576 = vrot.slane %v563, %v575
      %v577 = vlaneseq
      %v578 = vshrl.u32 %v577, 7
      %v579 = vsub.s32 2, %v578
      %v580 = vrot.slane %v563, %v579
      %v581 = vlaneseq
      %v582 = vshrl.u32 %v581, 7
      %v583 = vsub.s32 3, %v582
      %v584 = vrot.slane %v563, %v583
      %589 = vmatprep.subr.mxu0 %v436
      %590 = vmatpush1.msra.mxu0 %v435
      %591 = vmatprep.subr.mxu0 %v440
      %592 = vmatpush1.msra.mxu0 %v439
      %593 = vmatprep.subr.mxu0 %v444
      %594 = vmatpush1.msra.mxu0 %v443
      %595 = vmatprep.subr.mxu0 %v448
      %596 = vmatpush1.msra.mxu0 %v447
      %597 = vmatprep.subr.mxu0 %v452
      %598 = vmatpush1.msra.mxu0 %v451
      %599 = vmatprep.subr.mxu0 %v456
      %600 = vmatpush1.msra.mxu0 %v455
      %601 = vmatprep.subr.mxu0 %v460
      %602 = vmatpush1.msra.mxu0 %v459
      %603 = vmatprep.subr.mxu0 %v464
      %604 = vmatpush1.msra.mxu0 %v463
      %605 = vmatprep.subr.mxu0 %v468
      %606 = vmatpush1.msra.mxu0 %v467
      %607 = vmatprep.subr.mxu0 %v472
      %608 = vmatpush1.msra.mxu0 %v471
      %609 = vmatprep.subr.mxu0 %v476
      %610 = vmatpush1.msra.mxu0 %v475
      %611 = vmatprep.subr.mxu0 %v480
      %612 = vmatpush1.msra.mxu0 %v479
      %613 = vmatprep.subr.mxu0 %v484
      %614 = vmatpush1.msra.mxu0 %v483
      %615 = vmatprep.subr.mxu0 %v488
      %616 = vmatpush1.msra.mxu0 %v487
      %617 = vmatprep.subr.mxu0 %v492
      %618 = vmatpush1.msra.mxu0 %v491
      %619 = vmatprep.subr.mxu0 %v496
      %620 = vmatpush1.msra.mxu0 %v495
      %621 = vmatprep.subr.mxu0 0.0
      %622 = vmatpush1.msra.mxu0 0.0
      %623 = vmatprep.subr.mxu0 0.0
      %624 = vmatpush1.msra.mxu0 0.0
      %625 = vmatprep.subr.mxu0 0.0
      %626 = vmatpush1.msra.mxu0 0.0
      %627 = vmatprep.subr.mxu0 0.0
      %628 = vmatpush1.msra.mxu0 0.0
      %629 = vmatprep.subr.mxu0 0.0
      %630 = vmatpush1.msra.mxu0 0.0
      %631 = vmatprep.subr.mxu0 0.0
      %632 = vmatpush1.msra.mxu0 0.0
      %633 = vmatprep.subr.mxu0 0.0
      %634 = vmatpush1.msra.mxu0 0.0
      %635 = vmatprep.subr.mxu0 0.0
      %636 = vmatpush1.msra.mxu0 0.0
      %637 = vmatprep.subr.mxu0 0.0
      %638 = vmatpush1.msra.mxu0 0.0
      %639 = vmatprep.subr.mxu0 0.0
      %640 = vmatpush1.msra.mxu0 0.0
      %641 = vmatprep.subr.mxu0 0.0
      %642 = vmatpush1.msra.mxu0 0.0
      %643 = vmatprep.subr.mxu0 0.0
      %644 = vmatpush1.msra.mxu0 0.0
      %645 = vmatprep.subr.mxu0 0.0
      %646 = vmatpush1.msra.mxu0 0.0
      %647 = vmatprep.subr.mxu0 0.0
      %648 = vmatpush1.msra.mxu0 0.0
      %649 = vmatprep.subr.mxu0 0.0
      %650 = vmatpush1.msra.mxu0 0.0
      %651 = vmatprep.subr.mxu0 0.0
      %652 = vmatpush1.msra.mxu0 0.0
      %653 = vmatprep.mubr.f32.mxu0 0.0
      %654 = vmatmul.mubr.f32.gmra.mrb[0].mxu0 %v564
      %v655 = vpop.f32.mrb[0].mxu0
      %v656 = vadd.f32 %v572, %v655
      %v657 = vpop.f32.mrb[0].mxu0
      %v658 = vadd.f32 %v576, %v657
      %659 = vmatprep.mubr.f32.mxu0 0.0
      %660 = vmatmul.mubr.f32.gmra.mrb[0].mxu0 %v565
      %v661 = vpop.f32.mrb[0].mxu0
      %v662 = vadd.f32 %v572, %v661
      %v663 = vpop.f32.mrb[0].mxu0
      %v664 = vadd.f32 %v576, %v663
      %665 = vmatprep.mubr.f32.mxu0 0.0
      %666 = vmatmul.mubr.f32.gmra.mrb[0].mxu0 %v566
      %v667 = vpop.f32.mrb[0].mxu0
      %v668 = vadd.f32 %v572, %v667
      %v669 = vpop.f32.mrb[0].mxu0
      %v670 = vadd.f32 %v576, %v669
      %671 = vmatprep.mubr.f32.mxu0 0.0
      %672 = vmatmul.mubr.f32.gmra.mrb[0].mxu0 %v567
      %v673 = vpop.f32.mrb[0].mxu0
      %v674 = vadd.f32 %v572, %v673
      %v675 = vpop.f32.mrb[0].mxu0
      %v676 = vadd.f32 %v576, %v675
      %677 = vdwg.mxu0
      %678 = vmatprep.subr.mxu0 %v438
      %679 = vmatpush1.msra.mxu0 %v437
      %680 = vmatprep.subr.mxu0 %v442
      %681 = vmatpush1.msra.mxu0 %v441
      %682 = vmatprep.subr.mxu0 %v446
      %683 = vmatpush1.msra.mxu0 %v445
      %684 = vmatprep.subr.mxu0 %v450
      %685 = vmatpush1.msra.mxu0 %v449
      %686 = vmatprep.subr.mxu0 %v454
      %687 = vmatpush1.msra.mxu0 %v453
      %688 = vmatprep.subr.mxu0 %v458
      %689 = vmatpush1.msra.mxu0 %v457
      %690 = vmatprep.subr.mxu0 %v462
      %691 = vmatpush1.msra.mxu0 %v461
      %692 = vmatprep.subr.mxu0 %v466
      %693 = vmatpush1.msra.mxu0 %v465
      %694 = vmatprep.subr.mxu0 %v470
      %695 = vmatpush1.msra.mxu0 %v469
      %696 = vmatprep.subr.mxu0 %v474
      %697 = vmatpush1.msra.mxu0 %v473
      %698 = vmatprep.subr.mxu0 %v478
      %699 = vmatpush1.msra.mxu0 %v477
      %700 = vmatprep.subr.mxu0 %v482
      %701 = vmatpush1.msra.mxu0 %v481
      %702 = vmatprep.subr.mxu0 %v486
      %703 = vmatpush1.msra.mxu0 %v485
      %704 = vmatprep.subr.mxu0 %v490
      %705 = vmatpush1.msra.mxu0 %v489
      %706 = vmatprep.subr.mxu0 %v494
      %707 = vmatpush1.msra.mxu0 %v493
      %708 = vmatprep.subr.mxu0 %v498
      %709 = vmatpush1.msra.mxu0 %v497
      %710 = vmatprep.subr.mxu0 0.0
      %711 = vmatpush1.msra.mxu0 0.0
      %712 = vmatprep.subr.mxu0 0.0
      %713 = vmatpush1.msra.mxu0 0.0
      %714 = vmatprep.subr.mxu0 0.0
      %715 = vmatpush1.msra.mxu0 0.0
      %716 = vmatprep.subr.mxu0 0.0
      %717 = vmatpush1.msra.mxu0 0.0
      %718 = vmatprep.subr.mxu0 0.0
      %719 = vmatpush1.msra.mxu0 0.0
      %720 = vmatprep.subr.mxu0 0.0
      %721 = vmatpush1.msra.mxu0 0.0
      %722 = vmatprep.subr.mxu0 0.0
      %723 = vmatpush1.msra.mxu0 0.0
      %724 = vmatprep.subr.mxu0 0.0
      %725 = vmatpush1.msra.mxu0 0.0
      %726 = vmatprep.subr.mxu0 0.0
      %727 = vmatpush1.msra.mxu0 0.0
      %728 = vmatprep.subr.mxu0 0.0
      %729 = vmatpush1.msra.mxu0 0.0
      %730 = vmatprep.subr.mxu0 0.0
      %731 = vmatpush1.msra.mxu0 0.0
      %732 = vmatprep.subr.mxu0 0.0
      %733 = vmatpush1.msra.mxu0 0.0
      %734 = vmatprep.subr.mxu0 0.0
      %735 = vmatpush1.msra.mxu0 0.0
      %736 = vmatprep.subr.mxu0 0.0
      %737 = vmatpush1.msra.mxu0 0.0
      %738 = vmatprep.subr.mxu0 0.0
      %739 = vmatpush1.msra.mxu0 0.0
      %740 = vmatprep.subr.mxu0 0.0
      %741 = vmatpush1.msra.mxu0 0.0
      %742 = vmatprep.mubr.f32.mxu0 0.0
      %743 = vmatmul.mubr.f32.gmra.mrb[0].mxu0 %v564
      %v744 = vpop.f32.mrb[0].mxu0
      %v745 = vadd.f32 %v580, %v744
      %v746 = vpop.f32.mrb[0].mxu0
      %v747 = vadd.f32 %v584, %v746
      %748 = vmatprep.mubr.f32.mxu0 0.0
      %749 = vmatmul.mubr.f32.gmra.mrb[0].mxu0 %v565
      %v750 = vpop.f32.mrb[0].mxu0
      %v751 = vadd.f32 %v580, %v750
      %v752 = vpop.f32.mrb[0].mxu0
      %v753 = vadd.f32 %v584, %v752
      %754 = vmatprep.mubr.f32.mxu0 0.0
      %755 = vmatmul.mubr.f32.gmra.mrb[0].mxu0 %v566
      %v756 = vpop.f32.mrb[0].mxu0
      %v757 = vadd.f32 %v580, %v756
      %v758 = vpop.f32.mrb[0].mxu0
      %v759 = vadd.f32 %v584, %v758
      %760 = vmatprep.mubr.f32.mxu0 0.0
      %761 = vmatmul.mubr.f32.gmra.mrb[0].mxu0 %v567
      %v762 = vpop.f32.mrb[0].mxu0
      %v763 = vadd.f32 %v580, %v762
      %v764 = vpop.f32.mrb[0].mxu0
      %v765 = vadd.f32 %v584, %v764
      %766 = vdwg.mxu0
      %767 = vst [vmem:[#allocation3] sm:$0xff] %v656
      %768 = vst [vmem:[#allocation3 + $0x8] sm:$0xff] %v658
      %769 = vst [vmem:[#allocation3 + $0x10] sm:$0xff] %v745
      %770 = vst [vmem:[#allocation3 + $0x18] sm:$0xff] %v747
      %771 = vst [vmem:[#allocation3 + $0x20] sm:$0xff] %v662
      %772 = vst [vmem:[#allocation3 + $0x28] sm:$0xff] %v664
      %773 = vst [vmem:[#allocation3 + $0x30] sm:$0xff] %v751
      %774 = vst [vmem:[#allocation3 + $0x38] sm:$0xff] %v753
      %775 = vst [vmem:[#allocation3 + $0x40] sm:$0xff] %v668
      %776 = vst [vmem:[#allocation3 + $0x48] sm:$0xff] %v670
      %777 = vst [vmem:[#allocation3 + $0x50] sm:$0xff] %v757
      %778 = vst [vmem:[#allocation3 + $0x58] sm:$0xff] %v759
      %779 = vst [vmem:[#allocation3 + $0x60] sm:$0xff] %v674
      %780 = vst [vmem:[#allocation3 + $0x68] sm:$0xff] %v676
      %781 = vst [vmem:[#allocation3 + $0x70] sm:$0xff] %v763
      %782 = vst [vmem:[#allocation3 + $0x78] sm:$0xff] %v765
      %s783 = smul.u32 0, 4
      %s784 = smul.addr %s783, 8
      %s785 = scalar_lea.vmem [#allocation3], %s784
      %v786 = vld [vmem:[%s785] sm:$0xff]
      %v787 = vld [vmem:[%s785 + $0x8] sm:$0xff]
      %v788 = vld [vmem:[%s785 + $0x10] sm:$0xff]
      %v789 = vld [vmem:[%s785 + $0x18] sm:$0xff]
      %790 = vmatprep.subr.mxu0 %v500
      %791 = vmatpush1.msra.mxu0 %v499
      %792 = vmatprep.subr.mxu0 %v504
      %793 = vmatpush1.msra.mxu0 %v503
      %794 = vmatprep.subr.mxu0 %v508
      %795 = vmatpush1.msra.mxu0 %v507
      %796 = vmatprep.subr.mxu0 %v512
      %797 = vmatpush1.msra.mxu0 %v511
      %798 = vmatprep.subr.mxu0 %v516
      %799 = vmatpush1.msra.mxu0 %v515
      %800 = vmatprep.subr.mxu0 %v520
      %801 = vmatpush1.msra.mxu0 %v519
      %802 = vmatprep.subr.mxu0 %v524
      %803 = vmatpush1.msra.mxu0 %v523
      %804 = vmatprep.subr.mxu0 %v528
      %805 = vmatpush1.msra.mxu0 %v527
      %806 = vmatprep.subr.mxu0 %v532
      %807 = vmatpush1.msra.mxu0 %v531
      %808 = vmatprep.subr.mxu0 %v536
      %809 = vmatpush1.msra.mxu0 %v535
      %810 = vmatprep.subr.mxu0 %v540
      %811 = vmatpush1.msra.mxu0 %v539
      %812 = vmatprep.subr.mxu0 %v544
      %813 = vmatpush1.msra.mxu0 %v543
      %814 = vmatprep.subr.mxu0 %v548
      %815 = vmatpush1.msra.mxu0 %v547
      %816 = vmatprep.subr.mxu0 %v552
      %817 = vmatpush1.msra.mxu0 %v551
      %818 = vmatprep.subr.mxu0 %v556
      %819 = vmatpush1.msra.mxu0 %v555
      %820 = vmatprep.subr.mxu0 %v560
      %821 = vmatpush1.msra.mxu0 %v559
      %822 = vmatprep.subr.mxu0 0.0
      %823 = vmatpush1.msra.mxu0 0.0
      %824 = vmatprep.subr.mxu0 0.0
      %825 = vmatpush1.msra.mxu0 0.0
      %826 = vmatprep.subr.mxu0 0.0
      %827 = vmatpush1.msra.mxu0 0.0
      %828 = vmatprep.subr.mxu0 0.0
      %829 = vmatpush1.msra.mxu0 0.0
      %830 = vmatprep.subr.mxu0 0.0
      %831 = vmatpush1.msra.mxu0 0.0
      %832 = vmatprep.subr.mxu0 0.0
      %833 = vmatpush1.msra.mxu0 0.0
      %834 = vmatprep.subr.mxu0 0.0
      %835 = vmatpush1.msra.mxu0 0.0
      %836 = vmatprep.subr.mxu0 0.0
      %837 = vmatpush1.msra.mxu0 0.0
      %838 = vmatprep.subr.mxu0 0.0
      %839 = vmatpush1.msra.mxu0 0.0
      %840 = vmatprep.subr.mxu0 0.0
      %841 = vmatpush1.msra.mxu0 0.0
      %842 = vmatprep.subr.mxu0 0.0
      %843 = vmatpush1.msra.mxu0 0.0
      %844 = vmatprep.subr.mxu0 0.0
      %845 = vmatpush1.msra.mxu0 0.0
      %846 = vmatprep.subr.mxu0 0.0
      %847 = vmatpush1.msra.mxu0 0.0
      %848 = vmatprep.subr.mxu0 0.0
      %849 = vmatpush1.msra.mxu0 0.0
      %850 = vmatprep.subr.mxu0 0.0
      %851 = vmatpush1.msra.mxu0 0.0
      %852 = vmatprep.subr.mxu0 0.0
      %853 = vmatpush1.msra.mxu0 0.0
      %854 = vmatprep.mubr.f32.mxu0 0.0
      %855 = vmatmul.mubr.f32.gmra.mrb[0].mxu0 0.0
      %v856 = vpop.f32.mrb[0].mxu0
      %v857 = vadd.f32 0.0, %v856
      %v858 = vpop.f32.mrb[0].mxu0
      %v859 = vadd.f32 0.0, %v858
      %860 = vdwg.mxu0
      %861 = vmatprep.subr.mxu0 %v502
      %862 = vmatpush1.msra.mxu0 %v501
      %863 = vmatprep.subr.mxu0 %v506
      %864 = vmatpush1.msra.mxu0 %v505
      %865 = vmatprep.subr.mxu0 %v510
      %866 = vmatpush1.msra.mxu0 %v509
      %867 = vmatprep.subr.mxu0 %v514
      %868 = vmatpush1.msra.mxu0 %v513
      %869 = vmatprep.subr.mxu0 %v518
      %870 = vmatpush1.msra.mxu0 %v517
      %871 = vmatprep.subr.mxu0 %v522
      %872 = vmatpush1.msra.mxu0 %v521
      %873 = vmatprep.subr.mxu0 %v526
      %874 = vmatpush1.msra.mxu0 %v525
      %875 = vmatprep.subr.mxu0 %v530
      %876 = vmatpush1.msra.mxu0 %v529
      %877 = vmatprep.subr.mxu0 %v534
      %878 = vmatpush1.msra.mxu0 %v533
      %879 = vmatprep.subr.mxu0 %v538
      %880 = vmatpush1.msra.mxu0 %v537
      %881 = vmatprep.subr.mxu0 %v542
      %882 = vmatpush1.msra.mxu0 %v541
      %883 = vmatprep.subr.mxu0 %v546
      %884 = vmatpush1.msra.mxu0 %v545
      %885 = vmatprep.subr.mxu0 %v550
      %886 = vmatpush1.msra.mxu0 %v549
      %887 = vmatprep.subr.mxu0 %v554
      %888 = vmatpush1.msra.mxu0 %v553
      %889 = vmatprep.subr.mxu0 %v558
      %890 = vmatpush1.msra.mxu0 %v557
      %891 = vmatprep.subr.mxu0 %v562
      %892 = vmatpush1.msra.mxu0 %v561
      %893 = vmatprep.subr.mxu0 0.0
      %894 = vmatpush1.msra.mxu0 0.0
      %895 = vmatprep.subr.mxu0 0.0
      %896 = vmatpush1.msra.mxu0 0.0
      %897 = vmatprep.subr.mxu0 0.0
      %898 = vmatpush1.msra.mxu0 0.0
      %899 = vmatprep.subr.mxu0 0.0
      %900 = vmatpush1.msra.mxu0 0.0
      %901 = vmatprep.subr.mxu0 0.0
      %902 = vmatpush1.msra.mxu0 0.0
      %903 = vmatprep.subr.mxu0 0.0
      %904 = vmatpush1.msra.mxu0 0.0
      %905 = vmatprep.subr.mxu0 0.0
      %906 = vmatpush1.msra.mxu0 0.0
      %907 = vmatprep.subr.mxu0 0.0
      %908 = vmatpush1.msra.mxu0 0.0
      %909 = vmatprep.subr.mxu0 0.0
      %910 = vmatpush1.msra.mxu0 0.0
      %911 = vmatprep.subr.mxu0 0.0
      %912 = vmatpush1.msra.mxu0 0.0
      %913 = vmatprep.subr.mxu0 0.0
      %914 = vmatpush1.msra.mxu0 0.0
      %915 = vmatprep.subr.mxu0 0.0
      %916 = vmatpush1.msra.mxu0 0.0
      %917 = vmatprep.subr.mxu0 0.0
      %918 = vmatpush1.msra.mxu0 0.0
      %919 = vmatprep.subr.mxu0 0.0
      %920 = vmatpush1.msra.mxu0 0.0
      %921 = vmatprep.subr.mxu0 0.0
      %922 = vmatpush1.msra.mxu0 0.0
      %923 = vmatprep.subr.mxu0 0.0
      %924 = vmatpush1.msra.mxu0 0.0
      %925 = vmatprep.mubr.f32.mxu0 0.0
      %926 = vmatmul.mubr.f32.gmra.mrb[0].mxu0 0.0
      %v927 = vpop.f32.mrb[0].mxu0
      %v928 = vadd.f32 0.0, %v927
      %v929 = vpop.f32.mrb[0].mxu0
      %v930 = vadd.f32 0.0, %v929
      %931 = vdwg.mxu0
      %v932 = vadd.f32 %v786, %v857
      %v933 = vadd.f32 %v787, %v859
      %v934 = vadd.f32 %v788, %v928
      %v935 = vadd.f32 %v789, %v930
      %v936 = vxor.u32 %v932, 2147483648
      %v937 = vmul.f32 %v936, 1.442695
      %v938 = vpow.pop %v937
      %v939 = vadd.f32 %v938, 1.0
      %v940 = vrcp.pop %v939
      %v941 = vmul.f32 1.0, %v940
      %v942 = vxor.u32 %v933, 2147483648
      %v943 = vmul.f32 %v942, 1.442695
      %v944 = vpow.pop %v943
      %v945 = vadd.f32 %v944, 1.0
      %v946 = vrcp.pop %v945
      %v947 = vmul.f32 1.0, %v946
      %v948 = vtanh.pop %v934
      %v949 = vxor.u32 %v935, 2147483648
      %v950 = vmul.f32 %v949, 1.442695
      %v951 = vpow.pop %v950
      %v952 = vadd.f32 %v951, 1.0
      %v953 = vrcp.pop %v952
      %v954 = vmul.f32 1.0, %v953
      %v955 = vmul.f32 %v947, 0.0
      %v956 = vmul.f32 %v941, %v948
      %v957 = vadd.f32 %v955, %v956
      %v958 = vtanh.pop %v957
      %v959 = vmul.f32 %v954, %v958
      %960 = vst [vmem:[#allocation2] sm:$0xff] %v959
      %s961 = smul.u32 1, 4
      %s962 = smul.addr %s961, 8
      %s963 = scalar_lea.vmem [#allocation3], %s962
      %v964 = vld [vmem:[%s963] sm:$0xff]
      %v965 = vld [vmem:[%s963 + $0x8] sm:$0xff]
      %v966 = vld [vmem:[%s963 + $0x10] sm:$0xff]
      %v967 = vld [vmem:[%s963 + $0x18] sm:$0xff]
      %968 = vmatprep.subr.mxu0 %v500
      %969 = vmatpush1.msra.mxu0 %v499
      %970 = vmatprep.subr.mxu0 %v504
      %971 = vmatpush1.msra.mxu0 %v503
      %972 = vmatprep.subr.mxu0 %v508
      %973 = vmatpush1.msra.mxu0 %v507
      %974 = vmatprep.subr.mxu0 %v512
      %975 = vmatpush1.msra.mxu0 %v511
      %976 = vmatprep.subr.mxu0 %v516
      %977 = vmatpush1.msra.mxu0 %v515
      %978 = vmatprep.subr.mxu0 %v520
      %979 = vmatpush1.msra.mxu0 %v519
      %980 = vmatprep.subr.mxu0 %v524
      %981 = vmatpush1.msra.mxu0 %v523
      %982 = vmatprep.subr.mxu0 %v528
      %983 = vmatpush1.msra.mxu0 %v527
      %984 = vmatprep.subr.mxu0 %v532
      %985 = vmatpush1.msra.mxu0 %v531
      %986 = vmatprep.subr.mxu0 %v536
      %987 = vmatpush1.msra.mxu0 %v535
      %988 = vmatprep.subr.mxu0 %v540
      %989 = vmatpush1.msra.mxu0 %v539
      %990 = vmatprep.subr.mxu0 %v544
      %991 = vmatpush1.msra.mxu0 %v543
      %992 = vmatprep.subr.mxu0 %v548
      %993 = vmatpush1.msra.mxu0 %v547
      %994 = vmatprep.subr.mxu0 %v552
      %995 = vmatpush1.msra.mxu0 %v551
      %996 = vmatprep.subr.mxu0 %v556
      %997 = vmatpush1.msra.mxu0 %v555
      %998 = vmatprep.subr.mxu0 %v560
      %999 = vmatpush1.msra.mxu0 %v559
      %1000 = vmatprep.subr.mxu0 0.0
      %1001 = vmatpush1.msra.mxu0 0.0
      %1002 = vmatprep.subr.mxu0 0.0
      %1003 = vmatpush1.msra.mxu0 0.0
      %1004 = vmatprep.subr.mxu0 0.0
      %1005 = vmatpush1.msra.mxu0 0.0
      %1006 = vmatprep.subr.mxu0 0.0
      %1007 = vmatpush1.msra.mxu0 0.0
      %1008 = vmatprep.subr.mxu0 0.0
      %1009 = vmatpush1.msra.mxu0 0.0
      %1010 = vmatprep.subr.mxu0 0.0
      %1011 = vmatpush1.msra.mxu0 0.0
      %1012 = vmatprep.subr.mxu0 0.0
      %1013 = vmatpush1.msra.mxu0 0.0
      %1014 = vmatprep.subr.mxu0 0.0
      %1015 = vmatpush1.msra.mxu0 0.0
      %1016 = vmatprep.subr.mxu0 0.0
      %1017 = vmatpush1.msra.mxu0 0.0
      %1018 = vmatprep.subr.mxu0 0.0
      %1019 = vmatpush1.msra.mxu0 0.0
      %1020 = vmatprep.subr.mxu0 0.0
      %1021 = vmatpush1.msra.mxu0 0.0
      %1022 = vmatprep.subr.mxu0 0.0
      %1023 = vmatpush1.msra.mxu0 0.0
      %1024 = vmatprep.subr.mxu0 0.0
      %1025 = vmatpush1.msra.mxu0 0.0
      %1026 = vmatprep.subr.mxu0 0.0
      %1027 = vmatpush1.msra.mxu0 0.0
      %1028 = vmatprep.subr.mxu0 0.0
      %1029 = vmatpush1.msra.mxu0 0.0
      %1030 = vmatprep.subr.mxu0 0.0
      %1031 = vmatpush1.msra.mxu0 0.0
      %1032 = vmatprep.mubr.f32.mxu0 0.0
      %1033 = vmatmul.mubr.f32.gmra.mrb[0].mxu0 %v959
      %v1034 = vpop.f32.mrb[0].mxu0
      %v1035 = vadd.f32 0.0, %v1034
      %v1036 = vpop.f32.mrb[0].mxu0
      %v1037 = vadd.f32 0.0, %v1036
      %1038 = vdwg.mxu0
      %1039 = vmatprep.subr.mxu0 %v502
      %1040 = vmatpush1.msra.mxu0 %v501
      %1041 = vmatprep.subr.mxu0 %v506
      %1042 = vmatpush1.msra.mxu0 %v505
      %1043 = vmatprep.subr.mxu0 %v510
      %1044 = vmatpush1.msra.mxu0 %v509
      %1045 = vmatprep.subr.mxu0 %v514
      %1046 = vmatpush1.msra.mxu0 %v513
      %1047 = vmatprep.subr.mxu0 %v518
      %1048 = vmatpush1.msra.mxu0 %v517
      %1049 = vmatprep.subr.mxu0 %v522
      %1050 = vmatpush1.msra.mxu0 %v521
      %1051 = vmatprep.subr.mxu0 %v526
      %1052 = vmatpush1.msra.mxu0 %v525
      %1053 = vmatprep.subr.mxu0 %v530
      %1054 = vmatpush1.msra.mxu0 %v529
      %1055 = vmatprep.subr.mxu0 %v534
      %1056 = vmatpush1.msra.mxu0 %v533
      %1057 = vmatprep.subr.mxu0 %v538
      %1058 = vmatpush1.msra.mxu0 %v537
      %1059 = vmatprep.subr.mxu0 %v542
      %1060 = vmatpush1.msra.mxu0 %v541
      %1061 = vmatprep.subr.mxu0 %v546
      %1062 = vmatpush1.msra.mxu0 %v545
      %1063 = vmatprep.subr.mxu0 %v550
      %1064 = vmatpush1.msra.mxu0 %v549
      %1065 = vmatprep.subr.mxu0 %v554
      %1066 = vmatpush1.msra.mxu0 %v553
      %1067 = vmatprep.subr.mxu0 %v558
      %1068 = vmatpush1.msra.mxu0 %v557
      %1069 = vmatprep.subr.mxu0 %v562
      %1070 = vmatpush1.msra.mxu0 %v561
      %1071 = vmatprep.subr.mxu0 0.0
      %1072 = vmatpush1.msra.mxu0 0.0
      %1073 = vmatprep.subr.mxu0 0.0
      %1074 = vmatpush1.msra.mxu0 0.0
      %1075 = vmatprep.subr.mxu0 0.0
      %1076 = vmatpush1.msra.mxu0 0.0
      %1077 = vmatprep.subr.mxu0 0.0
      %1078 = vmatpush1.msra.mxu0 0.0
      %1079 = vmatprep.subr.mxu0 0.0
      %1080 = vmatpush1.msra.mxu0 0.0
      %1081 = vmatprep.subr.mxu0 0.0
      %1082 = vmatpush1.msra.mxu0 0.0
      %1083 = vmatprep.subr.mxu0 0.0
      %1084 = vmatpush1.msra.mxu0 0.0
      %1085 = vmatprep.subr.mxu0 0.0
      %1086 = vmatpush1.msra.mxu0 0.0
      %1087 = vmatprep.subr.mxu0 0.0
      %1088 = vmatpush1.msra.mxu0 0.0
      %1089 = vmatprep.subr.mxu0 0.0
      %1090 = vmatpush1.msra.mxu0 0.0
      %1091 = vmatprep.subr.mxu0 0.0
      %1092 = vmatpush1.msra.mxu0 0.0
      %1093 = vmatprep.subr.mxu0 0.0
      %1094 = vmatpush1.msra.mxu0 0.0
      %1095 = vmatprep.subr.mxu0 0.0
      %1096 = vmatpush1.msra.mxu0 0.0
      %1097 = vmatprep.subr.mxu0 0.0
      %1098 = vmatpush1.msra.mxu0 0.0
      %1099 = vmatprep.subr.mxu0 0.0
      %1100 = vmatpush1.msra.mxu0 0.0
      %1101 = vmatprep.subr.mxu0 0.0
      %1102 = vmatpush1.msra.mxu0 0.0
      %1103 = vmatprep.mubr.f32.mxu0 0.0
      %1104 = vmatmul.mubr.f32.gmra.mrb[0].mxu0 %v959
      %v1105 = vpop.f32.mrb[0].mxu0
      %v1106 = vadd.f32 0.0, %v1105
      %v1107 = vpop.f32.mrb[0].mxu0
      %v1108 = vadd.f32 0.0, %v1107
      %1109 = vdwg.mxu0
      %v1110 = vadd.f32 %v964, %v1035
      %v1111 = vadd.f32 %v965, %v1037
      %v1112 = vadd.f32 %v966, %v1106
      %v1113 = vadd.f32 %v967, %v1108
      %v1114 = vxor.u32 %v1110, 2147483648
      %v1115 = vmul.f32 %v1114, 1.442695
      %v1116 = vpow.pop %v1115
      %v1117 = vadd.f32 %v1116, 1.0
      %v1118 = vrcp.pop %v1117
      %v1119 = vmul.f32 1.0, %v1118
      %v1120 = vxor.u32 %v1111, 2147483648
      %v1121 = vmul.f32 %v1120, 1.442695
      %v1122 = vpow.pop %v1121
      %v1123 = vadd.f32 %v1122, 1.0
      %v1124 = vrcp.pop %v1123
      %v1125 = vmul.f32 1.0, %v1124
      %v1126 = vtanh.pop %v1112
      %v1127 = vxor.u32 %v1113, 2147483648
      %v1128 = vmul.f32 %v1127, 1.442695
      %v1129 = vpow.pop %v1128
      %v1130 = vadd.f32 %v1129, 1.0
      %v1131 = vrcp.pop %v1130
      %v1132 = vmul.f32 1.0, %v1131
      %v1133 = vmul.f32 %v1125, %v957
      %v1134 = vmul.f32 %v1119, %v1126
      %v1135 = vadd.f32 %v1133, %v1134
      %v1136 = vtanh.pop %v1135
      %v1137 = vmul.f32 %v1132, %v1136
      %s1138 = scalar_lea.vmem [#allocation2], 8
      %1139 = vst [vmem:[%s1138] sm:$0xff] %v1137
      %s1140 = smul.u32 2, 4
      %s1141 = smul.addr %s1140, 8
      %s1142 = scalar_lea.vmem [#allocation3], %s1141
      %v1143 = vld [vmem:[%s1142] sm:$0xff]
      %v1144 = vld [vmem:[%s1142 + $0x8] sm:$0xff]
      %v1145 = vld [vmem:[%s1142 + $0x10] sm:$0xff]
      %v1146 = vld [vmem:[%s1142 + $0x18] sm:$0xff]
      %1147 = vmatprep.subr.mxu0 %v500
      %1148 = vmatpush1.msra.mxu0 %v499
      %1149 = vmatprep.subr.mxu0 %v504
      %1150 = vmatpush1.msra.mxu0 %v503
      %1151 = vmatprep.subr.mxu0 %v508
      %1152 = vmatpush1.msra.mxu0 %v507
      %1153 = vmatprep.subr.mxu0 %v512
      %1154 = vmatpush1.msra.mxu0 %v511
      %1155 = vmatprep.subr.mxu0 %v516
      %1156 = vmatpush1.msra.mxu0 %v515
      %1157 = vmatprep.subr.mxu0 %v520
      %1158 = vmatpush1.msra.mxu0 %v519
      %1159 = vmatprep.subr.mxu0 %v524
      %1160 = vmatpush1.msra.mxu0 %v523
      %1161 = vmatprep.subr.mxu0 %v528
      %1162 = vmatpush1.msra.mxu0 %v527
      %1163 = vmatprep.subr.mxu0 %v532
      %1164 = vmatpush1.msra.mxu0 %v531
      %1165 = vmatprep.subr.mxu0 %v536
      %1166 = vmatpush1.msra.mxu0 %v535
      %1167 = vmatprep.subr.mxu0 %v540
      %1168 = vmatpush1.msra.mxu0 %v539
      %1169 = vmatprep.subr.mxu0 %v544
      %1170 = vmatpush1.msra.mxu0 %v543
      %1171 = vmatprep.subr.mxu0 %v548
      %1172 = vmatpush1.msra.mxu0 %v547
      %1173 = vmatprep.subr.mxu0 %v552
      %1174 = vmatpush1.msra.mxu0 %v551
      %1175 = vmatprep.subr.mxu0 %v556
      %1176 = vmatpush1.msra.mxu0 %v555
      %1177 = vmatprep.subr.mxu0 %v560
      %1178 = vmatpush1.msra.mxu0 %v559
      %1179 = vmatprep.subr.mxu0 0.0
      %1180 = vmatpush1.msra.mxu0 0.0
      %1181 = vmatprep.subr.mxu0 0.0
      %1182 = vmatpush1.msra.mxu0 0.0
      %1183 = vmatprep.subr.mxu0 0.0
      %1184 = vmatpush1.msra.mxu0 0.0
      %1185 = vmatprep.subr.mxu0 0.0
      %1186 = vmatpush1.msra.mxu0 0.0
      %1187 = vmatprep.subr.mxu0 0.0
      %1188 = vmatpush1.msra.mxu0 0.0
      %1189 = vmatprep.subr.mxu0 0.0
      %1190 = vmatpush1.msra.mxu0 0.0
      %1191 = vmatprep.subr.mxu0 0.0
      %1192 = vmatpush1.msra.mxu0 0.0
      %1193 = vmatprep.subr.mxu0 0.0
      %1194 = vmatpush1.msra.mxu0 0.0
      %1195 = vmatprep.subr.mxu0 0.0
      %1196 = vmatpush1.msra.mxu0 0.0
      %1197 = vmatprep.subr.mxu0 0.0
      %1198 = vmatpush1.msra.mxu0 0.0
      %1199 = vmatprep.subr.mxu0 0.0
      %1200 = vmatpush1.msra.mxu0 0.0
      %1201 = vmatprep.subr.mxu0 0.0
      %1202 = vmatpush1.msra.mxu0 0.0
      %1203 = vmatprep.subr.mxu0 0.0
      %1204 = vmatpush1.msra.mxu0 0.0
      %1205 = vmatprep.subr.mxu0 0.0
      %1206 = vmatpush1.msra.mxu0 0.0
      %1207 = vmatprep.subr.mxu0 0.0
      %1208 = vmatpush1.msra.mxu0 0.0
      %1209 = vmatprep.subr.mxu0 0.0
      %1210 = vmatpush1.msra.mxu0 0.0
      %1211 = vmatprep.mubr.f32.mxu0 0.0
      %1212 = vmatmul.mubr.f32.gmra.mrb[0].mxu0 %v1137
      %v1213 = vpop.f32.mrb[0].mxu0
      %v1214 = vadd.f32 0.0, %v1213
      %v1215 = vpop.f32.mrb[0].mxu0
      %v1216 = vadd.f32 0.0, %v1215
      %1217 = vdwg.mxu0
      %1218 = vmatprep.subr.mxu0 %v502
      %1219 = vmatpush1.msra.mxu0 %v501
      %1220 = vmatprep.subr.mxu0 %v506
      %1221 = vmatpush1.msra.mxu0 %v505
      %1222 = vmatprep.subr.mxu0 %v510
      %1223 = vmatpush1.msra.mxu0 %v509
      %1224 = vmatprep.subr.mxu0 %v514
      %1225 = vmatpush1.msra.mxu0 %v513
      %1226 = vmatprep.subr.mxu0 %v518
      %1227 = vmatpush1.msra.mxu0 %v517
      %1228 = vmatprep.subr.mxu0 %v522
      %1229 = vmatpush1.msra.mxu0 %v521
      %1230 = vmatprep.subr.mxu0 %v526
      %1231 = vmatpush1.msra.mxu0 %v525
      %1232 = vmatprep.subr.mxu0 %v530
      %1233 = vmatpush1.msra.mxu0 %v529
      %1234 = vmatprep.subr.mxu0 %v534
      %1235 = vmatpush1.msra.mxu0 %v533
      %1236 = vmatprep.subr.mxu0 %v538
      %1237 = vmatpush1.msra.mxu0 %v537
      %1238 = vmatprep.subr.mxu0 %v542
      %1239 = vmatpush1.msra.mxu0 %v541
      %1240 = vmatprep.subr.mxu0 %v546
      %1241 = vmatpush1.msra.mxu0 %v545
      %1242 = vmatprep.subr.mxu0 %v550
      %1243 = vmatpush1.msra.mxu0 %v549
      %1244 = vmatprep.subr.mxu0 %v554
      %1245 = vmatpush1.msra.mxu0 %v553
      %1246 = vmatprep.subr.mxu0 %v558
      %1247 = vmatpush1.msra.mxu0 %v557
      %1248 = vmatprep.subr.mxu0 %v562
      %1249 = vmatpush1.msra.mxu0 %v561
      %1250 = vmatprep.subr.mxu0 0.0
      %1251 = vmatpush1.msra.mxu0 0.0
      %1252 = vmatprep.subr.mxu0 0.0
      %1253 = vmatpush1.msra.mxu0 0.0
      %1254 = vmatprep.subr.mxu0 0.0
      %1255 = vmatpush1.msra.mxu0 0.0
      %1256 = vmatprep.subr.mxu0 0.0
      %1257 = vmatpush1.msra.mxu0 0.0
      %1258 = vmatprep.subr.mxu0 0.0
      %1259 = vmatpush1.msra.mxu0 0.0
      %1260 = vmatprep.subr.mxu0 0.0
      %1261 = vmatpush1.msra.mxu0 0.0
      %1262 = vmatprep.subr.mxu0 0.0
      %1263 = vmatpush1.msra.mxu0 0.0
      %1264 = vmatprep.subr.mxu0 0.0
      %1265 = vmatpush1.msra.mxu0 0.0
      %1266 = vmatprep.subr.mxu0 0.0
      %1267 = vmatpush1.msra.mxu0 0.0
      %1268 = vmatprep.subr.mxu0 0.0
      %1269 = vmatpush1.msra.mxu0 0.0
      %1270 = vmatprep.subr.mxu0 0.0
      %1271 = vmatpush1.msra.mxu0 0.0
      %1272 = vmatprep.subr.mxu0 0.0
      %1273 = vmatpush1.msra.mxu0 0.0
      %1274 = vmatprep.subr.mxu0 0.0
      %1275 = vmatpush1.msra.mxu0 0.0
      %1276 = vmatprep.subr.mxu0 0.0
      %1277 = vmatpush1.msra.mxu0 0.0
      %1278 = vmatprep.subr.mxu0 0.0
      %1279 = vmatpush1.msra.mxu0 0.0
      %1280 = vmatprep.subr.mxu0 0.0
      %1281 = vmatpush1.msra.mxu0 0.0
      %1282 = vmatprep.mubr.f32.mxu0 0.0
      %1283 = vmatmul.mubr.f32.gmra.mrb[0].mxu0 %v1137
      %v1284 = vpop.f32.mrb[0].mxu0
      %v1285 = vadd.f32 0.0, %v1284
      %v1286 = vpop.f32.mrb[0].mxu0
      %v1287 = vadd.f32 0.0, %v1286
      %1288 = vdwg.mxu0
      %v1289 = vadd.f32 %v1143, %v1214
      %v1290 = vadd.f32 %v1144, %v1216
      %v1291 = vadd.f32 %v1145, %v1285
      %v1292 = vadd.f32 %v1146, %v1287
      %v1293 = vxor.u32 %v1289, 2147483648
      %v1294 = vmul.f32 %v1293, 1.442695
      %v1295 = vpow.pop %v1294
      %v1296 = vadd.f32 %v1295, 1.0
      %v1297 = vrcp.pop %v1296
      %v1298 = vmul.f32 1.0, %v1297
      %v1299 = vxor.u32 %v1290, 2147483648
      %v1300 = vmul.f32 %v1299, 1.442695
      %v1301 = vpow.pop %v1300
      %v1302 = vadd.f32 %v1301, 1.0
      %v1303 = vrcp.pop %v1302
      %v1304 = vmul.f32 1.0, %v1303
      %v1305 = vtanh.pop %v1291
      %v1306 = vxor.u32 %v1292, 2147483648
      %v1307 = vmul.f32 %v1306, 1.442695
      %v1308 = vpow.pop %v1307
      %v1309 = vadd.f32 %v1308, 1.0
      %v1310 = vrcp.pop %v1309
      %v1311 = vmul.f32 1.0, %v1310
      %v1312 = vmul.f32 %v1304, %v1135
      %v1313 = vmul.f32 %v1298, %v1305
      %v1314 = vadd.f32 %v1312, %v1313
      %v1315 = vtanh.pop %v1314
      %v1316 = vmul.f32 %v1311, %v1315
      %s1317 = scalar_lea.vmem [#allocation2], 16
      %1318 = vst [vmem:[%s1317] sm:$0xff] %v1316
      %s1319 = smul.u32 3, 4
      %s1320 = smul.addr %s1319, 8
      %s1321 = scalar_lea.vmem [#allocation3], %s1320
      %v1322 = vld [vmem:[%s1321] sm:$0xff]
      %v1323 = vld [vmem:[%s1321 + $0x8] sm:$0xff]
      %v1324 = vld [vmem:[%s1321 + $0x10] sm:$0xff]
      %v1325 = vld [vmem:[%s1321 + $0x18] sm:$0xff]
      %1326 = vmatprep.subr.mxu0 %v500
      %1327 = vmatpush1.msra.mxu0 %v499
      %1328 = vmatprep.subr.mxu0 %v504
      %1329 = vmatpush1.msra.mxu0 %v503
      %1330 = vmatprep.subr.mxu0 %v508
      %1331 = vmatpush1.msra.mxu0 %v507
      %1332 = vmatprep.subr.mxu0 %v512
      %1333 = vmatpush1.msra.mxu0 %v511
      %1334 = vmatprep.subr.mxu0 %v516
      %1335 = vmatpush1.msra.mxu0 %v515
      %1336 = vmatprep.subr.mxu0 %v520
      %1337 = vmatpush1.msra.mxu0 %v519
      %1338 = vmatprep.subr.mxu0 %v524
      %1339 = vmatpush1.msra.mxu0 %v523
      %1340 = vmatprep.subr.mxu0 %v528
      %1341 = vmatpush1.msra.mxu0 %v527
      %1342 = vmatprep.subr.mxu0 %v532
      %1343 = vmatpush1.msra.mxu0 %v531
      %1344 = vmatprep.subr.mxu0 %v536
      %1345 = vmatpush1.msra.mxu0 %v535
      %1346 = vmatprep.subr.mxu0 %v540
      %1347 = vmatpush1.msra.mxu0 %v539
      %1348 = vmatprep.subr.mxu0 %v544
      %1349 = vmatpush1.msra.mxu0 %v543
      %1350 = vmatprep.subr.mxu0 %v548
      %1351 = vmatpush1.msra.mxu0 %v547
      %1352 = vmatprep.subr.mxu0 %v552
      %1353 = vmatpush1.msra.mxu0 %v551
      %1354 = vmatprep.subr.mxu0 %v556
      %1355 = vmatpush1.msra.mxu0 %v555
      %1356 = vmatprep.subr.mxu0 %v560
      %1357 = vmatpush1.msra.mxu0 %v559
      %1358 = vmatprep.subr.mxu0 0.0
      %1359 = vmatpush1.msra.mxu0 0.0
      %1360 = vmatprep.subr.mxu0 0.0
      %1361 = vmatpush1.msra.mxu0 0.0
      %1362 = vmatprep.subr.mxu0 0.0
      %1363 = vmatpush1.msra.mxu0 0.0
      %1364 = vmatprep.subr.mxu0 0.0
      %1365 = vmatpush1.msra.mxu0 0.0
      %1366 = vmatprep.subr.mxu0 0.0
      %1367 = vmatpush1.msra.mxu0 0.0
      %1368 = vmatprep.subr.mxu0 0.0
      %1369 = vmatpush1.msra.mxu0 0.0
      %1370 = vmatprep.subr.mxu0 0.0
      %1371 = vmatpush1.msra.mxu0 0.0
      %1372 = vmatprep.subr.mxu0 0.0
      %1373 = vmatpush1.msra.mxu0 0.0
      %1374 = vmatprep.subr.mxu0 0.0
      %1375 = vmatpush1.msra.mxu0 0.0
      %1376 = vmatprep.subr.mxu0 0.0
      %1377 = vmatpush1.msra.mxu0 0.0
      %1378 = vmatprep.subr.mxu0 0.0
      %1379 = vmatpush1.msra.mxu0 0.0
      %1380 = vmatprep.subr.mxu0 0.0
      %1381 = vmatpush1.msra.mxu0 0.0
      %1382 = vmatprep.subr.mxu0 0.0
      %1383 = vmatpush1.msra.mxu0 0.0
      %1384 = vmatprep.subr.mxu0 0.0
      %1385 = vmatpush1.msra.mxu0 0.0
      %1386 = vmatprep.subr.mxu0 0.0
      %1387 = vmatpush1.msra.mxu0 0.0
      %1388 = vmatprep.subr.mxu0 0.0
      %1389 = vmatpush1.msra.mxu0 0.0
      %1390 = vmatprep.mubr.f32.mxu0 0.0
      %1391 = vmatmul.mubr.f32.gmra.mrb[0].mxu0 %v1316
      %v1392 = vpop.f32.mrb[0].mxu0
      %v1393 = vadd.f32 0.0, %v1392
      %v1394 = vpop.f32.mrb[0].mxu0
      %v1395 = vadd.f32 0.0, %v1394
      %1396 = vdwg.mxu0
      %1397 = vmatprep.subr.mxu0 %v502
      %1398 = vmatpush1.msra.mxu0 %v501
      %1399 = vmatprep.subr.mxu0 %v506
      %1400 = vmatpush1.msra.mxu0 %v505
      %1401 = vmatprep.subr.mxu0 %v510
      %1402 = vmatpush1.msra.mxu0 %v509
      %1403 = vmatprep.subr.mxu0 %v514
      %1404 = vmatpush1.msra.mxu0 %v513
      %1405 = vmatprep.subr.mxu0 %v518
      %1406 = vmatpush1.msra.mxu0 %v517
      %1407 = vmatprep.subr.mxu0 %v522
      %1408 = vmatpush1.msra.mxu0 %v521
      %1409 = vmatprep.subr.mxu0 %v526
      %1410 = vmatpush1.msra.mxu0 %v525
      %1411 = vmatprep.subr.mxu0 %v530
      %1412 = vmatpush1.msra.mxu0 %v529
      %1413 = vmatprep.subr.mxu0 %v534
      %1414 = vmatpush1.msra.mxu0 %v533
      %1415 = vmatprep.subr.mxu0 %v538
      %1416 = vmatpush1.msra.mxu0 %v537
      %1417 = vmatprep.subr.mxu0 %v542
      %1418 = vmatpush1.msra.mxu0 %v541
      %1419 = vmatprep.subr.mxu0 %v546
      %1420 = vmatpush1.msra.mxu0 %v545
      %1421 = vmatprep.subr.mxu0 %v550
      %1422 = vmatpush1.msra.mxu0 %v549
      %1423 = vmatprep.subr.mxu0 %v554
      %1424 = vmatpush1.msra.mxu0 %v553
      %1425 = vmatprep.subr.mxu0 %v558
      %1426 = vmatpush1.msra.mxu0 %v557
      %1427 = vmatprep.subr.mxu0 %v562
      %1428 = vmatpush1.msra.mxu0 %v561
      %1429 = vmatprep.subr.mxu0 0.0
      %1430 = vmatpush1.msra.mxu0 0.0
      %1431 = vmatprep.subr.mxu0 0.0
      %1432 = vmatpush1.msra.mxu0 0.0
      %1433 = vmatprep.subr.mxu0 0.0
      %1434 = vmatpush1.msra.mxu0 0.0
      %1435 = vmatprep.subr.mxu0 0.0
      %1436 = vmatpush1.msra.mxu0 0.0
      %1437 = vmatprep.subr.mxu0 0.0
      %1438 = vmatpush1.msra.mxu0 0.0
      %1439 = vmatprep.subr.mxu0 0.0
      %1440 = vmatpush1.msra.mxu0 0.0
      %1441 = vmatprep.subr.mxu0 0.0
      %1442 = vmatpush1.msra.mxu0 0.0
      %1443 = vmatprep.subr.mxu0 0.0
      %1444 = vmatpush1.msra.mxu0 0.0
      %1445 = vmatprep.subr.mxu0 0.0
      %1446 = vmatpush1.msra.mxu0 0.0
      %1447 = vmatprep.subr.mxu0 0.0
      %1448 = vmatpush1.msra.mxu0 0.0
      %1449 = vmatprep.subr.mxu0 0.0
      %1450 = vmatpush1.msra.mxu0 0.0
      %1451 = vmatprep.subr.mxu0 0.0
      %1452 = vmatpush1.msra.mxu0 0.0
      %1453 = vmatprep.subr.mxu0 0.0
      %1454 = vmatpush1.msra.mxu0 0.0
      %1455 = vmatprep.subr.mxu0 0.0
      %1456 = vmatpush1.msra.mxu0 0.0
      %1457 = vmatprep.subr.mxu0 0.0
      %1458 = vmatpush1.msra.mxu0 0.0
      %1459 = vmatprep.subr.mxu0 0.0
      %1460 = vmatpush1.msra.mxu0 0.0
      %1461 = vmatprep.mubr.f32.mxu0 0.0
      %1462 = vmatmul.mubr.f32.gmra.mrb[0].mxu0 %v1316
      %v1463 = vpop.f32.mrb[0].mxu0
      %v1464 = vadd.f32 0.0, %v1463
      %v1465 = vpop.f32.mrb[0].mxu0
      %v1466 = vadd.f32 0.0, %v1465
      %1467 = vdwg.mxu0
      %v1468 = vadd.f32 %v1322, %v1393
      %v1469 = vadd.f32 %v1323, %v1395
      %v1470 = vadd.f32 %v1324, %v1464
      %v1471 = vadd.f32 %v1325, %v1466
      %v1472 = vxor.u32 %v1468, 2147483648
      %v1473 = vmul.f32 %v1472, 1.442695
      %v1474 = vpow.pop %v1473
      %v1475 = vadd.f32 %v1474, 1.0
      %v1476 = vrcp.pop %v1475
      %v1477 = vmul.f32 1.0, %v1476
      %v1478 = vxor.u32 %v1469, 2147483648
      %v1479 = vmul.f32 %v1478, 1.442695
      %v1480 = vpow.pop %v1479
      %v1481 = vadd.f32 %v1480, 1.0
      %v1482 = vrcp.pop %v1481
      %v1483 = vmul.f32 1.0, %v1482
      %v1484 = vtanh.pop %v1470
      %v1485 = vxor.u32 %v1471, 2147483648
      %v1486 = vmul.f32 %v1485, 1.442695
      %v1487 = vpow.pop %v1486
      %v1488 = vadd.f32 %v1487, 1.0
      %v1489 = vrcp.pop %v1488
      %v1490 = vmul.f32 1.0, %v1489
      %v1491 = vmul.f32 %v1483, %v1314
      %v1492 = vmul.f32 %v1477, %v1484
      %v1493 = vadd.f32 %v1491, %v1492
      %v1494 = vtanh.pop %v1493
      %v1495 = vmul.f32 %v1490, %v1494
      %s1496 = scalar_lea.vmem [#allocation2], 24
      %1497 = vst [vmem:[%s1496] sm:$0xff] %v1495
      %v1498 = vld [vmem:[#allocation2 + $0x20] sm:$0xff]
      %v1499 = vld [vmem:[#allocation2 + $0x28] sm:$0xff]
      %v1500 = vld [vmem:[#allocation2 + $0x30] sm:$0xff]
      %v1501 = vld [vmem:[#allocation2 + $0x38] sm:$0xff]
      %1502 = vmatprep.subr.mxu0 %v436
      %1503 = vmatpush1.msra.mxu0 %v435
      %1504 = vmatprep.subr.mxu0 %v440
      %1505 = vmatpush1.msra.mxu0 %v439
      %1506 = vmatprep.subr.mxu0 %v444
      %1507 = vmatpush1.msra.mxu0 %v443
      %1508 = vmatprep.subr.mxu0 %v448
      %1509 = vmatpush1.msra.mxu0 %v447
      %1510 = vmatprep.subr.mxu0 %v452
      %1511 = vmatpush1.msra.mxu0 %v451
      %1512 = vmatprep.subr.mxu0 %v456
      %1513 = vmatpush1.msra.mxu0 %v455
      %1514 = vmatprep.subr.mxu0 %v460
      %1515 = vmatpush1.msra.mxu0 %v459
      %1516 = vmatprep.subr.mxu0 %v464
      %1517 = vmatpush1.msra.mxu0 %v463
      %1518 = vmatprep.subr.mxu0 %v468
      %1519 = vmatpush1.msra.mxu0 %v467
      %1520 = vmatprep.subr.mxu0 %v472
      %1521 = vmatpush1.msra.mxu0 %v471
      %1522 = vmatprep.subr.mxu0 %v476
      %1523 = vmatpush1.msra.mxu0 %v475
      %1524 = vmatprep.subr.mxu0 %v480
      %1525 = vmatpush1.msra.mxu0 %v479
      %1526 = vmatprep.subr.mxu0 %v484
      %1527 = vmatpush1.msra.mxu0 %v483
      %1528 = vmatprep.subr.mxu0 %v488
      %1529 = vmatpush1.msra.mxu0 %v487
      %1530 = vmatprep.subr.mxu0 %v492
      %1531 = vmatpush1.msra.mxu0 %v491
      %1532 = vmatprep.subr.mxu0 %v496
      %1533 = vmatpush1.msra.mxu0 %v495
      %1534 = vmatprep.subr.mxu0 0.0
      %1535 = vmatpush1.msra.mxu0 0.0
      %1536 = vmatprep.subr.mxu0 0.0
      %1537 = vmatpush1.msra.mxu0 0.0
      %1538 = vmatprep.subr.mxu0 0.0
      %1539 = vmatpush1.msra.mxu0 0.0
      %1540 = vmatprep.subr.mxu0 0.0
      %1541 = vmatpush1.msra.mxu0 0.0
      %1542 = vmatprep.subr.mxu0 0.0
      %1543 = vmatpush1.msra.mxu0 0.0
      %1544 = vmatprep.subr.mxu0 0.0
      %1545 = vmatpush1.msra.mxu0 0.0
      %1546 = vmatprep.subr.mxu0 0.0
      %1547 = vmatpush1.msra.mxu0 0.0
      %1548 = vmatprep.subr.mxu0 0.0
      %1549 = vmatpush1.msra.mxu0 0.0
      %1550 = vmatprep.subr.mxu0 0.0
      %1551 = vmatpush1.msra.mxu0 0.0
      %1552 = vmatprep.subr.mxu0 0.0
      %1553 = vmatpush1.msra.mxu0 0.0
      %1554 = vmatprep.subr.mxu0 0.0
      %1555 = vmatpush1.msra.mxu0 0.0
      %1556 = vmatprep.subr.mxu0 0.0
      %1557 = vmatpush1.msra.mxu0 0.0
      %1558 = vmatprep.subr.mxu0 0.0
      %1559 = vmatpush1.msra.mxu0 0.0
      %1560 = vmatprep.subr.mxu0 0.0
      %1561 = vmatpush1.msra.mxu0 0.0
      %1562 = vmatprep.subr.mxu0 0.0
      %1563 = vmatpush1.msra.mxu0 0.0
      %1564 = vmatprep.subr.mxu0 0.0
      %1565 = vmatpush1.msra.mxu0 0.0
      %1566 = vmatprep.mubr.f32.mxu0 0.0
      %1567 = vmatmul.mubr.f32.gmra.mrb[0].mxu0 %v1498
      %v1568 = vpop.f32.mrb[0].mxu0
      %v1569 = vadd.f32 %v572, %v1568
      %v1570 = vpop.f32.mrb[0].mxu0
      %v1571 = vadd.f32 %v576, %v1570
      %1572 = vmatprep.mubr.f32.mxu0 0.0
      %1573 = vmatmul.mubr.f32.gmra.mrb[0].mxu0 %v1499
      %v1574 = vpop.f32.mrb[0].mxu0
      %v1575 = vadd.f32 %v572, %v1574
      %v1576 = vpop.f32.mrb[0].mxu0
      %v1577 = vadd.f32 %v576, %v1576
      %1578 = vmatprep.mubr.f32.mxu0 0.0
      %1579 = vmatmul.mubr.f32.gmra.mrb[0].mxu0 %v1500
      %v1580 = vpop.f32.mrb[0].mxu0
      %v1581 = vadd.f32 %v572, %v1580
      %v1582 = vpop.f32.mrb[0].mxu0
      %v1583 = vadd.f32 %v576, %v1582
      %1584 = vmatprep.mubr.f32.mxu0 0.0
      %1585 = vmatmul.mubr.f32.gmra.mrb[0].mxu0 %v1501
      %v1586 = vpop.f32.mrb[0].mxu0
      %v1587 = vadd.f32 %v572, %v1586
      %v1588 = vpop.f32.mrb[0].mxu0
      %v1589 = vadd.f32 %v576, %v1588
      %1590 = vdwg.mxu0
      %1591 = vmatprep.subr.mxu0 %v438
      %1592 = vmatpush1.msra.mxu0 %v437
      %1593 = vmatprep.subr.mxu0 %v442
      %1594 = vmatpush1.msra.mxu0 %v441
      %1595 = vmatprep.subr.mxu0 %v446
      %1596 = vmatpush1.msra.mxu0 %v445
      %1597 = vmatprep.subr.mxu0 %v450
      %1598 = vmatpush1.msra.mxu0 %v449
      %1599 = vmatprep.subr.mxu0 %v454
      %1600 = vmatpush1.msra.mxu0 %v453
      %1601 = vmatprep.subr.mxu0 %v458
      %1602 = vmatpush1.msra.mxu0 %v457
      %1603 = vmatprep.subr.mxu0 %v462
      %1604 = vmatpush1.msra.mxu0 %v461
      %1605 = vmatprep.subr.mxu0 %v466
      %1606 = vmatpush1.msra.mxu0 %v465
      %1607 = vmatprep.subr.mxu0 %v470
      %1608 = vmatpush1.msra.mxu0 %v469
      %1609 = vmatprep.subr.mxu0 %v474
      %1610 = vmatpush1.msra.mxu0 %v473
      %1611 = vmatprep.subr.mxu0 %v478
      %1612 = vmatpush1.msra.mxu0 %v477
      %1613 = vmatprep.subr.mxu0 %v482
      %1614 = vmatpush1.msra.mxu0 %v481
      %1615 = vmatprep.subr.mxu0 %v486
      %1616 = vmatpush1.msra.mxu0 %v485
      %1617 = vmatprep.subr.mxu0 %v490
      %1618 = vmatpush1.msra.mxu0 %v489
      %1619 = vmatprep.subr.mxu0 %v494
      %1620 = vmatpush1.msra.mxu0 %v493
      %1621 = vmatprep.subr.mxu0 %v498
      %1622 = vmatpush1.msra.mxu0 %v497
      %1623 = vmatprep.subr.mxu0 0.0
      %1624 = vmatpush1.msra.mxu0 0.0
      %1625 = vmatprep.subr.mxu0 0.0
      %1626 = vmatpush1.msra.mxu0 0.0
      %1627 = vmatprep.subr.mxu0 0.0
      %1628 = vmatpush1.msra.mxu0 0.0
      %1629 = vmatprep.subr.mxu0 0.0
      %1630 = vmatpush1.msra.mxu0 0.0
      %1631 = vmatprep.subr.mxu0 0.0
      %1632 = vmatpush1.msra.mxu0 0.0
      %1633 = vmatprep.subr.mxu0 0.0
      %1634 = vmatpush1.msra.mxu0 0.0
      %1635 = vmatprep.subr.mxu0 0.0
      %1636 = vmatpush1.msra.mxu0 0.0
      %1637 = vmatprep.subr.mxu0 0.0
      %1638 = vmatpush1.msra.mxu0 0.0
      %1639 = vmatprep.subr.mxu0 0.0
      %1640 = vmatpush1.msra.mxu0 0.0
      %1641 = vmatprep.subr.mxu0 0.0
      %1642 = vmatpush1.msra.mxu0 0.0
      %1643 = vmatprep.subr.mxu0 0.0
      %1644 = vmatpush1.msra.mxu0 0.0
      %1645 = vmatprep.subr.mxu0 0.0
      %1646 = vmatpush1.msra.mxu0 0.0
      %1647 = vmatprep.subr.mxu0 0.0
      %1648 = vmatpush1.msra.mxu0 0.0
      %1649 = vmatprep.subr.mxu0 0.0
      %1650 = vmatpush1.msra.mxu0 0.0
      %1651 = vmatprep.subr.mxu0 0.0
      %1652 = vmatpush1.msra.mxu0 0.0
      %1653 = vmatprep.subr.mxu0 0.0
      %1654 = vmatpush1.msra.mxu0 0.0
      %1655 = vmatprep.mubr.f32.mxu0 0.0
      %1656 = vmatmul.mubr.f32.gmra.mrb[0].mxu0 %v1498
      %v1657 = vpop.f32.mrb[0].mxu0
      %v1658 = vadd.f32 %v580, %v1657
      %v1659 = vpop.f32.mrb[0].mxu0
      %v1660 = vadd.f32 %v584, %v1659
      %1661 = vmatprep.mubr.f32.mxu0 0.0
      %1662 = vmatmul.mubr.f32.gmra.mrb[0].mxu0 %v1499
      %v1663 = vpop.f32.mrb[0].mxu0
      %v1664 = vadd.f32 %v580, %v1663
      %v1665 = vpop.f32.mrb[0].mxu0
      %v1666 = vadd.f32 %v584, %v1665
      %1667 = vmatprep.mubr.f32.mxu0 0.0
      %1668 = vmatmul.mubr.f32.gmra.mrb[0].mxu0 %v1500
      %v1669 = vpop.f32.mrb[0].mxu0
      %v1670 = vadd.f32 %v580, %v1669
      %v1671 = vpop.f32.mrb[0].mxu0
      %v1672 = vadd.f32 %v584, %v1671
      %1673 = vmatprep.mubr.f32.mxu0 0.0
      %1674 = vmatmul.mubr.f32.gmra.mrb[0].mxu0 %v1501
      %v1675 = vpop.f32.mrb[0].mxu0
      %v1676 = vadd.f32 %v580, %v1675
      %v1677 = vpop.f32.mrb[0].mxu0
      %v1678 = vadd.f32 %v584, %v1677
      %1679 = vdwg.mxu0
      %1680 = vst [vmem:[#allocation3] sm:$0xff] %v1569
      %1681 = vst [vmem:[#allocation3 + $0x8] sm:$0xff] %v1571
      %1682 = vst [vmem:[#allocation3 + $0x10] sm:$0xff] %v1658
      %1683 = vst [vmem:[#allocation3 + $0x18] sm:$0xff] %v1660
      %1684 = vst [vmem:[#allocation3 + $0x20] sm:$0xff] %v1575
      %1685 = vst [vmem:[#allocation3 + $0x28] sm:$0xff] %v1577
      %1686 = vst [vmem:[#allocation3 + $0x30] sm:$0xff] %v1664
      %1687 = vst [vmem:[#allocation3 + $0x38] sm:$0xff] %v1666
      %1688 = vst [vmem:[#allocation3 + $0x40] sm:$0xff] %v1581
      %1689 = vst [vmem:[#allocation3 + $0x48] sm:$0xff] %v1583
      %1690 = vst [vmem:[#allocation3 + $0x50] sm:$0xff] %v1670
      %1691 = vst [vmem:[#allocation3 + $0x58] sm:$0xff] %v1672
      %1692 = vst [vmem:[#allocation3 + $0x60] sm:$0xff] %v1587
      %1693 = vst [vmem:[#allocation3 + $0x68] sm:$0xff] %v1589
      %1694 = vst [vmem:[#allocation3 + $0x70] sm:$0xff] %v1676
      %1695 = vst [vmem:[#allocation3 + $0x78] sm:$0xff] %v1678
      %v1696 = vld [vmem:[%s785] sm:$0xff]
      %v1697 = vld [vmem:[%s785 + $0x8] sm:$0xff]
      %v1698 = vld [vmem:[%s785 + $0x10] sm:$0xff]
      %v1699 = vld [vmem:[%s785 + $0x18] sm:$0xff]
      %1700 = vmatprep.subr.mxu0 %v500
      %1701 = vmatpush1.msra.mxu0 %v499
      %1702 = vmatprep.subr.mxu0 %v504
      %1703 = vmatpush1.msra.mxu0 %v503
      %1704 = vmatprep.subr.mxu0 %v508
      %1705 = vmatpush1.msra.mxu0 %v507
      %1706 = vmatprep.subr.mxu0 %v512
      %1707 = vmatpush1.msra.mxu0 %v511
      %1708 = vmatprep.subr.mxu0 %v516
      %1709 = vmatpush1.msra.mxu0 %v515
      %1710 = vmatprep.subr.mxu0 %v520
      %1711 = vmatpush1.msra.mxu0 %v519
      %1712 = vmatprep.subr.mxu0 %v524
      %1713 = vmatpush1.msra.mxu0 %v523
      %1714 = vmatprep.subr.mxu0 %v528
      %1715 = vmatpush1.msra.mxu0 %v527
      %1716 = vmatprep.subr.mxu0 %v532
      %1717 = vmatpush1.msra.mxu0 %v531
      %1718 = vmatprep.subr.mxu0 %v536
      %1719 = vmatpush1.msra.mxu0 %v535
      %1720 = vmatprep.subr.mxu0 %v540
      %1721 = vmatpush1.msra.mxu0 %v539
      %1722 = vmatprep.subr.mxu0 %v544
      %1723 = vmatpush1.msra.mxu0 %v543
      %1724 = vmatprep.subr.mxu0 %v548
      %1725 = vmatpush1.msra.mxu0 %v547
      %1726 = vmatprep.subr.mxu0 %v552
      %1727 = vmatpush1.msra.mxu0 %v551
      %1728 = vmatprep.subr.mxu0 %v556
      %1729 = vmatpush1.msra.mxu0 %v555
      %1730 = vmatprep.subr.mxu0 %v560
      %1731 = vmatpush1.msra.mxu0 %v559
      %1732 = vmatprep.subr.mxu0 0.0
      %1733 = vmatpush1.msra.mxu0 0.0
      %1734 = vmatprep.subr.mxu0 0.0
      %1735 = vmatpush1.msra.mxu0 0.0
      %1736 = vmatprep.subr.mxu0 0.0
      %1737 = vmatpush1.msra.mxu0 0.0
      %1738 = vmatprep.subr.mxu0 0.0
      %1739 = vmatpush1.msra.mxu0 0.0
      %1740 = vmatprep.subr.mxu0 0.0
      %1741 = vmatpush1.msra.mxu0 0.0
      %1742 = vmatprep.subr.mxu0 0.0
      %1743 = vmatpush1.msra.mxu0 0.0
      %1744 = vmatprep.subr.mxu0 0.0
      %1745 = vmatpush1.msra.mxu0 0.0
      %1746 = vmatprep.subr.mxu0 0.0
      %1747 = vmatpush1.msra.mxu0 0.0
      %1748 = vmatprep.subr.mxu0 0.0
      %1749 = vmatpush1.msra.mxu0 0.0
      %1750 = vmatprep.subr.mxu0 0.0
      %1751 = vmatpush1.msra.mxu0 0.0
      %1752 = vmatprep.subr.mxu0 0.0
      %1753 = vmatpush1.msra.mxu0 0.0
      %1754 = vmatprep.subr.mxu0 0.0
      %1755 = vmatpush1.msra.mxu0 0.0
      %1756 = vmatprep.subr.mxu0 0.0
      %1757 = vmatpush1.msra.mxu0 0.0
      %1758 = vmatprep.subr.mxu0 0.0
      %1759 = vmatpush1.msra.mxu0 0.0
      %1760 = vmatprep.subr.mxu0 0.0
      %1761 = vmatpush1.msra.mxu0 0.0
      %1762 = vmatprep.subr.mxu0 0.0
      %1763 = vmatpush1.msra.mxu0 0.0
      %1764 = vmatprep.mubr.f32.mxu0 0.0
      %1765 = vmatmul.mubr.f32.gmra.mrb[0].mxu0 %v1495
      %v1766 = vpop.f32.mrb[0].mxu0
      %v1767 = vadd.f32 0.0, %v1766
      %v1768 = vpop.f32.mrb[0].mxu0
      %v1769 = vadd.f32 0.0, %v1768
      %1770 = vdwg.mxu0
      %1771 = vmatprep.subr.mxu0 %v502
      %1772 = vmatpush1.msra.mxu0 %v501
      %1773 = vmatprep.subr.mxu0 %v506
      %1774 = vmatpush1.msra.mxu0 %v505
      %1775 = vmatprep.subr.mxu0 %v510
      %1776 = vmatpush1.msra.mxu0 %v509
      %1777 = vmatprep.subr.mxu0 %v514
      %1778 = vmatpush1.msra.mxu0 %v513
      %1779 = vmatprep.subr.mxu0 %v518
      %1780 = vmatpush1.msra.mxu0 %v517
      %1781 = vmatprep.subr.mxu0 %v522
      %1782 = vmatpush1.msra.mxu0 %v521
      %1783 = vmatprep.subr.mxu0 %v526
      %1784 = vmatpush1.msra.mxu0 %v525
      %1785 = vmatprep.subr.mxu0 %v530
      %1786 = vmatpush1.msra.mxu0 %v529
      %1787 = vmatprep.subr.mxu0 %v534
      %1788 = vmatpush1.msra.mxu0 %v533
      %1789 = vmatprep.subr.mxu0 %v538
      %1790 = vmatpush1.msra.mxu0 %v537
      %1791 = vmatprep.subr.mxu0 %v542
      %1792 = vmatpush1.msra.mxu0 %v541
      %1793 = vmatprep.subr.mxu0 %v546
      %1794 = vmatpush1.msra.mxu0 %v545
      %1795 = vmatprep.subr.mxu0 %v550
      %1796 = vmatpush1.msra.mxu0 %v549
      %1797 = vmatprep.subr.mxu0 %v554
      %1798 = vmatpush1.msra.mxu0 %v553
      %1799 = vmatprep.subr.mxu0 %v558
      %1800 = vmatpush1.msra.mxu0 %v557
      %1801 = vmatprep.subr.mxu0 %v562
      %1802 = vmatpush1.msra.mxu0 %v561
      %1803 = vmatprep.subr.mxu0 0.0
      %1804 = vmatpush1.msra.mxu0 0.0
      %1805 = vmatprep.subr.mxu0 0.0
      %1806 = vmatpush1.msra.mxu0 0.0
      %1807 = vmatprep.subr.mxu0 0.0
      %1808 = vmatpush1.msra.mxu0 0.0
      %1809 = vmatprep.subr.mxu0 0.0
      %1810 = vmatpush1.msra.mxu0 0.0
      %1811 = vmatprep.subr.mxu0 0.0
      %1812 = vmatpush1.msra.mxu0 0.0
      %1813 = vmatprep.subr.mxu0 0.0
      %1814 = vmatpush1.msra.mxu0 0.0
      %1815 = vmatprep.subr.mxu0 0.0
      %1816 = vmatpush1.msra.mxu0 0.0
      %1817 = vmatprep.subr.mxu0 0.0
      %1818 = vmatpush1.msra.mxu0 0.0
      %1819 = vmatprep.subr.mxu0 0.0
      %1820 = vmatpush1.msra.mxu0 0.0
      %1821 = vmatprep.subr.mxu0 0.0
      %1822 = vmatpush1.msra.mxu0 0.0
      %1823 = vmatprep.subr.mxu0 0.0
      %1824 = vmatpush1.msra.mxu0 0.0
      %1825 = vmatprep.subr.mxu0 0.0
      %1826 = vmatpush1.msra.mxu0 0.0
      %1827 = vmatprep.subr.mxu0 0.0
      %1828 = vmatpush1.msra.mxu0 0.0
      %1829 = vmatprep.subr.mxu0 0.0
      %1830 = vmatpush1.msra.mxu0 0.0
      %1831 = vmatprep.subr.mxu0 0.0
      %1832 = vmatpush1.msra.mxu0 0.0
      %1833 = vmatprep.subr.mxu0 0.0
      %1834 = vmatpush1.msra.mxu0 0.0
      %1835 = vmatprep.mubr.f32.mxu0 0.0
      %1836 = vmatmul.mubr.f32.gmra.mrb[0].mxu0 %v1495
      %v1837 = vpop.f32.mrb[0].mxu0
      %v1838 = vadd.f32 0.0, %v1837
      %v1839 = vpop.f32.mrb[0].mxu0
      %v1840 = vadd.f32 0.0, %v1839
      %1841 = vdwg.mxu0
      %v1842 = vadd.f32 %v1696, %v1767
      %v1843 = vadd.f32 %v1697, %v1769
      %v1844 = vadd.f32 %v1698, %v1838
      %v1845 = vadd.f32 %v1699, %v1840
      %v1846 = vxor.u32 %v1842, 2147483648
      %v1847 = vmul.f32 %v1846, 1.442695
      %v1848 = vpow.pop %v1847
      %v1849 = vadd.f32 %v1848, 1.0
      %v1850 = vrcp.pop %v1849
      %v1851 = vmul.f32 1.0, %v1850
      %v1852 = vxor.u32 %v1843, 2147483648
      %v1853 = vmul.f32 %v1852, 1.442695
      %v1854 = vpow.pop %v1853
      %v1855 = vadd.f32 %v1854, 1.0
      %v1856 = vrcp.pop %v1855
      %v1857 = vmul.f32 1.0, %v1856
      %v1858 = vtanh.pop %v1844
      %v1859 = vxor.u32 %v1845, 2147483648
      %v1860 = vmul.f32 %v1859, 1.442695
      %v1861 = vpow.pop %v1860
      %v1862 = vadd.f32 %v1861, 1.0
      %v1863 = vrcp.pop %v1862
      %v1864 = vmul.f32 1.0, %v1863
      %v1865 = vmul.f32 %v1857, %v1493
      %v1866 = vmul.f32 %v1851, %v1858
      %v1867 = vadd.f32 %v1865, %v1866
      %v1868 = vtanh.pop %v1867
      %v1869 = vmul.f32 %v1864, %v1868
      %s1870 = sadd.s32 0, 32
      %s1871 = scalar_lea.vmem [#allocation2], %s1870
      %1872 = vst [vmem:[%s1871] sm:$0xff] %v1869
      %v1873 = vld [vmem:[%s963] sm:$0xff]
      %v1874 = vld [vmem:[%s963 + $0x8] sm:$0xff]
      %v1875 = vld [vmem:[%s963 + $0x10] sm:$0xff]
      %v1876 = vld [vmem:[%s963 + $0x18] sm:$0xff]
      %1877 = vmatprep.subr.mxu0 %v500
      %1878 = vmatpush1.msra.mxu0 %v499
      %1879 = vmatprep.subr.mxu0 %v504
      %1880 = vmatpush1.msra.mxu0 %v503
      %1881 = vmatprep.subr.mxu0 %v508
      %1882 = vmatpush1.msra.mxu0 %v507
      %1883 = vmatprep.subr.mxu0 %v512
      %1884 = vmatpush1.msra.mxu0 %v511
      %1885 = vmatprep.subr.mxu0 %v516
      %1886 = vmatpush1.msra.mxu0 %v515
      %1887 = vmatprep.subr.mxu0 %v520
      %1888 = vmatpush1.msra.mxu0 %v519
      %1889 = vmatprep.subr.mxu0 %v524
      %1890 = vmatpush1.msra.mxu0 %v523
      %1891 = vmatprep.subr.mxu0 %v528
      %1892 = vmatpush1.msra.mxu0 %v527
      %1893 = vmatprep.subr.mxu0 %v532
      %1894 = vmatpush1.msra.mxu0 %v531
      %1895 = vmatprep.subr.mxu0 %v536
      %1896 = vmatpush1.msra.mxu0 %v535
      %1897 = vmatprep.subr.mxu0 %v540
      %1898 = vmatpush1.msra.mxu0 %v539
      %1899 = vmatprep.subr.mxu0 %v544
      %1900 = vmatpush1.msra.mxu0 %v543
      %1901 = vmatprep.subr.mxu0 %v548
      %1902 = vmatpush1.msra.mxu0 %v547
      %1903 = vmatprep.subr.mxu0 %v552
      %1904 = vmatpush1.msra.mxu0 %v551
      %1905 = vmatprep.subr.mxu0 %v556
      %1906 = vmatpush1.msra.mxu0 %v555
      %1907 = vmatprep.subr.mxu0 %v560
      %1908 = vmatpush1.msra.mxu0 %v559
      %1909 = vmatprep.subr.mxu0 0.0
      %1910 = vmatpush1.msra.mxu0 0.0
      %1911 = vmatprep.subr.mxu0 0.0
      %1912 = vmatpush1.msra.mxu0 0.0
      %1913 = vmatprep.subr.mxu0 0.0
      %1914 = vmatpush1.msra.mxu0 0.0
      %1915 = vmatprep.subr.mxu0 0.0
      %1916 = vmatpush1.msra.mxu0 0.0
      %1917 = vmatprep.subr.mxu0 0.0
      %1918 = vmatpush1.msra.mxu0 0.0
      %1919 = vmatprep.subr.mxu0 0.0
      %1920 = vmatpush1.msra.mxu0 0.0
      %1921 = vmatprep.subr.mxu0 0.0
      %1922 = vmatpush1.msra.mxu0 0.0
      %1923 = vmatprep.subr.mxu0 0.0
      %1924 = vmatpush1.msra.mxu0 0.0
      %1925 = vmatprep.subr.mxu0 0.0
      %1926 = vmatpush1.msra.mxu0 0.0
      %1927 = vmatprep.subr.mxu0 0.0
      %1928 = vmatpush1.msra.mxu0 0.0
      %1929 = vmatprep.subr.mxu0 0.0
      %1930 = vmatpush1.msra.mxu0 0.0
      %1931 = vmatprep.subr.mxu0 0.0
      %1932 = vmatpush1.msra.mxu0 0.0
      %1933 = vmatprep.subr.mxu0 0.0
      %1934 = vmatpush1.msra.mxu0 0.0
      %1935 = vmatprep.subr.mxu0 0.0
      %1936 = vmatpush1.msra.mxu0 0.0
      %1937 = vmatprep.subr.mxu0 0.0
      %1938 = vmatpush1.msra.mxu0 0.0
      %1939 = vmatprep.subr.mxu0 0.0
      %1940 = vmatpush1.msra.mxu0 0.0
      %1941 = vmatprep.mubr.f32.mxu0 0.0
      %1942 = vmatmul.mubr.f32.gmra.mrb[0].mxu0 %v1869
      %v1943 = vpop.f32.mrb[0].mxu0
      %v1944 = vadd.f32 0.0, %v1943
      %v1945 = vpop.f32.mrb[0].mxu0
      %v1946 = vadd.f32 0.0, %v1945
      %1947 = vdwg.mxu0
      %1948 = vmatprep.subr.mxu0 %v502
      %1949 = vmatpush1.msra.mxu0 %v501
      %1950 = vmatprep.subr.mxu0 %v506
      %1951 = vmatpush1.msra.mxu0 %v505
      %1952 = vmatprep.subr.mxu0 %v510
      %1953 = vmatpush1.msra.mxu0 %v509
      %1954 = vmatprep.subr.mxu0 %v514
      %1955 = vmatpush1.msra.mxu0 %v513
      %1956 = vmatprep.subr.mxu0 %v518
      %1957 = vmatpush1.msra.mxu0 %v517
      %1958 = vmatprep.subr.mxu0 %v522
      %1959 = vmatpush1.msra.mxu0 %v521
      %1960 = vmatprep.subr.mxu0 %v526
      %1961 = vmatpush1.msra.mxu0 %v525
      %1962 = vmatprep.subr.mxu0 %v530
      %1963 = vmatpush1.msra.mxu0 %v529
      %1964 = vmatprep.subr.mxu0 %v534
      %1965 = vmatpush1.msra.mxu0 %v533
      %1966 = vmatprep.subr.mxu0 %v538
      %1967 = vmatpush1.msra.mxu0 %v537
      %1968 = vmatprep.subr.mxu0 %v542
      %1969 = vmatpush1.msra.mxu0 %v541
      %1970 = vmatprep.subr.mxu0 %v546
      %1971 = vmatpush1.msra.mxu0 %v545
      %1972 = vmatprep.subr.mxu0 %v550
      %1973 = vmatpush1.msra.mxu0 %v549
      %1974 = vmatprep.subr.mxu0 %v554
      %1975 = vmatpush1.msra.mxu0 %v553
      %1976 = vmatprep.subr.mxu0 %v558
      %1977 = vmatpush1.msra.mxu0 %v557
      %1978 = vmatprep.subr.mxu0 %v562
      %1979 = vmatpush1.msra.mxu0 %v561
      %1980 = vmatprep.subr.mxu0 0.0
      %1981 = vmatpush1.msra.mxu0 0.0
      %1982 = vmatprep.subr.mxu0 0.0
      %1983 = vmatpush1.msra.mxu0 0.0
      %1984 = vmatprep.subr.mxu0 0.0
      %1985 = vmatpush1.msra.mxu0 0.0
      %1986 = vmatprep.subr.mxu0 0.0
      %1987 = vmatpush1.msra.mxu0 0.0
      %1988 = vmatprep.subr.mxu0 0.0
      %1989 = vmatpush1.msra.mxu0 0.0
      %1990 = vmatprep.subr.mxu0 0.0
      %1991 = vmatpush1.msra.mxu0 0.0
      %1992 = vmatprep.subr.mxu0 0.0
      %1993 = vmatpush1.msra.mxu0 0.0
      %1994 = vmatprep.subr.mxu0 0.0
      %1995 = vmatpush1.msra.mxu0 0.0
      %1996 = vmatprep.subr.mxu0 0.0
      %1997 = vmatpush1.msra.mxu0 0.0
      %1998 = vmatprep.subr.mxu0 0.0
      %1999 = vmatpush1.msra.mxu0 0.0
      %2000 = vmatprep.subr.mxu0 0.0
      %2001 = vmatpush1.msra.mxu0 0.0
      %2002 = vmatprep.subr.mxu0 0.0
      %2003 = vmatpush1.msra.mxu0 0.0
      %2004 = vmatprep.subr.mxu0 0.0
      %2005 = vmatpush1.msra.mxu0 0.0
      %2006 = vmatprep.subr.mxu0 0.0
      %2007 = vmatpush1.msra.mxu0 0.0
      %2008 = vmatprep.subr.mxu0 0.0
      %2009 = vmatpush1.msra.mxu0 0.0
      %2010 = vmatprep.subr.mxu0 0.0
      %2011 = vmatpush1.msra.mxu0 0.0
      %2012 = vmatprep.mubr.f32.mxu0 0.0
      %2013 = vmatmul.mubr.f32.gmra.mrb[0].mxu0 %v1869
      %v2014 = vpop.f32.mrb[0].mxu0
      %v2015 = vadd.f32 0.0, %v2014
      %v2016 = vpop.f32.mrb[0].mxu0
      %v2017 = vadd.f32 0.0, %v2016
      %2018 = vdwg.mxu0
      %v2019 = vadd.f32 %v1873, %v1944
      %v2020 = vadd.f32 %v1874, %v1946
      %v2021 = vadd.f32 %v1875, %v2015
      %v2022 = vadd.f32 %v1876, %v2017
      %v2023 = vxor.u32 %v2019, 2147483648
      %v2024 = vmul.f32 %v2023, 1.442695
      %v2025 = vpow.pop %v2024
      %v2026 = vadd.f32 %v2025, 1.0
      %v2027 = vrcp.pop %v2026
      %v2028 = vmul.f32 1.0, %v2027
      %v2029 = vxor.u32 %v2020, 2147483648
      %v2030 = vmul.f32 %v2029, 1.442695
      %v2031 = vpow.pop %v2030
      %v2032 = vadd.f32 %v2031, 1.0
      %v2033 = vrcp.pop %v2032
      %v2034 = vmul.f32 1.0, %v2033
      %v2035 = vtanh.pop %v2021
      %v2036 = vxor.u32 %v2022, 2147483648
      %v2037 = vmul.f32 %v2036, 1.442695
      %v2038 = vpow.pop %v2037
      %v2039 = vadd.f32 %v2038, 1.0
      %v2040 = vrcp.pop %v2039
      %v2041 = vmul.f32 1.0, %v2040
      %v2042 = vmul.f32 %v2034, %v1867
      %v2043 = vmul.f32 %v2028, %v2035
      %v2044 = vadd.f32 %v2042, %v2043
      %v2045 = vtanh.pop %v2044
      %v2046 = vmul.f32 %v2041, %v2045
      %s2047 = sadd.s32 8, 32
      %s2048 = scalar_lea.vmem [#allocation2], %s2047
      %2049 = vst [vmem:[%s2048] sm:$0xff] %v2046
      %v2050 = vld [vmem:[%s1142] sm:$0xff]
      %v2051 = vld [vmem:[%s1142 + $0x8] sm:$0xff]
      %v2052 = vld [vmem:[%s1142 + $0x10] sm:$0xff]
      %v2053 = vld [vmem:[%s1142 + $0x18] sm:$0xff]
      %2054 = vmatprep.subr.mxu0 %v500
      %2055 = vmatpush1.msra.mxu0 %v499
      %2056 = vmatprep.subr.mxu0 %v504
      %2057 = vmatpush1.msra.mxu0 %v503
      %2058 = vmatprep.subr.mxu0 %v508
      %2059 = vmatpush1.msra.mxu0 %v507
      %2060 = vmatprep.subr.mxu0 %v512
      %2061 = vmatpush1.msra.mxu0 %v511
      %2062 = vmatprep.subr.mxu0 %v516
      %2063 = vmatpush1.msra.mxu0 %v515
      %2064 = vmatprep.subr.mxu0 %v520
      %2065 = vmatpush1.msra.mxu0 %v519
      %2066 = vmatprep.subr.mxu0 %v524
      %2067 = vmatpush1.msra.mxu0 %v523
      %2068 = vmatprep.subr.mxu0 %v528
      %2069 = vmatpush1.msra.mxu0 %v527
      %2070 = vmatprep.subr.mxu0 %v532
      %2071 = vmatpush1.msra.mxu0 %v531
      %2072 = vmatprep.subr.mxu0 %v536
      %2073 = vmatpush1.msra.mxu0 %v535
      %2074 = vmatprep.subr.mxu0 %v540
      %2075 = vmatpush1.msra.mxu0 %v539
      %2076 = vmatprep.subr.mxu0 %v544
      %2077 = vmatpush1.msra.mxu0 %v543
      %2078 = vmatprep.subr.mxu0 %v548
      %2079 = vmatpush1.msra.mxu0 %v547
      %2080 = vmatprep.subr.mxu0 %v552
      %2081 = vmatpush1.msra.mxu0 %v551
      %2082 = vmatprep.subr.mxu0 %v556
      %2083 = vmatpush1.msra.mxu0 %v555
      %2084 = vmatprep.subr.mxu0 %v560
      %2085 = vmatpush1.msra.mxu0 %v559
      %2086 = vmatprep.subr.mxu0 0.0
      %2087 = vmatpush1.msra.mxu0 0.0
      %2088 = vmatprep.subr.mxu0 0.0
      %2089 = vmatpush1.msra.mxu0 0.0
      %2090 = vmatprep.subr.mxu0 0.0
      %2091 = vmatpush1.msra.mxu0 0.0
      %2092 = vmatprep.subr.mxu0 0.0
      %2093 = vmatpush1.msra.mxu0 0.0
      %2094 = vmatprep.subr.mxu0 0.0
      %2095 = vmatpush1.msra.mxu0 0.0
      %2096 = vmatprep.subr.mxu0 0.0
      %2097 = vmatpush1.msra.mxu0 0.0
      %2098 = vmatprep.subr.mxu0 0.0
      %2099 = vmatpush1.msra.mxu0 0.0
      %2100 = vmatprep.subr.mxu0 0.0
      %2101 = vmatpush1.msra.mxu0 0.0
      %2102 = vmatprep.subr.mxu0 0.0
      %2103 = vmatpush1.msra.mxu0 0.0
      %2104 = vmatprep.subr.mxu0 0.0
      %2105 = vmatpush1.msra.mxu0 0.0
      %2106 = vmatprep.subr.mxu0 0.0
      %2107 = vmatpush1.msra.mxu0 0.0
      %2108 = vmatprep.subr.mxu0 0.0
      %2109 = vmatpush1.msra.mxu0 0.0
      %2110 = vmatprep.subr.mxu0 0.0
      %2111 = vmatpush1.msra.mxu0 0.0
      %2112 = vmatprep.subr.mxu0 0.0
      %2113 = vmatpush1.msra.mxu0 0.0
      %2114 = vmatprep.subr.mxu0 0.0
      %2115 = vmatpush1.msra.mxu0 0.0
      %2116 = vmatprep.subr.mxu0 0.0
      %2117 = vmatpush1.msra.mxu0 0.0
      %2118 = vmatprep.mubr.f32.mxu0 0.0
      %2119 = vmatmul.mubr.f32.gmra.mrb[0].mxu0 %v2046
      %v2120 = vpop.f32.mrb[0].mxu0
      %v2121 = vadd.f32 0.0, %v2120
      %v2122 = vpop.f32.mrb[0].mxu0
      %v2123 = vadd.f32 0.0, %v2122
      %2124 = vdwg.mxu0
      %2125 = vmatprep.subr.mxu0 %v502
      %2126 = vmatpush1.msra.mxu0 %v501
      %2127 = vmatprep.subr.mxu0 %v506
      %2128 = vmatpush1.msra.mxu0 %v505
      %2129 = vmatprep.subr.mxu0 %v510
      %2130 = vmatpush1.msra.mxu0 %v509
      %2131 = vmatprep.subr.mxu0 %v514
      %2132 = vmatpush1.msra.mxu0 %v513
      %2133 = vmatprep.subr.mxu0 %v518
      %2134 = vmatpush1.msra.mxu0 %v517
      %2135 = vmatprep.subr.mxu0 %v522
      %2136 = vmatpush1.msra.mxu0 %v521
      %2137 = vmatprep.subr.mxu0 %v526
      %2138 = vmatpush1.msra.mxu0 %v525
      %2139 = vmatprep.subr.mxu0 %v530
      %2140 = vmatpush1.msra.mxu0 %v529
      %2141 = vmatprep.subr.mxu0 %v534
      %2142 = vmatpush1.msra.mxu0 %v533
      %2143 = vmatprep.subr.mxu0 %v538
      %2144 = vmatpush1.msra.mxu0 %v537
      %2145 = vmatprep.subr.mxu0 %v542
      %2146 = vmatpush1.msra.mxu0 %v541
      %2147 = vmatprep.subr.mxu0 %v546
      %2148 = vmatpush1.msra.mxu0 %v545
      %2149 = vmatprep.subr.mxu0 %v550
      %2150 = vmatpush1.msra.mxu0 %v549
      %2151 = vmatprep.subr.mxu0 %v554
      %2152 = vmatpush1.msra.mxu0 %v553
      %2153 = vmatprep.subr.mxu0 %v558
      %2154 = vmatpush1.msra.mxu0 %v557
      %2155 = vmatprep.subr.mxu0 %v562
      %2156 = vmatpush1.msra.mxu0 %v561
      %2157 = vmatprep.subr.mxu0 0.0
      %2158 = vmatpush1.msra.mxu0 0.0
      %2159 = vmatprep.subr.mxu0 0.0
      %2160 = vmatpush1.msra.mxu0 0.0
      %2161 = vmatprep.subr.mxu0 0.0
      %2162 = vmatpush1.msra.mxu0 0.0
      %2163 = vmatprep.subr.mxu0 0.0
      %2164 = vmatpush1.msra.mxu0 0.0
      %2165 = vmatprep.subr.mxu0 0.0
      %2166 = vmatpush1.msra.mxu0 0.0
      %2167 = vmatprep.subr.mxu0 0.0
      %2168 = vmatpush1.msra.mxu0 0.0
      %2169 = vmatprep.subr.mxu0 0.0
      %2170 = vmatpush1.msra.mxu0 0.0
      %2171 = vmatprep.subr.mxu0 0.0
      %2172 = vmatpush1.msra.mxu0 0.0
      %2173 = vmatprep.subr.mxu0 0.0
      %2174 = vmatpush1.msra.mxu0 0.0
      %2175 = vmatprep.subr.mxu0 0.0
      %2176 = vmatpush1.msra.mxu0 0.0
      %2177 = vmatprep.subr.mxu0 0.0
      %2178 = vmatpush1.msra.mxu0 0.0
      %2179 = vmatprep.subr.mxu0 0.0
      %2180 = vmatpush1.msra.mxu0 0.0
      %2181 = vmatprep.subr.mxu0 0.0
      %2182 = vmatpush1.msra.mxu0 0.0
      %2183 = vmatprep.subr.mxu0 0.0
      %2184 = vmatpush1.msra.mxu0 0.0
      %2185 = vmatprep.subr.mxu0 0.0
      %2186 = vmatpush1.msra.mxu0 0.0
      %2187 = vmatprep.subr.mxu0 0.0
      %2188 = vmatpush1.msra.mxu0 0.0
      %2189 = vmatprep.mubr.f32.mxu0 0.0
      %2190 = vmatmul.mubr.f32.gmra.mrb[0].mxu0 %v2046
      %v2191 = vpop.f32.mrb[0].mxu0
      %v2192 = vadd.f32 0.0, %v2191
      %v2193 = vpop.f32.mrb[0].mxu0
      %v2194 = vadd.f32 0.0, %v2193
      %2195 = vdwg.mxu0
      %v2196 = vadd.f32 %v2050, %v2121
      %v2197 = vadd.f32 %v2051, %v2123
      %v2198 = vadd.f32 %v2052, %v2192
      %v2199 = vadd.f32 %v2053, %v2194
      %v2200 = vxor.u32 %v2196, 2147483648
      %v2201 = vmul.f32 %v2200, 1.442695
      %v2202 = vpow.pop %v2201
      %v2203 = vadd.f32 %v2202, 1.0
      %v2204 = vrcp.pop %v2203
      %v2205 = vmul.f32 1.0, %v2204
      %v2206 = vxor.u32 %v2197, 2147483648
      %v2207 = vmul.f32 %v2206, 1.442695
      %v2208 = vpow.pop %v2207
      %v2209 = vadd.f32 %v2208, 1.0
      %v2210 = vrcp.pop %v2209
      %v2211 = vmul.f32 1.0, %v2210
      %v2212 = vtanh.pop %v2198
      %v2213 = vxor.u32 %v2199, 2147483648
      %v2214 = vmul.f32 %v2213, 1.442695
      %v2215 = vpow.pop %v2214
      %v2216 = vadd.f32 %v2215, 1.0
      %v2217 = vrcp.pop %v2216
      %v2218 = vmul.f32 1.0, %v2217
      %v2219 = vmul.f32 %v2211, %v2044
      %v2220 = vmul.f32 %v2205, %v2212
      %v2221 = vadd.f32 %v2219, %v2220
      %v2222 = vtanh.pop %v2221
      %v2223 = vmul.f32 %v2218, %v2222
      %s2224 = sadd.s32 16, 32
      %s2225 = scalar_lea.vmem [#allocation2], %s2224
      %2226 = vst [vmem:[%s2225] sm:$0xff] %v2223
      %v2227 = vld [vmem:[%s1321] sm:$0xff]
      %v2228 = vld [vmem:[%s1321 + $0x8] sm:$0xff]
      %v2229 = vld [vmem:[%s1321 + $0x10] sm:$0xff]
      %v2230 = vld [vmem:[%s1321 + $0x18] sm:$0xff]
      %2231 = vmatprep.subr.mxu0 %v500
      %2232 = vmatpush1.msra.mxu0 %v499
      %2233 = vmatprep.subr.mxu0 %v504
      %2234 = vmatpush1.msra.mxu0 %v503
      %2235 = vmatprep.subr.mxu0 %v508
      %2236 = vmatpush1.msra.mxu0 %v507
      %2237 = vmatprep.subr.mxu0 %v512
      %2238 = vmatpush1.msra.mxu0 %v511
      %2239 = vmatprep.subr.mxu0 %v516
      %2240 = vmatpush1.msra.mxu0 %v515
      %2241 = vmatprep.subr.mxu0 %v520
      %2242 = vmatpush1.msra.mxu0 %v519
      %2243 = vmatprep.subr.mxu0 %v524
      %2244 = vmatpush1.msra.mxu0 %v523
      %2245 = vmatprep.subr.mxu0 %v528
      %2246 = vmatpush1.msra.mxu0 %v527
      %2247 = vmatprep.subr.mxu0 %v532
      %2248 = vmatpush1.msra.mxu0 %v531
      %2249 = vmatprep.subr.mxu0 %v536
      %2250 = vmatpush1.msra.mxu0 %v535
      %2251 = vmatprep.subr.mxu0 %v540
      %2252 = vmatpush1.msra.mxu0 %v539
      %2253 = vmatprep.subr.mxu0 %v544
      %2254 = vmatpush1.msra.mxu0 %v543
      %2255 = vmatprep.subr.mxu0 %v548
      %2256 = vmatpush1.msra.mxu0 %v547
      %2257 = vmatprep.subr.mxu0 %v552
      %2258 = vmatpush1.msra.mxu0 %v551
      %2259 = vmatprep.subr.mxu0 %v556
      %2260 = vmatpush1.msra.mxu0 %v555
      %2261 = vmatprep.subr.mxu0 %v560
      %2262 = vmatpush1.msra.mxu0 %v559
      %2263 = vmatprep.subr.mxu0 0.0
      %2264 = vmatpush1.msra.mxu0 0.0
      %2265 = vmatprep.subr.mxu0 0.0
      %2266 = vmatpush1.msra.mxu0 0.0
      %2267 = vmatprep.subr.mxu0 0.0
      %2268 = vmatpush1.msra.mxu0 0.0
      %2269 = vmatprep.subr.mxu0 0.0
      %2270 = vmatpush1.msra.mxu0 0.0
      %2271 = vmatprep.subr.mxu0 0.0
      %2272 = vmatpush1.msra.mxu0 0.0
      %2273 = vmatprep.subr.mxu0 0.0
      %2274 = vmatpush1.msra.mxu0 0.0
      %2275 = vmatprep.subr.mxu0 0.0
      %2276 = vmatpush1.msra.mxu0 0.0
      %2277 = vmatprep.subr.mxu0 0.0
      %2278 = vmatpush1.msra.mxu0 0.0
      %2279 = vmatprep.subr.mxu0 0.0
      %2280 = vmatpush1.msra.mxu0 0.0
      %2281 = vmatprep.subr.mxu0 0.0
      %2282 = vmatpush1.msra.mxu0 0.0
      %2283 = vmatprep.subr.mxu0 0.0
      %2284 = vmatpush1.msra.mxu0 0.0
      %2285 = vmatprep.subr.mxu0 0.0
      %2286 = vmatpush1.msra.mxu0 0.0
      %2287 = vmatprep.subr.mxu0 0.0
      %2288 = vmatpush1.msra.mxu0 0.0
      %2289 = vmatprep.subr.mxu0 0.0
      %2290 = vmatpush1.msra.mxu0 0.0
      %2291 = vmatprep.subr.mxu0 0.0
      %2292 = vmatpush1.msra.mxu0 0.0
      %2293 = vmatprep.subr.mxu0 0.0
      %2294 = vmatpush1.msra.mxu0 0.0
      %2295 = vmatprep.mubr.f32.mxu0 0.0
      %2296 = vmatmul.mubr.f32.gmra.mrb[0].mxu0 %v2223
      %v2297 = vpop.f32.mrb[0].mxu0
      %v2298 = vadd.f32 0.0, %v2297
      %v2299 = vpop.f32.mrb[0].mxu0
      %v2300 = vadd.f32 0.0, %v2299
      %2301 = vdwg.mxu0
      %2302 = vmatprep.subr.mxu0 %v502
      %2303 = vmatpush1.msra.mxu0 %v501
      %2304 = vmatprep.subr.mxu0 %v506
      %2305 = vmatpush1.msra.mxu0 %v505
      %2306 = vmatprep.subr.mxu0 %v510
      %2307 = vmatpush1.msra.mxu0 %v509
      %2308 = vmatprep.subr.mxu0 %v514
      %2309 = vmatpush1.msra.mxu0 %v513
      %2310 = vmatprep.subr.mxu0 %v518
      %2311 = vmatpush1.msra.mxu0 %v517
      %2312 = vmatprep.subr.mxu0 %v522
      %2313 = vmatpush1.msra.mxu0 %v521
      %2314 = vmatprep.subr.mxu0 %v526
      %2315 = vmatpush1.msra.mxu0 %v525
      %2316 = vmatprep.subr.mxu0 %v530
      %2317 = vmatpush1.msra.mxu0 %v529
      %2318 = vmatprep.subr.mxu0 %v534
      %2319 = vmatpush1.msra.mxu0 %v533
      %2320 = vmatprep.subr.mxu0 %v538
      %2321 = vmatpush1.msra.mxu0 %v537
      %2322 = vmatprep.subr.mxu0 %v542
      %2323 = vmatpush1.msra.mxu0 %v541
      %2324 = vmatprep.subr.mxu0 %v546
      %2325 = vmatpush1.msra.mxu0 %v545
      %2326 = vmatprep.subr.mxu0 %v550
      %2327 = vmatpush1.msra.mxu0 %v549
      %2328 = vmatprep.subr.mxu0 %v554
      %2329 = vmatpush1.msra.mxu0 %v553
      %2330 = vmatprep.subr.mxu0 %v558
      %2331 = vmatpush1.msra.mxu0 %v557
      %2332 = vmatprep.subr.mxu0 %v562
      %2333 = vmatpush1.msra.mxu0 %v561
      %2334 = vmatprep.subr.mxu0 0.0
      %2335 = vmatpush1.msra.mxu0 0.0
      %2336 = vmatprep.subr.mxu0 0.0
      %2337 = vmatpush1.msra.mxu0 0.0
      %2338 = vmatprep.subr.mxu0 0.0
      %2339 = vmatpush1.msra.mxu0 0.0
      %2340 = vmatprep.subr.mxu0 0.0
      %2341 = vmatpush1.msra.mxu0 0.0
      %2342 = vmatprep.subr.mxu0 0.0
      %2343 = vmatpush1.msra.mxu0 0.0
      %2344 = vmatprep.subr.mxu0 0.0
      %2345 = vmatpush1.msra.mxu0 0.0
      %2346 = vmatprep.subr.mxu0 0.0
      %2347 = vmatpush1.msra.mxu0 0.0
      %2348 = vmatprep.subr.mxu0 0.0
      %2349 = vmatpush1.msra.mxu0 0.0
      %2350 = vmatprep.subr.mxu0 0.0
      %2351 = vmatpush1.msra.mxu0 0.0
      %2352 = vmatprep.subr.mxu0 0.0
      %2353 = vmatpush1.msra.mxu0 0.0
      %2354 = vmatprep.subr.mxu0 0.0
      %2355 = vmatpush1.msra.mxu0 0.0
      %2356 = vmatprep.subr.mxu0 0.0
      %2357 = vmatpush1.msra.mxu0 0.0
      %2358 = vmatprep.subr.mxu0 0.0
      %2359 = vmatpush1.msra.mxu0 0.0
      %2360 = vmatprep.subr.mxu0 0.0
      %2361 = vmatpush1.msra.mxu0 0.0
      %2362 = vmatprep.subr.mxu0 0.0
      %2363 = vmatpush1.msra.mxu0 0.0
      %2364 = vmatprep.subr.mxu0 0.0
      %2365 = vmatpush1.msra.mxu0 0.0
      %2366 = vmatprep.mubr.f32.mxu0 0.0
      %2367 = vmatmul.mubr.f32.gmra.mrb[0].mxu0 %v2223
      %v2368 = vpop.f32.mrb[0].mxu0
      %v2369 = vadd.f32 0.0, %v2368
      %v2370 = vpop.f32.mrb[0].mxu0
      %v2371 = vadd.f32 0.0, %v2370
      %2372 = vdwg.mxu0
      %v2373 = vadd.f32 %v2227, %v2298
      %v2374 = vadd.f32 %v2228, %v2300
      %v2375 = vadd.f32 %v2229, %v2369
      %v2376 = vadd.f32 %v2230, %v2371
      %v2377 = vxor.u32 %v2373, 2147483648
      %v2378 = vmul.f32 %v2377, 1.442695
      %v2379 = vpow.pop %v2378
      %v2380 = vadd.f32 %v2379, 1.0
      %v2381 = vrcp.pop %v2380
      %v2382 = vmul.f32 1.0, %v2381
      %v2383 = vxor.u32 %v2374, 2147483648
      %v2384 = vmul.f32 %v2383, 1.442695
      %v2385 = vpow.pop %v2384
      %v2386 = vadd.f32 %v2385, 1.0
      %v2387 = vrcp.pop %v2386
      %v2388 = vmul.f32 1.0, %v2387
      %v2389 = vtanh.pop %v2375
      %v2390 = vxor.u32 %v2376, 2147483648
      %v2391 = vmul.f32 %v2390, 1.442695
      %v2392 = vpow.pop %v2391
      %v2393 = vadd.f32 %v2392, 1.0
      %v2394 = vrcp.pop %v2393
      %v2395 = vmul.f32 1.0, %v2394
      %v2396 = vmul.f32 %v2388, %v2221
      %v2397 = vmul.f32 %v2382, %v2389
      %v2398 = vadd.f32 %v2396, %v2397
      %v2399 = vtanh.pop %v2398
      %v2400 = vmul.f32 %v2395, %v2399
      %s2401 = sadd.s32 24, 32
      %s2402 = scalar_lea.vmem [#allocation2], %s2401
      %2403 = vst [vmem:[%s2402] sm:$0xff] %v2400
      %2404 = vst [vmem:[%s361] sm:$0xff] %v2400
      %2405 = vst [vmem:[%s369] sm:$0xff] %v2398
      %p2406 = scmp.eq.s32.totalorder %s25, 1
      // Predicated region
      $region79: #{rnn_decoder_forward.1} parent=39 // pred_check
        %p2407 = pneg %p2406
      $region80: #{rnn_decoder_forward.1} parent=39 // pred_check_branch
        %2409 = sbr.rel (%p2407) target = $region82
      $region81: #{rnn_decoder_forward.1} parent=39 // pred_region
        %v2410 = vld [vmem:[#allocation2] sm:$0xff]
        %v2411 = vld [vmem:[#allocation2 + $0x8] sm:$0xff]
        %v2412 = vld [vmem:[#allocation2 + $0x10] sm:$0xff]
        %v2413 = vld [vmem:[#allocation2 + $0x18] sm:$0xff]
        %v2414 = vld [vmem:[#allocation2 + $0x20] sm:$0xff]
        %v2415 = vld [vmem:[#allocation2 + $0x28] sm:$0xff]
        %v2416 = vld [vmem:[#allocation2 + $0x30] sm:$0xff]
        %v2417 = vld [vmem:[#allocation2 + $0x38] sm:$0xff]
        %v2418 = vld [vmem:[%s4] sm:$0xff]
        %v2419 = vld [vmem:[%s4 + $0x8] sm:$0xff]
        %v2420 = vld [vmem:[%s4 + $0x10] sm:$0xff]
        %v2421 = vld [vmem:[%s4 + $0x18] sm:$0xff]
        %v2422 = vld [vmem:[%s4 + $0x20] sm:$0xff]
        %v2423 = vld [vmem:[%s4 + $0x28] sm:$0xff]
        %v2424 = vld [vmem:[%s4 + $0x30] sm:$0xff]
        %v2425 = vld [vmem:[%s4 + $0x38] sm:$0xff]
        %v2426 = vld [vmem:[%s4 + $0x40] sm:$0xff]
        %v2427 = vld [vmem:[%s4 + $0x48] sm:$0xff]
        %v2428 = vld [vmem:[%s4 + $0x50] sm:$0xff]
        %v2429 = vld [vmem:[%s4 + $0x58] sm:$0xff]
        %v2430 = vld [vmem:[%s4 + $0x60] sm:$0xff]
        %v2431 = vld [vmem:[%s4 + $0x68] sm:$0xff]
        %v2432 = vld [vmem:[%s4 + $0x70] sm:$0xff]
        %v2433 = vld [vmem:[%s4 + $0x78] sm:$0xff]
        %v2434 = vld [vmem:[%s5] sm:$0x1]
        %v2436 = vlaneseq
        %v2437 = vshrl.u32 %v2436, 7
        %v2438 = vsub.s32 0, %v2437
        %v2439 = vrot.slane %v2434, %v2438
        %2441 = vmatprep.subr.mxu0 0.0
        %2442 = vmatpush1.msra.mxu0 %v2418
        %2443 = vmatprep.subr.mxu0 0.0
        %2444 = vmatpush1.msra.mxu0 %v2419
        %2445 = vmatprep.subr.mxu0 0.0
        %2446 = vmatpush1.msra.mxu0 %v2420
        %2447 = vmatprep.subr.mxu0 0.0
        %2448 = vmatpush1.msra.mxu0 %v2421
        %2449 = vmatprep.subr.mxu0 0.0
        %2450 = vmatpush1.msra.mxu0 %v2422
        %2451 = vmatprep.subr.mxu0 0.0
        %2452 = vmatpush1.msra.mxu0 %v2423
        %2453 = vmatprep.subr.mxu0 0.0
        %2454 = vmatpush1.msra.mxu0 %v2424
        %2455 = vmatprep.subr.mxu0 0.0
        %2456 = vmatpush1.msra.mxu0 %v2425
        %2457 = vmatprep.subr.mxu0 0.0
        %2458 = vmatpush1.msra.mxu0 %v2426
        %2459 = vmatprep.subr.mxu0 0.0
        %2460 = vmatpush1.msra.mxu0 %v2427
        %2461 = vmatprep.subr.mxu0 0.0
        %2462 = vmatpush1.msra.mxu0 %v2428
        %2463 = vmatprep.subr.mxu0 0.0
        %2464 = vmatpush1.msra.mxu0 %v2429
        %2465 = vmatprep.subr.mxu0 0.0
        %2466 = vmatpush1.msra.mxu0 %v2430
        %2467 = vmatprep.subr.mxu0 0.0
        %2468 = vmatpush1.msra.mxu0 %v2431
        %2469 = vmatprep.subr.mxu0 0.0
        %2470 = vmatpush1.msra.mxu0 %v2432
        %2471 = vmatprep.subr.mxu0 0.0
        %2472 = vmatpush1.msra.mxu0 %v2433
        %2473 = vmatprep.subr.mxu0 0.0
        %2474 = vmatpush1.msra.mxu0 0.0
        %2475 = vmatprep.subr.mxu0 0.0
        %2476 = vmatpush1.msra.mxu0 0.0
        %2477 = vmatprep.subr.mxu0 0.0
        %2478 = vmatpush1.msra.mxu0 0.0
        %2479 = vmatprep.subr.mxu0 0.0
        %2480 = vmatpush1.msra.mxu0 0.0
        %2481 = vmatprep.subr.mxu0 0.0
        %2482 = vmatpush1.msra.mxu0 0.0
        %2483 = vmatprep.subr.mxu0 0.0
        %2484 = vmatpush1.msra.mxu0 0.0
        %2485 = vmatprep.subr.mxu0 0.0
        %2486 = vmatpush1.msra.mxu0 0.0
        %2487 = vmatprep.subr.mxu0 0.0
        %2488 = vmatpush1.msra.mxu0 0.0
        %2489 = vmatprep.subr.mxu0 0.0
        %2490 = vmatpush1.msra.mxu0 0.0
        %2491 = vmatprep.subr.mxu0 0.0
        %2492 = vmatpush1.msra.mxu0 0.0
        %2493 = vmatprep.subr.mxu0 0.0
        %2494 = vmatpush1.msra.mxu0 0.0
        %2495 = vmatprep.subr.mxu0 0.0
        %2496 = vmatpush1.msra.mxu0 0.0
        %2497 = vmatprep.subr.mxu0 0.0
        %2498 = vmatpush1.msra.mxu0 0.0
        %2499 = vmatprep.subr.mxu0 0.0
        %2500 = vmatpush1.msra.mxu0 0.0
        %2501 = vmatprep.subr.mxu0 0.0
        %2502 = vmatpush1.msra.mxu0 0.0
        %2503 = vmatprep.subr.mxu0 0.0
        %2504 = vmatpush1.msra.mxu0 0.0
        %2505 = vmatprep.mubr.f32.mxu0 0.0
        %2506 = vmatmul.mubr.f32.gmra.mrb[0].mxu0 %v2410
        %v2507 = vpop.f32.mrb[0].mxu0
        %v2508 = vadd.f32 %v2439, %v2507
        %v2509 = vpop.f32.mrb[0].mxu0
        %2510 = vmatprep.mubr.f32.mxu0 0.0
        %2511 = vmatmul.mubr.f32.gmra.mrb[0].mxu0 %v2411
        %v2512 = vpop.f32.mrb[0].mxu0
        %v2513 = vadd.f32 %v2439, %v2512
        %v2514 = vpop.f32.mrb[0].mxu0
        %2515 = vmatprep.mubr.f32.mxu0 0.0
        %2516 = vmatmul.mubr.f32.gmra.mrb[0].mxu0 %v2412
        %v2517 = vpop.f32.mrb[0].mxu0
        %v2518 = vadd.f32 %v2439, %v2517
        %v2519 = vpop.f32.mrb[0].mxu0
        %2520 = vmatprep.mubr.f32.mxu0 0.0
        %2521 = vmatmul.mubr.f32.gmra.mrb[0].mxu0 %v2413
        %v2522 = vpop.f32.mrb[0].mxu0
        %v2523 = vadd.f32 %v2439, %v2522
        %v2524 = vpop.f32.mrb[0].mxu0
        %2525 = vmatprep.mubr.f32.mxu0 0.0
        %2526 = vmatmul.mubr.f32.gmra.mrb[0].mxu0 %v2414
        %v2527 = vpop.f32.mrb[0].mxu0
        %v2528 = vadd.f32 %v2439, %v2527
        %v2529 = vpop.f32.mrb[0].mxu0
        %2530 = vmatprep.mubr.f32.mxu0 0.0
        %2531 = vmatmul.mubr.f32.gmra.mrb[0].mxu0 %v2415
        %v2532 = vpop.f32.mrb[0].mxu0
        %v2533 = vadd.f32 %v2439, %v2532
        %v2534 = vpop.f32.mrb[0].mxu0
        %2535 = vmatprep.mubr.f32.mxu0 0.0
        %2536 = vmatmul.mubr.f32.gmra.mrb[0].mxu0 %v2416
        %v2537 = vpop.f32.mrb[0].mxu0
        %v2538 = vadd.f32 %v2439, %v2537
        %v2539 = vpop.f32.mrb[0].mxu0
        %2540 = vmatprep.mubr.f32.mxu0 0.0
        %2541 = vmatmul.mubr.f32.gmra.mrb[0].mxu0 %v2417
        %v2542 = vpop.f32.mrb[0].mxu0
        %v2543 = vadd.f32 %v2439, %v2542
        %v2544 = vpop.f32.mrb[0].mxu0
        %2545 = vdwg.mxu0
        %2546 = vst [vmem:[%s353] sm:$0xff] %v2508
        %2547 = vst [vmem:[%s353 + $0x8] sm:$0xff] %v2513
        %2548 = vst [vmem:[%s353 + $0x10] sm:$0xff] %v2518
        %2549 = vst [vmem:[%s353 + $0x18] sm:$0xff] %v2523
        %2550 = vst [vmem:[%s353 + $0x20] sm:$0xff] %v2528
        %2551 = vst [vmem:[%s353 + $0x28] sm:$0xff] %v2533
        %2552 = vst [vmem:[%s353 + $0x30] sm:$0xff] %v2538
        %2553 = vst [vmem:[%s353 + $0x38] sm:$0xff] %v2543
      $region82: #{rnn_decoder_forward.1} parent=39 // pred_fallthru
        _
      %p2554 = scmp.lt.s32.totalorder %s24, 1
      %s2555 = scalar_select %p2554, %s24, 1
      %s2556 = smul.addr %s2555, 8
      %s2557 = smul.addr %s2556, 8
      %s2558 = scalar_lea.vmem %s6, %s2557
      %p2559 = scmp.lt.s32.totalorder %s25, 1
      %s2560 = scalar_select %p2559, %s25, 1
      %p2561 = scmp.lt.s32.totalorder %s24, 1
      %s2562 = scalar_select %p2561, %s24, 1
      %s2563 = smul.addr %s2560, 2
      %s2564 = sadd.s32 %s2562, %s2563
      %s2565 = smul.addr %s2564, 8
      %s2566 = scalar_lea.vmem %s7, %s2565
      %p2567 = scmp.lt.s32.totalorder %s25, 1
      %s2568 = scalar_select %p2567, %s25, 1
      %p2569 = scmp.lt.s32.totalorder %s24, 1
      %s2570 = scalar_select %p2569, %s24, 1
      %s2571 = smul.addr %s2568, 2
      %s2572 = sadd.s32 %s2570, %s2571
      %s2573 = smul.addr %s2572, 8
      %s2574 = scalar_lea.vmem %s8, %s2573
      // Predicated region
      $region83: #{rnn_decoder_forward.1} parent=39 // pred_check
        %p2575 = pneg %p170
      $region84: #{rnn_decoder_forward.1} parent=39 // pred_check_branch
        %2577 = sbr.rel (%p2575) target = $region86
      $region85: #{rnn_decoder_forward.1} parent=39 // pred_region
        _
      $region86: #{rnn_decoder_forward.1} parent=39 // pred_fallthru
        _
      // Predicated region
      $region87: #{rnn_decoder_forward.1} parent=39 // pred_check
        %p2578 = pneg %p198
      $region88: #{rnn_decoder_forward.1} parent=39 // pred_check_branch
        %2580 = sbr.rel (%p2578) target = $region90
      $region89: #{rnn_decoder_forward.1} parent=39 // pred_region
        _
      $region90: #{rnn_decoder_forward.1} parent=39 // pred_fallthru
        _
      // Predicated region
      $region91: #{rnn_decoder_forward.1} parent=39 // pred_check
        %p2581 = pneg %p226
      $region92: #{rnn_decoder_forward.1} parent=39 // pred_check_branch
        %2583 = sbr.rel (%p2581) target = $region94
      $region93: #{rnn_decoder_forward.1} parent=39 // pred_region
        _
      $region94: #{rnn_decoder_forward.1} parent=39 // pred_fallthru
        _
    $region40: #{rnn_decoder_forward.1} parent=5 // pred_fallthru
      _
    %p2584 = scmp.le.s32.totalorder 2, %s15
    // Predicated region
    $region95: #{rnn_decoder_forward.1} parent=5 // pred_check
      %p2585 = pneg %p2584
    $region96: #{rnn_decoder_forward.1} parent=5 // pred_check_branch
      %2587 = sbr.rel (%p2585) target = $region98
    $region97: #{rnn_decoder_forward.1} parent=5 // pred_region
      %s2588 = ssub.s32 %s15, 2
      // Predicated region
      $region99: #{rnn_decoder_forward.1} parent=97 // pred_check
        %p2589 = pneg %p176
      $region100: #{rnn_decoder_forward.1} parent=97 // pred_check_branch
        %2591 = sbr.rel (%p2589) target = $region102
      $region101: #{rnn_decoder_forward.1} parent=97 // pred_region
        %p2592 = scmp.lt.s32.totalorder %s26, 1
        %s2593 = scalar_select %p2592, %s26, 1
        %s2594 = smul.addr %s2593, 8
        %s2595 = smul.addr %s2594, 8
        %s2596 = scalar_lea.vmem %s6, %s2595
      $region102: #{rnn_decoder_forward.1} parent=97 // pred_fallthru
        _
      // Predicated region
      $region103: #{rnn_decoder_forward.1} parent=97 // pred_check
        %p2597 = pneg %p204
      $region104: #{rnn_decoder_forward.1} parent=97 // pred_check_branch
        %2599 = sbr.rel (%p2597) target = $region106
      $region105: #{rnn_decoder_forward.1} parent=97 // pred_region
        %p2600 = scmp.lt.s32.totalorder %s27, 1
        %s2601 = scalar_select %p2600, %s27, 1
        %p2602 = scmp.lt.s32.totalorder %s26, 1
        %s2603 = scalar_select %p2602, %s26, 1
        %s2604 = smul.addr %s2601, 2
        %s2605 = sadd.s32 %s2603, %s2604
        %s2606 = smul.addr %s2605, 8
        %s2607 = scalar_lea.vmem %s7, %s2606
      $region106: #{rnn_decoder_forward.1} parent=97 // pred_fallthru
        _
      // Predicated region
      $region107: #{rnn_decoder_forward.1} parent=97 // pred_check
        %p2608 = pneg %p232
      $region108: #{rnn_decoder_forward.1} parent=97 // pred_check_branch
        %2610 = sbr.rel (%p2608) target = $region110
      $region109: #{rnn_decoder_forward.1} parent=97 // pred_region
        %p2611 = scmp.lt.s32.totalorder %s27, 1
        %s2612 = scalar_select %p2611, %s27, 1
        %p2613 = scmp.lt.s32.totalorder %s26, 1
        %s2614 = scalar_select %p2613, %s26, 1
        %s2615 = smul.addr %s2612, 2
        %s2616 = sadd.s32 %s2614, %s2615
        %s2617 = smul.addr %s2616, 8
        %s2618 = scalar_lea.vmem %s8, %s2617
      $region110: #{rnn_decoder_forward.1} parent=97 // pred_fallthru
        _
    $region98: #{rnn_decoder_forward.1} parent=5 // pred_fallthru
      _
  $region6: #{rnn_decoder_forward.1} parent=0 // loop_footer
    %s19 = sadd.s32 1, %s15
  $region7: #{rnn_decoder_forward.1} parent=0 // loop_footer_branch
    %14 = sbr.rel target = $region3
  $region8: #{rnn_decoder_forward.1} parent=0 // loop_exit
    _
  %2619 = vsyncmov [#allocation4]
  %s2620 = vpop.sfrf %2619
  %p2621 = scmp.eq.s32.totalorder %s2620, 0
  %p2622 = pneg %p2621
  %2624 = shalt.err (%p2622)

</llo_original>
